<compile_context>
chip_gen: v5e
topology: v5e:2x2
jax: 0.10.0
libtpu: 0.0.40
codegen_flags: <defaults>
</compile_context>

<pallas_src>
import math

import jax
import jax.numpy as jnp
from jax import lax
from jax.experimental import pallas as pl
from jax.experimental.pallas import tpu as pltpu


def _sigmoid(x):
    # 0.5*(tanh(0.5 x)+1): saturating, maps to the EUP slot, no inf intermediates.
    return 0.5 * (jnp.tanh(0.5 * x) + 1.0)


def pointer_net_kernel(
    ep_ref, mask_ref, L_ref, tgt_ref,
    w_ep_ref, b_ep_ref, w_L_ref, b_L_ref,
    wih_fb_ref, bias_fb_ref, whh_f_ref, whh_b_ref,
    wproj_f_ref, wproj_b_ref, bproj_ref,
    wih_d_ref, bias_d_ref, dstart_ref, wfused_ref, v_ref,
    out_ref,
    gxf_ref, gxb_ref, hf_ref, hb_ref, enckey_ref, gxd_ref,
):
    E, B = ep_ref.shape
    H = w_ep_ref.shape[1]
    T = out_ref.shape[0]
    f32 = jnp.float32
    mdt = wih_fb_ref.dtype          # MXU operand dtype (bf16 on v6e/v7x, f32 fallback)

    # ---- embeddings: enc_in[e, b, :] = embed_ep(endpoints[b, e]) + embed_L(L[b]) ----
    ep = ep_ref[...]                                              # (E, B)
    L_emb = L_ref[...] * w_L_ref[...] + b_L_ref[...]              # (B, H)
    ep_emb = ep[:, :, None] * w_ep_ref[...][None, :, :] + b_ep_ref[...][None, :, :]
    enc_in2d = (ep_emb + L_emb[None, :, :]).reshape(E * B, H)     # (E*B, H)

    # ---- hoisted encoder input projections: ONE fused (H, 8H) matmul (fwd+bwd) ----
    gx = (jnp.dot(enc_in2d.astype(mdt), wih_fb_ref[...], preferred_element_type=f32)
          + bias_fb_ref[...])                                     # (E*B, 8H)
    gxf_ref[...] = gx[:, :4 * H].reshape(E, B, 4 * H)
    gxb_ref[...] = gx[:, 4 * H:].reshape(E, B, 4 * H)

    def gate_update(gates, c):
        # gate columns pre-reordered to (i, f, o | g): one sigmoid + one tanh region
        s = _sigmoid(gates[:, :3 * H])
        i = s[:, 0 * H:1 * H]
        f = s[:, 1 * H:2 * H]
        o = s[:, 2 * H:3 * H]
        g = jnp.tanh(gates[:, 3 * H:])
        c_new = f * c + i * g
        return o * jnp.tanh(c_new), c_new

    zeros_bh = jnp.zeros((B, H), f32)
    enc_unroll = True if E <= 16 else 4   # guard vreg pressure at production sizes
    dec_unroll = True if T <= 16 else 4

    # ---- fused bidirectional encoder recurrence (fwd + bwd in one loop) ----
    def enc_body(k, carry):
        hf, cf, hb, cb = carry
        j = E - 1 - k
        gates_f = gxf_ref[k] + jnp.dot(hf.astype(mdt), whh_f_ref[...],
                                       preferred_element_type=f32)
        hf, cf = gate_update(gates_f, cf)
        hf_ref[k] = hf
        gates_b = gxb_ref[j] + jnp.dot(hb.astype(mdt), whh_b_ref[...],
                                       preferred_element_type=f32)
        hb, cb = gate_update(gates_b, cb)
        hb_ref[j] = hb
        return hf, cf, hb, cb

    lax.fori_loop(0, E, enc_body, (zeros_bh, zeros_bh, zeros_bh, zeros_bh),
                  unroll=enc_unroll)

    # ---- enc / enc_key: W_enc folded into enc_proj in the wrapper; both
    #      projections share the same fused RHS -> two MXU launches total ----
    hf2 = hf_ref[...].reshape(E * B, H).astype(mdt)
    hb2 = hb_ref[...].reshape(E * B, H).astype(mdt)
    henc = (jnp.dot(hf2, wproj_f_ref[...], preferred_element_type=f32)
            + jnp.dot(hb2, wproj_b_ref[...], preferred_element_type=f32)
            + bproj_ref[...])                                     # (E*B, 2H) = [enc | enc_key]
    enc = henc[:, :H].reshape(E, B, H)                            # e-major, for the gather
    # Batch-major attention keys so per-step scores come out (B, E) lane-dense.
    # One-time static copy loop (hoisted out of every recurrence).
    enckey_ebh = henc[:, H:].reshape(E, B, H)
    for e in range(E):
        enckey_ref[:, e:e + 1, :] = enckey_ebh[e][:, None, :]

    # ---- hoisted teacher forcing: gather decoder inputs for ALL steps, then ONE
    #      (T*B, H) @ (H, 4H) matmul for the decoder input gates ----
    tgt = tgt_ref[...]                                            # (T, B) int32
    iota_eb = lax.broadcasted_iota(jnp.int32, (E, B), 0)
    dec_rows = [jnp.broadcast_to(dstart_ref[...], (B, H))]        # step 0 input
    for t in range(T - 1):                                        # tgt == E (STOP) -> zeros
        sel = (iota_eb == tgt[t:t + 1]).astype(f32)               # (E, B)
        dec_rows.append(jnp.sum(sel[:, :, None] * enc, axis=0))   # (B, H)
    dec_in2d = jnp.concatenate(dec_rows, axis=0)                  # (T*B, H), row = t*B + b
    gxd_ref[...] = (jnp.dot(dec_in2d.astype(mdt), wih_d_ref[...],
                            preferred_element_type=f32)
                    + bias_d_ref[...]).reshape(T, B, 4 * H)

    # ---- decoder with pointer attention: ONE MXU launch per step ----
    mask_bias = jnp.where(mask_ref[...] > 0.5, 0.0, -jnp.inf)     # (B, E), hoisted
    v_b = v_ref[...].reshape(1, 1, H)                             # hoisted broadcast

    def dec_body(t, carry):
        cx, fused = carry                 # fused = h_prev @ [whh_d | W_dec]
        gates = gxd_ref[t] + fused[:, :4 * H]
        hx, cx = gate_update(gates, cx)
        fused = jnp.dot(hx.astype(mdt), wfused_ref[...],
                        preferred_element_type=f32)               # (B, 5H)
        dec_key = fused[:, 4 * H:]                                # (B, H)
        att = jnp.tanh(enckey_ref[...] + dec_key[:, None, :])     # (B, E, H)
        scores = jnp.sum(att * v_b, axis=-1) + mask_bias          # (B, E)
        # log_softmax over [scores ; 0] without materializing the concat with zeros
        m = jnp.maximum(jnp.max(scores, axis=-1, keepdims=True), 0.0)      # (B, 1)
        se = jnp.sum(jnp.exp(scores - m), axis=-1, keepdims=True) + jnp.exp(-m)
        lse = jnp.log(se) + m                                     # (B, 1)
        out_ref[t] = jnp.concatenate([scores - lse, -lse], axis=-1)   # (B, E+1), one store
        return cx, fused

    lax.fori_loop(0, T, dec_body, (zeros_bh, jnp.zeros((B, 5 * H), f32)),
                  unroll=dec_unroll)
    # TODO(synk): inference-time greedy decoding (target_seq=None -> per-step argmax
    # feedback) is data-dependent and not expressed here; teacher forcing only.


def pointer_net_forward(params, endpoints, mask, L, target_seq, *,
                        mxu_dtype=jnp.bfloat16):
    """PointerNet forward (teacher forcing). Returns (B, T, E+1) log-probs."""
    B, E = endpoints.shape
    T = target_seq.shape[1]
    H = params["w_ep"].shape[1]
    f32 = jnp.float32

    def rg(w):
        # PyTorch LSTM gate order (i, f, g, o) -> (i, f, o, g): lets the kernel apply
        # one sigmoid over the first 3H gate columns and one tanh over the last H.
        i, f, g, o = jnp.split(w, 4, axis=-1)
        return jnp.concatenate([i, f, o, g], axis=-1)

    ep_T = jnp.transpose(endpoints.astype(f32), (1, 0))            # (E, B)
    mask_f = mask.astype(f32)                                       # (B, E)
    tgt = jnp.transpose(target_seq.astype(jnp.int32), (1, 0))      # (T, B)

    # One fused (H, 8H) RHS for both encoder directions' input projections.
    wih_fb = jnp.concatenate([rg(params["wih_f"]), rg(params["wih_b"])],
                             axis=1).astype(mxu_dtype)
    bias_fb = jnp.concatenate([rg(params["bias_f"]), rg(params["bias_b"])], axis=1)
    whh_f = rg(params["whh_f"]).astype(mxu_dtype)
    whh_b = rg(params["whh_b"]).astype(mxu_dtype)

    # Fold W_enc into enc_proj and fuse enc / enc_key into one (., 2H) projection,
    # split over [h_fwd ; h_bwd] so no lane concat is needed in the kernel.
    wp, bp = params["wp"], params["bp"]
    wpe = wp @ params["wenc"]
    bpe = bp @ params["wenc"]
    wproj_f = jnp.concatenate([wp[:H], wpe[:H]], axis=1).astype(mxu_dtype)   # (H, 2H)
    wproj_b = jnp.concatenate([wp[H:], wpe[H:]], axis=1).astype(mxu_dtype)   # (H, 2H)
    bproj = jnp.concatenate([bp, bpe], axis=1)                               # (1, 2H)

    wih_d = rg(params["wih_d"]).astype(mxu_dtype)
    bias_d = rg(params["bias_d"])
    # One MXU launch per decoder step: hx @ [whh_d | W_dec] -> [next gates_h | dec_key].
    wfused = jnp.concatenate([rg(params["whh_d"]), params["wdec"]],
                             axis=1).astype(mxu_dtype)                       # (H, 5H)

    args = [
        ep_T, mask_f, L.astype(f32), tgt,
        params["w_ep"], params["b_ep"], params["w_L"], params["b_L"],
        wih_fb, bias_fb, whh_f, whh_b,
        wproj_f, wproj_b, bproj,
        wih_d, bias_d, params["dec_start"], wfused, params["v"],
    ]

    scratch_specs = [
        ((E, B, 4 * H), f32),   # hoisted fwd encoder input gates
        ((E, B, 4 * H), f32),   # hoisted bwd encoder input gates
        ((E, B, H), f32),       # fwd hidden states
        ((E, B, H), f32),       # bwd hidden states
        ((B, E, H), f32),       # attention keys, batch-major
        ((T, B, 4 * H), f32),   # hoisted decoder input gates
    ]
    # TODO(synk): for production E, pad E+1 toward a multiple of 128 lanes.
    out_shape = jax.ShapeDtypeStruct((T, B, E + 1), f32)

    # VMEM budget from actual buffer sizes (+ headroom for in-kernel temporaries),
    # capped at 64 MiB so the same setting is safe on v7x.
    def nbytes(shape, dtype):
        return math.prod(shape) * jnp.dtype(dtype).itemsize

    buf_bytes = (sum(nbytes(a.shape, a.dtype) for a in args)
                 + nbytes(out_shape.shape, out_shape.dtype)
                 + sum(nbytes(s, d) for s, d in scratch_specs))
    vmem_limit = int(min(max(2 * buf_bytes + (4 << 20), 16 << 20), 64 << 20))

    # TODO(synk): for production B on v7x, add a batch grid axis
    # (grid=(B//TB,), dimension_semantics=("parallel",)) so both TensorCores are
    # used; omitted here because the toy B=2 cannot form (8,128)-legal batch tiles.
    out_tbk = pl.pallas_call(
        pointer_net_kernel,
        out_shape=out_shape,
        in_specs=[pl.BlockSpec(memory_space=pltpu.MemorySpace.VMEM)] * len(args),
        out_specs=pl.BlockSpec(memory_space=pltpu.MemorySpace.VMEM),
        scratch_shapes=[pltpu.VMEM(s, d) for s, d in scratch_specs],
        compiler_params=pltpu.CompilerParams(vmem_limit_bytes=vmem_limit),
    )(*args)
    # Only the two leading (non-lane) axes are swapped; the lane axis (E+1) is untouched.
    return jnp.transpose(out_tbk, (1, 0, 2))                      # (B, T, E+1)


def init_params(key, H):
    ks = jax.random.split(key, 18)

    def u(k, shape, scale):
        return jax.random.uniform(k, shape, jnp.float32, -scale, scale)

    s = 1.0 / float(H) ** 0.5
    s2 = 1.0 / float(2 * H) ** 0.5
    p = {}
    # embed_ep / embed_L : Linear(1, H)  (weights pre-transposed to (in, out))
    p["w_ep"] = u(ks[0], (1, H), 1.0)
    p["b_ep"] = u(ks[1], (1, H), 1.0)
    p["w_L"] = u(ks[2], (1, H), 1.0)
    p["b_L"] = u(ks[3], (1, H), 1.0)
    # bidirectional encoder LSTM, PyTorch gate order (i, f, g, o); bias = b_ih + b_hh
    p["wih_f"] = u(ks[4], (H, 4 * H), s)
    p["whh_f"] = u(ks[5], (H, 4 * H), s)
    p["bias_f"] = u(ks[6], (1, 4 * H), s)
    p["wih_b"] = u(ks[7], (H, 4 * H), s)
    p["whh_b"] = u(ks[8], (H, 4 * H), s)
    p["bias_b"] = u(ks[9], (1, 4 * H), s)
    # enc_proj : Linear(2H, H)
    p["wp"] = u(ks[10], (2 * H, H), s2)
    p["bp"] = u(ks[11], (1, H), s2)
    # decoder LSTMCell
    p["wih_d"] = u(ks[12], (H, 4 * H), s)
    p["whh_d"] = u(ks[13], (H, 4 * H), s)
    p["bias_d"] = u(ks[14], (1, 4 * H), s)
    # decoder_start initialized to zeros, as in the PyTorch module
    p["dec_start"] = jnp.zeros((1, H), jnp.float32)
    # attention projections (no bias)
    p["wenc"] = u(ks[15], (H, H), s)
    p["wdec"] = u(ks[16], (H, H), s)
    p["v"] = u(ks[17], (1, H), s)
    return p


if __name__ == "__main__":
    H, B, E, T = 32, 2, 8, 6
    key = jax.random.PRNGKey(0)
    kp, ke, kl, kt = jax.random.split(key, 4)

    params = init_params(kp, H)
    endpoints = jax.random.normal(ke, (B, E), jnp.float32)
    valid_len = jnp.array([E, 5], jnp.int32)
    mask = jnp.arange(E)[None, :] < valid_len[:, None]          # (B, E) bool
    L = jax.random.uniform(kl, (B, 1), jnp.float32)
    target_seq = jax.random.randint(kt, (B, T), 0, E + 1)       # values in [0..E], E == STOP

    out = pointer_net_forward(params, endpoints, mask, L, target_seq)
    out = jax.block_until_ready(out)

    assert out.shape == (B, T, E + 1)
    assert not bool(jnp.any(jnp.isnan(out)))
    print("KERNEL_OK")
</pallas_src>

<mosaic_0001>
module attributes {stable_mosaic.version = 11 : i64} {
  func.func @pointer_net_kernel(%arg0: memref<8x2xf32, #tpu.memory_space<vmem>>, %arg1: memref<2x8xf32, #tpu.memory_space<vmem>>, %arg2: memref<2x1xf32, #tpu.memory_space<vmem>>, %arg3: memref<6x2xi32, #tpu.memory_space<vmem>>, %arg4: memref<1x32xf32, #tpu.memory_space<vmem>>, %arg5: memref<1x32xf32, #tpu.memory_space<vmem>>, %arg6: memref<1x32xf32, #tpu.memory_space<vmem>>, %arg7: memref<1x32xf32, #tpu.memory_space<vmem>>, %arg8: memref<32x256xbf16, #tpu.memory_space<vmem>>, %arg9: memref<1x256xf32, #tpu.memory_space<vmem>>, %arg10: memref<32x128xbf16, #tpu.memory_space<vmem>>, %arg11: memref<32x128xbf16, #tpu.memory_space<vmem>>, %arg12: memref<32x64xbf16, #tpu.memory_space<vmem>>, %arg13: memref<32x64xbf16, #tpu.memory_space<vmem>>, %arg14: memref<1x64xf32, #tpu.memory_space<vmem>>, %arg15: memref<32x128xbf16, #tpu.memory_space<vmem>>, %arg16: memref<1x128xf32, #tpu.memory_space<vmem>>, %arg17: memref<1x32xf32, #tpu.memory_space<vmem>>, %arg18: memref<32x160xbf16, #tpu.memory_space<vmem>>, %arg19: memref<1x32xf32, #tpu.memory_space<vmem>>, %arg20: memref<6x2x9xf32, #tpu.memory_space<vmem>>, %arg21: memref<8x2x128xf32, #tpu.memory_space<vmem>>, %arg22: memref<8x2x128xf32, #tpu.memory_space<vmem>>, %arg23: memref<8x2x32xf32, #tpu.memory_space<vmem>>, %arg24: memref<8x2x32xf32, #tpu.memory_space<vmem>>, %arg25: memref<2x8x32xf32, #tpu.memory_space<vmem>>, %arg26: memref<6x2x128xf32, #tpu.memory_space<vmem>>) attributes {dimension_semantics = [], scalar_prefetch = 0 : i64, scratch_operands = 6 : i64, tpu.core_type = #tpu.core_type<tc>} {
    %c0 = arith.constant 0 : index
    %c0_0 = arith.constant 0 : index
    %0 = vector.load %arg0[%c0, %c0_0] : memref<8x2xf32, #tpu.memory_space<vmem>>, vector<8x2xf32>
    %c0_1 = arith.constant 0 : index
    %c0_2 = arith.constant 0 : index
    %1 = vector.load %arg2[%c0_1, %c0_2] : memref<2x1xf32, #tpu.memory_space<vmem>>, vector<2x1xf32>
    %c0_3 = arith.constant 0 : index
    %c0_4 = arith.constant 0 : index
    %2 = vector.load %arg6[%c0_3, %c0_4] : memref<1x32xf32, #tpu.memory_space<vmem>>, vector<1x32xf32>
    %3 = vector.broadcast %1 : vector<2x1xf32> to vector<2x32xf32>
    %4 = vector.broadcast %2 : vector<1x32xf32> to vector<2x32xf32>
    %5 = arith.mulf %3, %4 : vector<2x32xf32>
    %c0_5 = arith.constant 0 : index
    %c0_6 = arith.constant 0 : index
    %6 = vector.load %arg7[%c0_5, %c0_6] : memref<1x32xf32, #tpu.memory_space<vmem>>, vector<1x32xf32>
    %7 = vector.broadcast %6 : vector<1x32xf32> to vector<2x32xf32>
    %8 = arith.addf %5, %7 : vector<2x32xf32>
    %9 = vector.shape_cast %0 : vector<8x2xf32> to vector<8x2x1xf32>
    %c0_7 = arith.constant 0 : index
    %c0_8 = arith.constant 0 : index
    %10 = vector.load %arg4[%c0_7, %c0_8] : memref<1x32xf32, #tpu.memory_space<vmem>>, vector<1x32xf32>
    %11 = vector.shape_cast %10 : vector<1x32xf32> to vector<1x1x32xf32>
    %12 = vector.broadcast %9 : vector<8x2x1xf32> to vector<8x2x32xf32>
    %13 = vector.broadcast %11 : vector<1x1x32xf32> to vector<8x2x32xf32>
    %14 = arith.mulf %12, %13 : vector<8x2x32xf32>
    %c0_9 = arith.constant 0 : index
    %c0_10 = arith.constant 0 : index
    %15 = vector.load %arg5[%c0_9, %c0_10] : memref<1x32xf32, #tpu.memory_space<vmem>>, vector<1x32xf32>
    %16 = vector.shape_cast %15 : vector<1x32xf32> to vector<1x1x32xf32>
    %17 = vector.broadcast %16 : vector<1x1x32xf32> to vector<8x2x32xf32>
    %18 = arith.addf %14, %17 : vector<8x2x32xf32>
    %19 = vector.shape_cast %8 : vector<2x32xf32> to vector<1x2x32xf32>
    %20 = vector.broadcast %19 : vector<1x2x32xf32> to vector<8x2x32xf32>
    %21 = arith.addf %18, %20 : vector<8x2x32xf32>
    %22 = vector.shape_cast %21 : vector<8x2x32xf32> to vector<16x32xf32>
    %23 = arith.truncf %22 : vector<16x32xf32> to vector<16x32xbf16>
    %c0_11 = arith.constant 0 : index
    %c0_12 = arith.constant 0 : index
    %24 = vector.load %arg8[%c0_11, %c0_12] : memref<32x256xbf16, #tpu.memory_space<vmem>>, vector<32x256xbf16>
    %cst = arith.constant dense<0.000000e+00> : vector<16x256xf32>
    %25 = tpu.matmul %23, %24, %cst {dimension_numbers = #tpu.dot_dimension_numbers<[1], [0], [0], [1], [0, 0, 1, 1], [], []>} : vector<16x32xbf16>, vector<32x256xbf16>, vector<16x256xf32> -> vector<16x256xf32>
    %c0_13 = arith.constant 0 : index
    %c0_14 = arith.constant 0 : index
    %26 = vector.load %arg9[%c0_13, %c0_14] : memref<1x256xf32, #tpu.memory_space<vmem>>, vector<1x256xf32>
    %27 = vector.broadcast %26 : vector<1x256xf32> to vector<16x256xf32>
    %28 = arith.addf %25, %27 : vector<16x256xf32>
    %29 = vector.extract_strided_slice %28 {offsets = [0, 0], sizes = [16, 128], strides = [1, 1]} : vector<16x256xf32> to vector<16x128xf32>
    %30 = vector.shape_cast %29 : vector<16x128xf32> to vector<8x2x128xf32>
    %c0_15 = arith.constant 0 : index
    %c0_16 = arith.constant 0 : index
    %c0_17 = arith.constant 0 : index
    %31 = vector.load %arg21[%c0_15, %c0_16, %c0_17] : memref<8x2x128xf32, #tpu.memory_space<vmem>>, vector<8x2x128xf32>
    tpu.vector_store %arg21[%c0_15, %c0_16, %c0_17], %30 {strides = array<i32>} : memref<8x2x128xf32, #tpu.memory_space<vmem>>, vector<8x2x128xf32>,
    %32 = vector.extract_strided_slice %28 {offsets = [0, 128], sizes = [16, 128], strides = [1, 1]} : vector<16x256xf32> to vector<16x128xf32>
    %33 = vector.shape_cast %32 : vector<16x128xf32> to vector<8x2x128xf32>
    %c0_18 = arith.constant 0 : index
    %c0_19 = arith.constant 0 : index
    %c0_20 = arith.constant 0 : index
    %34 = vector.load %arg22[%c0_18, %c0_19, %c0_20] : memref<8x2x128xf32, #tpu.memory_space<vmem>>, vector<8x2x128xf32>
    tpu.vector_store %arg22[%c0_18, %c0_19, %c0_20], %33 {strides = array<i32>} : memref<8x2x128xf32, #tpu.memory_space<vmem>>, vector<8x2x128xf32>,
    %cst_21 = arith.constant 0.000000e+00 : f32
    %35 = vector.broadcast %cst_21 : f32 to vector<2x32xf32>
    %c0_i32 = arith.constant 0 : i32
    %c7_i32 = arith.constant 7 : i32
    %36 = arith.subi %c7_i32, %c0_i32 : i32
    %37 = arith.index_cast %c0_i32 : i32 to index
    %c0_22 = arith.constant 0 : index
    %c0_23 = arith.constant 0 : index
    %38 = vector.load %arg21[%37, %c0_22, %c0_23] : memref<8x2x128xf32, #tpu.memory_space<vmem>>, vector<1x2x128xf32>
    %39 = vector.shape_cast %38 : vector<1x2x128xf32> to vector<2x128xf32>
    %40 = arith.truncf %35 : vector<2x32xf32> to vector<2x32xbf16>
    %c0_24 = arith.constant 0 : index
    %c0_25 = arith.constant 0 : index
    %41 = vector.load %arg10[%c0_24, %c0_25] : memref<32x128xbf16, #tpu.memory_space<vmem>>, vector<32x128xbf16>
    %cst_26 = arith.constant dense<0.000000e+00> : vector<2x128xf32>
    %42 = tpu.matmul %40, %41, %cst_26 {dimension_numbers = #tpu.dot_dimension_numbers<[1], [0], [0], [1], [0, 0, 1, 1], [], []>} : vector<2x32xbf16>, vector<32x128xbf16>, vector<2x128xf32> -> vector<2x128xf32>
    %43 = arith.addf %39, %42 : vector<2x128xf32>
    %44 = vector.extract_strided_slice %43 {offsets = [0, 0], sizes = [2, 96], strides = [1, 1]} : vector<2x128xf32> to vector<2x96xf32>
    %cst_27 = arith.constant 5.000000e-01 : f32
    %45 = vector.broadcast %cst_27 : f32 to vector<2x96xf32>
    %46 = arith.mulf %45, %44 : vector<2x96xf32>
    %47 = math.tanh %46 : vector<2x96xf32>
    %cst_28 = arith.constant 1.000000e+00 : f32
    %48 = vector.broadcast %cst_28 : f32 to vector<2x96xf32>
    %49 = arith.addf %47, %48 : vector<2x96xf32>
    %cst_29 = arith.constant 5.000000e-01 : f32
    %50 = vector.broadcast %cst_29 : f32 to vector<2x96xf32>
    %51 = arith.mulf %50, %49 : vector<2x96xf32>
    %52 = vector.extract_strided_slice %51 {offsets = [0, 0], sizes = [2, 32], strides = [1, 1]} : vector<2x96xf32> to vector<2x32xf32>
    %53 = vector.extract_strided_slice %51 {offsets = [0, 32], sizes = [2, 32], strides = [1, 1]} : vector<2x96xf32> to vector<2x32xf32>
    %54 = vector.extract_strided_slice %51 {offsets = [0, 64], sizes = [2, 32], strides = [1, 1]} : vector<2x96xf32> to vector<2x32xf32>
    %55 = vector.extract_strided_slice %43 {offsets = [0, 96], sizes = [2, 32], strides = [1, 1]} : vector<2x128xf32> to vector<2x32xf32>
    %56 = math.tanh %55 : vector<2x32xf32>
    %57 = arith.mulf %53, %35 : vector<2x32xf32>
    %58 = arith.mulf %52, %56 : vector<2x32xf32>
    %59 = arith.addf %57, %58 : vector<2x32xf32>
    %60 = math.tanh %59 : vector<2x32xf32>
    %61 = arith.mulf %54, %60 : vector<2x32xf32>
    %62 = arith.index_cast %c0_i32 : i32 to index
    %c0_30 = arith.constant 0 : index
    %c0_31 = arith.constant 0 : index
    %63 = vector.load %arg23[%62, %c0_30, %c0_31] : memref<8x2x32xf32, #tpu.memory_space<vmem>>, vector<1x2x32xf32>
    %64 = vector.shape_cast %63 : vector<1x2x32xf32> to vector<2x32xf32>
    %65 = vector.shape_cast %61 : vector<2x32xf32> to vector<1x2x32xf32>
    tpu.vector_store %arg23[%62, %c0_30, %c0_31], %65 {strides = array<i32>} : memref<8x2x32xf32, #tpu.memory_space<vmem>>, vector<1x2x32xf32>,
    %66 = arith.index_cast %36 : i32 to index
    %c0_32 = arith.constant 0 : index
    %c0_33 = arith.constant 0 : index
    %67 = vector.load %arg22[%66, %c0_32, %c0_33] : memref<8x2x128xf32, #tpu.memory_space<vmem>>, vector<1x2x128xf32>
    %68 = vector.shape_cast %67 : vector<1x2x128xf32> to vector<2x128xf32>
    %69 = arith.truncf %35 : vector<2x32xf32> to vector<2x32xbf16>
    %c0_34 = arith.constant 0 : index
    %c0_35 = arith.constant 0 : index
    %70 = vector.load %arg11[%c0_34, %c0_35] : memref<32x128xbf16, #tpu.memory_space<vmem>>, vector<32x128xbf16>
    %cst_36 = arith.constant dense<0.000000e+00> : vector<2x128xf32>
    %71 = tpu.matmul %69, %70, %cst_36 {dimension_numbers = #tpu.dot_dimension_numbers<[1], [0], [0], [1], [0, 0, 1, 1], [], []>} : vector<2x32xbf16>, vector<32x128xbf16>, vector<2x128xf32> -> vector<2x128xf32>
    %72 = arith.addf %68, %71 : vector<2x128xf32>
    %73 = vector.extract_strided_slice %72 {offsets = [0, 0], sizes = [2, 96], strides = [1, 1]} : vector<2x128xf32> to vector<2x96xf32>
    %cst_37 = arith.constant 5.000000e-01 : f32
    %74 = vector.broadcast %cst_37 : f32 to vector<2x96xf32>
    %75 = arith.mulf %74, %73 : vector<2x96xf32>
    %76 = math.tanh %75 : vector<2x96xf32>
    %cst_38 = arith.constant 1.000000e+00 : f32
    %77 = vector.broadcast %cst_38 : f32 to vector<2x96xf32>
    %78 = arith.addf %76, %77 : vector<2x96xf32>
    %cst_39 = arith.constant 5.000000e-01 : f32
    %79 = vector.broadcast %cst_39 : f32 to vector<2x96xf32>
    %80 = arith.mulf %79, %78 : vector<2x96xf32>
    %81 = vector.extract_strided_slice %80 {offsets = [0, 0], sizes = [2, 32], strides = [1, 1]} : vector<2x96xf32> to vector<2x32xf32>
    %82 = vector.extract_strided_slice %80 {offsets = [0, 32], sizes = [2, 32], strides = [1, 1]} : vector<2x96xf32> to vector<2x32xf32>
    %83 = vector.extract_strided_slice %80 {offsets = [0, 64], sizes = [2, 32], strides = [1, 1]} : vector<2x96xf32> to vector<2x32xf32>
    %84 = vector.extract_strided_slice %72 {offsets = [0, 96], sizes = [2, 32], strides = [1, 1]} : vector<2x128xf32> to vector<2x32xf32>
    %85 = math.tanh %84 : vector<2x32xf32>
    %86 = arith.mulf %82, %35 : vector<2x32xf32>
    %87 = arith.mulf %81, %85 : vector<2x32xf32>
    %88 = arith.addf %86, %87 : vector<2x32xf32>
    %89 = math.tanh %88 : vector<2x32xf32>
    %90 = arith.mulf %83, %89 : vector<2x32xf32>
    %91 = arith.index_cast %36 : i32 to index
    %c0_40 = arith.constant 0 : index
    %c0_41 = arith.constant 0 : index
    %92 = vector.load %arg24[%91, %c0_40, %c0_41] : memref<8x2x32xf32, #tpu.memory_space<vmem>>, vector<1x2x32xf32>
    %93 = vector.shape_cast %92 : vector<1x2x32xf32> to vector<2x32xf32>
    %94 = vector.shape_cast %90 : vector<2x32xf32> to vector<1x2x32xf32>
    tpu.vector_store %arg24[%91, %c0_40, %c0_41], %94 {strides = array<i32>} : memref<8x2x32xf32, #tpu.memory_space<vmem>>, vector<1x2x32xf32>,
    %c1_i32 = arith.constant 1 : i32
    %c7_i32_42 = arith.constant 7 : i32
    %95 = arith.subi %c7_i32_42, %c1_i32 : i32
    %96 = arith.index_cast %c1_i32 : i32 to index
    %c0_43 = arith.constant 0 : index
    %c0_44 = arith.constant 0 : index
    %97 = vector.load %arg21[%96, %c0_43, %c0_44] : memref<8x2x128xf32, #tpu.memory_space<vmem>>, vector<1x2x128xf32>
    %98 = vector.shape_cast %97 : vector<1x2x128xf32> to vector<2x128xf32>
    %99 = arith.truncf %61 : vector<2x32xf32> to vector<2x32xbf16>
    %c0_45 = arith.constant 0 : index
    %c0_46 = arith.constant 0 : index
    %100 = vector.load %arg10[%c0_45, %c0_46] : memref<32x128xbf16, #tpu.memory_space<vmem>>, vector<32x128xbf16>
    %cst_47 = arith.constant dense<0.000000e+00> : vector<2x128xf32>
    %101 = tpu.matmul %99, %100, %cst_47 {dimension_numbers = #tpu.dot_dimension_numbers<[1], [0], [0], [1], [0, 0, 1, 1], [], []>} : vector<2x32xbf16>, vector<32x128xbf16>, vector<2x128xf32> -> vector<2x128xf32>
    %102 = arith.addf %98, %101 : vector<2x128xf32>
    %103 = vector.extract_strided_slice %102 {offsets = [0, 0], sizes = [2, 96], strides = [1, 1]} : vector<2x128xf32> to vector<2x96xf32>
    %cst_48 = arith.constant 5.000000e-01 : f32
    %104 = vector.broadcast %cst_48 : f32 to vector<2x96xf32>
    %105 = arith.mulf %104, %103 : vector<2x96xf32>
    %106 = math.tanh %105 : vector<2x96xf32>
    %cst_49 = arith.constant 1.000000e+00 : f32
    %107 = vector.broadcast %cst_49 : f32 to vector<2x96xf32>
    %108 = arith.addf %106, %107 : vector<2x96xf32>
    %cst_50 = arith.constant 5.000000e-01 : f32
    %109 = vector.broadcast %cst_50 : f32 to vector<2x96xf32>
    %110 = arith.mulf %109, %108 : vector<2x96xf32>
    %111 = vector.extract_strided_slice %110 {offsets = [0, 0], sizes = [2, 32], strides = [1, 1]} : vector<2x96xf32> to vector<2x32xf32>
    %112 = vector.extract_strided_slice %110 {offsets = [0, 32], sizes = [2, 32], strides = [1, 1]} : vector<2x96xf32> to vector<2x32xf32>
    %113 = vector.extract_strided_slice %110 {offsets = [0, 64], sizes = [2, 32], strides = [1, 1]} : vector<2x96xf32> to vector<2x32xf32>
    %114 = vector.extract_strided_slice %102 {offsets = [0, 96], sizes = [2, 32], strides = [1, 1]} : vector<2x128xf32> to vector<2x32xf32>
    %115 = math.tanh %114 : vector<2x32xf32>
    %116 = arith.mulf %112, %59 : vector<2x32xf32>
    %117 = arith.mulf %111, %115 : vector<2x32xf32>
    %118 = arith.addf %116, %117 : vector<2x32xf32>
    %119 = math.tanh %118 : vector<2x32xf32>
    %120 = arith.mulf %113, %119 : vector<2x32xf32>
    %121 = arith.index_cast %c1_i32 : i32 to index
    %c0_51 = arith.constant 0 : index
    %c0_52 = arith.constant 0 : index
    %122 = vector.load %arg23[%121, %c0_51, %c0_52] : memref<8x2x32xf32, #tpu.memory_space<vmem>>, vector<1x2x32xf32>
    %123 = vector.shape_cast %122 : vector<1x2x32xf32> to vector<2x32xf32>
    %124 = vector.shape_cast %120 : vector<2x32xf32> to vector<1x2x32xf32>
    tpu.vector_store %arg23[%121, %c0_51, %c0_52], %124 {strides = array<i32>} : memref<8x2x32xf32, #tpu.memory_space<vmem>>, vector<1x2x32xf32>,
    %125 = arith.index_cast %95 : i32 to index
    %c0_53 = arith.constant 0 : index
    %c0_54 = arith.constant 0 : index
    %126 = vector.load %arg22[%125, %c0_53, %c0_54] : memref<8x2x128xf32, #tpu.memory_space<vmem>>, vector<1x2x128xf32>
    %127 = vector.shape_cast %126 : vector<1x2x128xf32> to vector<2x128xf32>
    %128 = arith.truncf %90 : vector<2x32xf32> to vector<2x32xbf16>
    %c0_55 = arith.constant 0 : index
    %c0_56 = arith.constant 0 : index
    %129 = vector.load %arg11[%c0_55, %c0_56] : memref<32x128xbf16, #tpu.memory_space<vmem>>, vector<32x128xbf16>
    %cst_57 = arith.constant dense<0.000000e+00> : vector<2x128xf32>
    %130 = tpu.matmul %128, %129, %cst_57 {dimension_numbers = #tpu.dot_dimension_numbers<[1], [0], [0], [1], [0, 0, 1, 1], [], []>} : vector<2x32xbf16>, vector<32x128xbf16>, vector<2x128xf32> -> vector<2x128xf32>
    %131 = arith.addf %127, %130 : vector<2x128xf32>
    %132 = vector.extract_strided_slice %131 {offsets = [0, 0], sizes = [2, 96], strides = [1, 1]} : vector<2x128xf32> to vector<2x96xf32>
    %cst_58 = arith.constant 5.000000e-01 : f32
    %133 = vector.broadcast %cst_58 : f32 to vector<2x96xf32>
    %134 = arith.mulf %133, %132 : vector<2x96xf32>
    %135 = math.tanh %134 : vector<2x96xf32>
    %cst_59 = arith.constant 1.000000e+00 : f32
    %136 = vector.broadcast %cst_59 : f32 to vector<2x96xf32>
    %137 = arith.addf %135, %136 : vector<2x96xf32>
    %cst_60 = arith.constant 5.000000e-01 : f32
    %138 = vector.broadcast %cst_60 : f32 to vector<2x96xf32>
    %139 = arith.mulf %138, %137 : vector<2x96xf32>
    %140 = vector.extract_strided_slice %139 {offsets = [0, 0], sizes = [2, 32], strides = [1, 1]} : vector<2x96xf32> to vector<2x32xf32>
    %141 = vector.extract_strided_slice %139 {offsets = [0, 32], sizes = [2, 32], strides = [1, 1]} : vector<2x96xf32> to vector<2x32xf32>
    %142 = vector.extract_strided_slice %139 {offsets = [0, 64], sizes = [2, 32], strides = [1, 1]} : vector<2x96xf32> to vector<2x32xf32>
    %143 = vector.extract_strided_slice %131 {offsets = [0, 96], sizes = [2, 32], strides = [1, 1]} : vector<2x128xf32> to vector<2x32xf32>
    %144 = math.tanh %143 : vector<2x32xf32>
    %145 = arith.mulf %141, %88 : vector<2x32xf32>
    %146 = arith.mulf %140, %144 : vector<2x32xf32>
    %147 = arith.addf %145, %146 : vector<2x32xf32>
    %148 = math.tanh %147 : vector<2x32xf32>
    %149 = arith.mulf %142, %148 : vector<2x32xf32>
    %150 = arith.index_cast %95 : i32 to index
    %c0_61 = arith.constant 0 : index
    %c0_62 = arith.constant 0 : index
    %151 = vector.load %arg24[%150, %c0_61, %c0_62] : memref<8x2x32xf32, #tpu.memory_space<vmem>>, vector<1x2x32xf32>
    %152 = vector.shape_cast %151 : vector<1x2x32xf32> to vector<2x32xf32>
    %153 = vector.shape_cast %149 : vector<2x32xf32> to vector<1x2x32xf32>
    tpu.vector_store %arg24[%150, %c0_61, %c0_62], %153 {strides = array<i32>} : memref<8x2x32xf32, #tpu.memory_space<vmem>>, vector<1x2x32xf32>,
    %c2_i32 = arith.constant 2 : i32
    %c7_i32_63 = arith.constant 7 : i32
    %154 = arith.subi %c7_i32_63, %c2_i32 : i32
    %155 = arith.index_cast %c2_i32 : i32 to index
    %c0_64 = arith.constant 0 : index
    %c0_65 = arith.constant 0 : index
    %156 = vector.load %arg21[%155, %c0_64, %c0_65] : memref<8x2x128xf32, #tpu.memory_space<vmem>>, vector<1x2x128xf32>
    %157 = vector.shape_cast %156 : vector<1x2x128xf32> to vector<2x128xf32>
    %158 = arith.truncf %120 : vector<2x32xf32> to vector<2x32xbf16>
    %c0_66 = arith.constant 0 : index
    %c0_67 = arith.constant 0 : index
    %159 = vector.load %arg10[%c0_66, %c0_67] : memref<32x128xbf16, #tpu.memory_space<vmem>>, vector<32x128xbf16>
    %cst_68 = arith.constant dense<0.000000e+00> : vector<2x128xf32>
    %160 = tpu.matmul %158, %159, %cst_68 {dimension_numbers = #tpu.dot_dimension_numbers<[1], [0], [0], [1], [0, 0, 1, 1], [], []>} : vector<2x32xbf16>, vector<32x128xbf16>, vector<2x128xf32> -> vector<2x128xf32>
    %161 = arith.addf %157, %160 : vector<2x128xf32>
    %162 = vector.extract_strided_slice %161 {offsets = [0, 0], sizes = [2, 96], strides = [1, 1]} : vector<2x128xf32> to vector<2x96xf32>
    %cst_69 = arith.constant 5.000000e-01 : f32
    %163 = vector.broadcast %cst_69 : f32 to vector<2x96xf32>
    %164 = arith.mulf %163, %162 : vector<2x96xf32>
    %165 = math.tanh %164 : vector<2x96xf32>
    %cst_70 = arith.constant 1.000000e+00 : f32
    %166 = vector.broadcast %cst_70 : f32 to vector<2x96xf32>
    %167 = arith.addf %165, %166 : vector<2x96xf32>
    %cst_71 = arith.constant 5.000000e-01 : f32
    %168 = vector.broadcast %cst_71 : f32 to vector<2x96xf32>
    %169 = arith.mulf %168, %167 : vector<2x96xf32>
    %170 = vector.extract_strided_slice %169 {offsets = [0, 0], sizes = [2, 32], strides = [1, 1]} : vector<2x96xf32> to vector<2x32xf32>
    %171 = vector.extract_strided_slice %169 {offsets = [0, 32], sizes = [2, 32], strides = [1, 1]} : vector<2x96xf32> to vector<2x32xf32>
    %172 = vector.extract_strided_slice %169 {offsets = [0, 64], sizes = [2, 32], strides = [1, 1]} : vector<2x96xf32> to vector<2x32xf32>
    %173 = vector.extract_strided_slice %161 {offsets = [0, 96], sizes = [2, 32], strides = [1, 1]} : vector<2x128xf32> to vector<2x32xf32>
    %174 = math.tanh %173 : vector<2x32xf32>
    %175 = arith.mulf %171, %118 : vector<2x32xf32>
    %176 = arith.mulf %170, %174 : vector<2x32xf32>
    %177 = arith.addf %175, %176 : vector<2x32xf32>
    %178 = math.tanh %177 : vector<2x32xf32>
    %179 = arith.mulf %172, %178 : vector<2x32xf32>
    %180 = arith.index_cast %c2_i32 : i32 to index
    %c0_72 = arith.constant 0 : index
    %c0_73 = arith.constant 0 : index
    %181 = vector.load %arg23[%180, %c0_72, %c0_73] : memref<8x2x32xf32, #tpu.memory_space<vmem>>, vector<1x2x32xf32>
    %182 = vector.shape_cast %181 : vector<1x2x32xf32> to vector<2x32xf32>
    %183 = vector.shape_cast %179 : vector<2x32xf32> to vector<1x2x32xf32>
    tpu.vector_store %arg23[%180, %c0_72, %c0_73], %183 {strides = array<i32>} : memref<8x2x32xf32, #tpu.memory_space<vmem>>, vector<1x2x32xf32>,
    %184 = arith.index_cast %154 : i32 to index
    %c0_74 = arith.constant 0 : index
    %c0_75 = arith.constant 0 : index
    %185 = vector.load %arg22[%184, %c0_74, %c0_75] : memref<8x2x128xf32, #tpu.memory_space<vmem>>, vector<1x2x128xf32>
    %186 = vector.shape_cast %185 : vector<1x2x128xf32> to vector<2x128xf32>
    %187 = arith.truncf %149 : vector<2x32xf32> to vector<2x32xbf16>
    %c0_76 = arith.constant 0 : index
    %c0_77 = arith.constant 0 : index
    %188 = vector.load %arg11[%c0_76, %c0_77] : memref<32x128xbf16, #tpu.memory_space<vmem>>, vector<32x128xbf16>
    %cst_78 = arith.constant dense<0.000000e+00> : vector<2x128xf32>
    %189 = tpu.matmul %187, %188, %cst_78 {dimension_numbers = #tpu.dot_dimension_numbers<[1], [0], [0], [1], [0, 0, 1, 1], [], []>} : vector<2x32xbf16>, vector<32x128xbf16>, vector<2x128xf32> -> vector<2x128xf32>
    %190 = arith.addf %186, %189 : vector<2x128xf32>
    %191 = vector.extract_strided_slice %190 {offsets = [0, 0], sizes = [2, 96], strides = [1, 1]} : vector<2x128xf32> to vector<2x96xf32>
    %cst_79 = arith.constant 5.000000e-01 : f32
    %192 = vector.broadcast %cst_79 : f32 to vector<2x96xf32>
    %193 = arith.mulf %192, %191 : vector<2x96xf32>
    %194 = math.tanh %193 : vector<2x96xf32>
    %cst_80 = arith.constant 1.000000e+00 : f32
    %195 = vector.broadcast %cst_80 : f32 to vector<2x96xf32>
    %196 = arith.addf %194, %195 : vector<2x96xf32>
    %cst_81 = arith.constant 5.000000e-01 : f32
    %197 = vector.broadcast %cst_81 : f32 to vector<2x96xf32>
    %198 = arith.mulf %197, %196 : vector<2x96xf32>
    %199 = vector.extract_strided_slice %198 {offsets = [0, 0], sizes = [2, 32], strides = [1, 1]} : vector<2x96xf32> to vector<2x32xf32>
    %200 = vector.extract_strided_slice %198 {offsets = [0, 32], sizes = [2, 32], strides = [1, 1]} : vector<2x96xf32> to vector<2x32xf32>
    %201 = vector.extract_strided_slice %198 {offsets = [0, 64], sizes = [2, 32], strides = [1, 1]} : vector<2x96xf32> to vector<2x32xf32>
    %202 = vector.extract_strided_slice %190 {offsets = [0, 96], sizes = [2, 32], strides = [1, 1]} : vector<2x128xf32> to vector<2x32xf32>
    %203 = math.tanh %202 : vector<2x32xf32>
    %204 = arith.mulf %200, %147 : vector<2x32xf32>
    %205 = arith.mulf %199, %203 : vector<2x32xf32>
    %206 = arith.addf %204, %205 : vector<2x32xf32>
    %207 = math.tanh %206 : vector<2x32xf32>
    %208 = arith.mulf %201, %207 : vector<2x32xf32>
    %209 = arith.index_cast %154 : i32 to index
    %c0_82 = arith.constant 0 : index
    %c0_83 = arith.constant 0 : index
    %210 = vector.load %arg24[%209, %c0_82, %c0_83] : memref<8x2x32xf32, #tpu.memory_space<vmem>>, vector<1x2x32xf32>
    %211 = vector.shape_cast %210 : vector<1x2x32xf32> to vector<2x32xf32>
    %212 = vector.shape_cast %208 : vector<2x32xf32> to vector<1x2x32xf32>
    tpu.vector_store %arg24[%209, %c0_82, %c0_83], %212 {strides = array<i32>} : memref<8x2x32xf32, #tpu.memory_space<vmem>>, vector<1x2x32xf32>,
    %c3_i32 = arith.constant 3 : i32
    %c7_i32_84 = arith.constant 7 : i32
    %213 = arith.subi %c7_i32_84, %c3_i32 : i32
    %214 = arith.index_cast %c3_i32 : i32 to index
    %c0_85 = arith.constant 0 : index
    %c0_86 = arith.constant 0 : index
    %215 = vector.load %arg21[%214, %c0_85, %c0_86] : memref<8x2x128xf32, #tpu.memory_space<vmem>>, vector<1x2x128xf32>
    %216 = vector.shape_cast %215 : vector<1x2x128xf32> to vector<2x128xf32>
    %217 = arith.truncf %179 : vector<2x32xf32> to vector<2x32xbf16>
    %c0_87 = arith.constant 0 : index
    %c0_88 = arith.constant 0 : index
    %218 = vector.load %arg10[%c0_87, %c0_88] : memref<32x128xbf16, #tpu.memory_space<vmem>>, vector<32x128xbf16>
    %cst_89 = arith.constant dense<0.000000e+00> : vector<2x128xf32>
    %219 = tpu.matmul %217, %218, %cst_89 {dimension_numbers = #tpu.dot_dimension_numbers<[1], [0], [0], [1], [0, 0, 1, 1], [], []>} : vector<2x32xbf16>, vector<32x128xbf16>, vector<2x128xf32> -> vector<2x128xf32>
    %220 = arith.addf %216, %219 : vector<2x128xf32>
    %221 = vector.extract_strided_slice %220 {offsets = [0, 0], sizes = [2, 96], strides = [1, 1]} : vector<2x128xf32> to vector<2x96xf32>
    %cst_90 = arith.constant 5.000000e-01 : f32
    %222 = vector.broadcast %cst_90 : f32 to vector<2x96xf32>
    %223 = arith.mulf %222, %221 : vector<2x96xf32>
    %224 = math.tanh %223 : vector<2x96xf32>
    %cst_91 = arith.constant 1.000000e+00 : f32
    %225 = vector.broadcast %cst_91 : f32 to vector<2x96xf32>
    %226 = arith.addf %224, %225 : vector<2x96xf32>
    %cst_92 = arith.constant 5.000000e-01 : f32
    %227 = vector.broadcast %cst_92 : f32 to vector<2x96xf32>
    %228 = arith.mulf %227, %226 : vector<2x96xf32>
    %229 = vector.extract_strided_slice %228 {offsets = [0, 0], sizes = [2, 32], strides = [1, 1]} : vector<2x96xf32> to vector<2x32xf32>
    %230 = vector.extract_strided_slice %228 {offsets = [0, 32], sizes = [2, 32], strides = [1, 1]} : vector<2x96xf32> to vector<2x32xf32>
    %231 = vector.extract_strided_slice %228 {offsets = [0, 64], sizes = [2, 32], strides = [1, 1]} : vector<2x96xf32> to vector<2x32xf32>
    %232 = vector.extract_strided_slice %220 {offsets = [0, 96], sizes = [2, 32], strides = [1, 1]} : vector<2x128xf32> to vector<2x32xf32>
    %233 = math.tanh %232 : vector<2x32xf32>
    %234 = arith.mulf %230, %177 : vector<2x32xf32>
    %235 = arith.mulf %229, %233 : vector<2x32xf32>
    %236 = arith.addf %234, %235 : vector<2x32xf32>
    %237 = math.tanh %236 : vector<2x32xf32>
    %238 = arith.mulf %231, %237 : vector<2x32xf32>
    %239 = arith.index_cast %c3_i32 : i32 to index
    %c0_93 = arith.constant 0 : index
    %c0_94 = arith.constant 0 : index
    %240 = vector.load %arg23[%239, %c0_93, %c0_94] : memref<8x2x32xf32, #tpu.memory_space<vmem>>, vector<1x2x32xf32>
    %241 = vector.shape_cast %240 : vector<1x2x32xf32> to vector<2x32xf32>
    %242 = vector.shape_cast %238 : vector<2x32xf32> to vector<1x2x32xf32>
    tpu.vector_store %arg23[%239, %c0_93, %c0_94], %242 {strides = array<i32>} : memref<8x2x32xf32, #tpu.memory_space<vmem>>, vector<1x2x32xf32>,
    %243 = arith.index_cast %213 : i32 to index
    %c0_95 = arith.constant 0 : index
    %c0_96 = arith.constant 0 : index
    %244 = vector.load %arg22[%243, %c0_95, %c0_96] : memref<8x2x128xf32, #tpu.memory_space<vmem>>, vector<1x2x128xf32>
    %245 = vector.shape_cast %244 : vector<1x2x128xf32> to vector<2x128xf32>
    %246 = arith.truncf %208 : vector<2x32xf32> to vector<2x32xbf16>
    %c0_97 = arith.constant 0 : index
    %c0_98 = arith.constant 0 : index
    %247 = vector.load %arg11[%c0_97, %c0_98] : memref<32x128xbf16, #tpu.memory_space<vmem>>, vector<32x128xbf16>
    %cst_99 = arith.constant dense<0.000000e+00> : vector<2x128xf32>
    %248 = tpu.matmul %246, %247, %cst_99 {dimension_numbers = #tpu.dot_dimension_numbers<[1], [0], [0], [1], [0, 0, 1, 1], [], []>} : vector<2x32xbf16>, vector<32x128xbf16>, vector<2x128xf32> -> vector<2x128xf32>
    %249 = arith.addf %245, %248 : vector<2x128xf32>
    %250 = vector.extract_strided_slice %249 {offsets = [0, 0], sizes = [2, 96], strides = [1, 1]} : vector<2x128xf32> to vector<2x96xf32>
    %cst_100 = arith.constant 5.000000e-01 : f32
    %251 = vector.broadcast %cst_100 : f32 to vector<2x96xf32>
    %252 = arith.mulf %251, %250 : vector<2x96xf32>
    %253 = math.tanh %252 : vector<2x96xf32>
    %cst_101 = arith.constant 1.000000e+00 : f32
    %254 = vector.broadcast %cst_101 : f32 to vector<2x96xf32>
    %255 = arith.addf %253, %254 : vector<2x96xf32>
    %cst_102 = arith.constant 5.000000e-01 : f32
    %256 = vector.broadcast %cst_102 : f32 to vector<2x96xf32>
    %257 = arith.mulf %256, %255 : vector<2x96xf32>
    %258 = vector.extract_strided_slice %257 {offsets = [0, 0], sizes = [2, 32], strides = [1, 1]} : vector<2x96xf32> to vector<2x32xf32>
    %259 = vector.extract_strided_slice %257 {offsets = [0, 32], sizes = [2, 32], strides = [1, 1]} : vector<2x96xf32> to vector<2x32xf32>
    %260 = vector.extract_strided_slice %257 {offsets = [0, 64], sizes = [2, 32], strides = [1, 1]} : vector<2x96xf32> to vector<2x32xf32>
    %261 = vector.extract_strided_slice %249 {offsets = [0, 96], sizes = [2, 32], strides = [1, 1]} : vector<2x128xf32> to vector<2x32xf32>
    %262 = math.tanh %261 : vector<2x32xf32>
    %263 = arith.mulf %259, %206 : vector<2x32xf32>
    %264 = arith.mulf %258, %262 : vector<2x32xf32>
    %265 = arith.addf %263, %264 : vector<2x32xf32>
    %266 = math.tanh %265 : vector<2x32xf32>
    %267 = arith.mulf %260, %266 : vector<2x32xf32>
    %268 = arith.index_cast %213 : i32 to index
    %c0_103 = arith.constant 0 : index
    %c0_104 = arith.constant 0 : index
    %269 = vector.load %arg24[%268, %c0_103, %c0_104] : memref<8x2x32xf32, #tpu.memory_space<vmem>>, vector<1x2x32xf32>
    %270 = vector.shape_cast %269 : vector<1x2x32xf32> to vector<2x32xf32>
    %271 = vector.shape_cast %267 : vector<2x32xf32> to vector<1x2x32xf32>
    tpu.vector_store %arg24[%268, %c0_103, %c0_104], %271 {strides = array<i32>} : memref<8x2x32xf32, #tpu.memory_space<vmem>>, vector<1x2x32xf32>,
    %c4_i32 = arith.constant 4 : i32
    %c7_i32_105 = arith.constant 7 : i32
    %272 = arith.subi %c7_i32_105, %c4_i32 : i32
    %273 = arith.index_cast %c4_i32 : i32 to index
    %c0_106 = arith.constant 0 : index
    %c0_107 = arith.constant 0 : index
    %274 = vector.load %arg21[%273, %c0_106, %c0_107] : memref<8x2x128xf32, #tpu.memory_space<vmem>>, vector<1x2x128xf32>
    %275 = vector.shape_cast %274 : vector<1x2x128xf32> to vector<2x128xf32>
    %276 = arith.truncf %238 : vector<2x32xf32> to vector<2x32xbf16>
    %c0_108 = arith.constant 0 : index
    %c0_109 = arith.constant 0 : index
    %277 = vector.load %arg10[%c0_108, %c0_109] : memref<32x128xbf16, #tpu.memory_space<vmem>>, vector<32x128xbf16>
    %cst_110 = arith.constant dense<0.000000e+00> : vector<2x128xf32>
    %278 = tpu.matmul %276, %277, %cst_110 {dimension_numbers = #tpu.dot_dimension_numbers<[1], [0], [0], [1], [0, 0, 1, 1], [], []>} : vector<2x32xbf16>, vector<32x128xbf16>, vector<2x128xf32> -> vector<2x128xf32>
    %279 = arith.addf %275, %278 : vector<2x128xf32>
    %280 = vector.extract_strided_slice %279 {offsets = [0, 0], sizes = [2, 96], strides = [1, 1]} : vector<2x128xf32> to vector<2x96xf32>
    %cst_111 = arith.constant 5.000000e-01 : f32
    %281 = vector.broadcast %cst_111 : f32 to vector<2x96xf32>
    %282 = arith.mulf %281, %280 : vector<2x96xf32>
    %283 = math.tanh %282 : vector<2x96xf32>
    %cst_112 = arith.constant 1.000000e+00 : f32
    %284 = vector.broadcast %cst_112 : f32 to vector<2x96xf32>
    %285 = arith.addf %283, %284 : vector<2x96xf32>
    %cst_113 = arith.constant 5.000000e-01 : f32
    %286 = vector.broadcast %cst_113 : f32 to vector<2x96xf32>
    %287 = arith.mulf %286, %285 : vector<2x96xf32>
    %288 = vector.extract_strided_slice %287 {offsets = [0, 0], sizes = [2, 32], strides = [1, 1]} : vector<2x96xf32> to vector<2x32xf32>
    %289 = vector.extract_strided_slice %287 {offsets = [0, 32], sizes = [2, 32], strides = [1, 1]} : vector<2x96xf32> to vector<2x32xf32>
    %290 = vector.extract_strided_slice %287 {offsets = [0, 64], sizes = [2, 32], strides = [1, 1]} : vector<2x96xf32> to vector<2x32xf32>
    %291 = vector.extract_strided_slice %279 {offsets = [0, 96], sizes = [2, 32], strides = [1, 1]} : vector<2x128xf32> to vector<2x32xf32>
    %292 = math.tanh %291 : vector<2x32xf32>
    %293 = arith.mulf %289, %236 : vector<2x32xf32>
    %294 = arith.mulf %288, %292 : vector<2x32xf32>
    %295 = arith.addf %293, %294 : vector<2x32xf32>
    %296 = math.tanh %295 : vector<2x32xf32>
    %297 = arith.mulf %290, %296 : vector<2x32xf32>
    %298 = arith.index_cast %c4_i32 : i32 to index
    %c0_114 = arith.constant 0 : index
    %c0_115 = arith.constant 0 : index
    %299 = vector.load %arg23[%298, %c0_114, %c0_115] : memref<8x2x32xf32, #tpu.memory_space<vmem>>, vector<1x2x32xf32>
    %300 = vector.shape_cast %299 : vector<1x2x32xf32> to vector<2x32xf32>
    %301 = vector.shape_cast %297 : vector<2x32xf32> to vector<1x2x32xf32>
    tpu.vector_store %arg23[%298, %c0_114, %c0_115], %301 {strides = array<i32>} : memref<8x2x32xf32, #tpu.memory_space<vmem>>, vector<1x2x32xf32>,
    %302 = arith.index_cast %272 : i32 to index
    %c0_116 = arith.constant 0 : index
    %c0_117 = arith.constant 0 : index
    %303 = vector.load %arg22[%302, %c0_116, %c0_117] : memref<8x2x128xf32, #tpu.memory_space<vmem>>, vector<1x2x128xf32>
    %304 = vector.shape_cast %303 : vector<1x2x128xf32> to vector<2x128xf32>
    %305 = arith.truncf %267 : vector<2x32xf32> to vector<2x32xbf16>
    %c0_118 = arith.constant 0 : index
    %c0_119 = arith.constant 0 : index
    %306 = vector.load %arg11[%c0_118, %c0_119] : memref<32x128xbf16, #tpu.memory_space<vmem>>, vector<32x128xbf16>
    %cst_120 = arith.constant dense<0.000000e+00> : vector<2x128xf32>
    %307 = tpu.matmul %305, %306, %cst_120 {dimension_numbers = #tpu.dot_dimension_numbers<[1], [0], [0], [1], [0, 0, 1, 1], [], []>} : vector<2x32xbf16>, vector<32x128xbf16>, vector<2x128xf32> -> vector<2x128xf32>
    %308 = arith.addf %304, %307 : vector<2x128xf32>
    %309 = vector.extract_strided_slice %308 {offsets = [0, 0], sizes = [2, 96], strides = [1, 1]} : vector<2x128xf32> to vector<2x96xf32>
    %cst_121 = arith.constant 5.000000e-01 : f32
    %310 = vector.broadcast %cst_121 : f32 to vector<2x96xf32>
    %311 = arith.mulf %310, %309 : vector<2x96xf32>
    %312 = math.tanh %311 : vector<2x96xf32>
    %cst_122 = arith.constant 1.000000e+00 : f32
    %313 = vector.broadcast %cst_122 : f32 to vector<2x96xf32>
    %314 = arith.addf %312, %313 : vector<2x96xf32>
    %cst_123 = arith.constant 5.000000e-01 : f32
    %315 = vector.broadcast %cst_123 : f32 to vector<2x96xf32>
    %316 = arith.mulf %315, %314 : vector<2x96xf32>
    %317 = vector.extract_strided_slice %316 {offsets = [0, 0], sizes = [2, 32], strides = [1, 1]} : vector<2x96xf32> to vector<2x32xf32>
    %318 = vector.extract_strided_slice %316 {offsets = [0, 32], sizes = [2, 32], strides = [1, 1]} : vector<2x96xf32> to vector<2x32xf32>
    %319 = vector.extract_strided_slice %316 {offsets = [0, 64], sizes = [2, 32], strides = [1, 1]} : vector<2x96xf32> to vector<2x32xf32>
    %320 = vector.extract_strided_slice %308 {offsets = [0, 96], sizes = [2, 32], strides = [1, 1]} : vector<2x128xf32> to vector<2x32xf32>
    %321 = math.tanh %320 : vector<2x32xf32>
    %322 = arith.mulf %318, %265 : vector<2x32xf32>
    %323 = arith.mulf %317, %321 : vector<2x32xf32>
    %324 = arith.addf %322, %323 : vector<2x32xf32>
    %325 = math.tanh %324 : vector<2x32xf32>
    %326 = arith.mulf %319, %325 : vector<2x32xf32>
    %327 = arith.index_cast %272 : i32 to index
    %c0_124 = arith.constant 0 : index
    %c0_125 = arith.constant 0 : index
    %328 = vector.load %arg24[%327, %c0_124, %c0_125] : memref<8x2x32xf32, #tpu.memory_space<vmem>>, vector<1x2x32xf32>
    %329 = vector.shape_cast %328 : vector<1x2x32xf32> to vector<2x32xf32>
    %330 = vector.shape_cast %326 : vector<2x32xf32> to vector<1x2x32xf32>
    tpu.vector_store %arg24[%327, %c0_124, %c0_125], %330 {strides = array<i32>} : memref<8x2x32xf32, #tpu.memory_space<vmem>>, vector<1x2x32xf32>,
    %c5_i32 = arith.constant 5 : i32
    %c7_i32_126 = arith.constant 7 : i32
    %331 = arith.subi %c7_i32_126, %c5_i32 : i32
    %332 = arith.index_cast %c5_i32 : i32 to index
    %c0_127 = arith.constant 0 : index
    %c0_128 = arith.constant 0 : index
    %333 = vector.load %arg21[%332, %c0_127, %c0_128] : memref<8x2x128xf32, #tpu.memory_space<vmem>>, vector<1x2x128xf32>
    %334 = vector.shape_cast %333 : vector<1x2x128xf32> to vector<2x128xf32>
    %335 = arith.truncf %297 : vector<2x32xf32> to vector<2x32xbf16>
    %c0_129 = arith.constant 0 : index
    %c0_130 = arith.constant 0 : index
    %336 = vector.load %arg10[%c0_129, %c0_130] : memref<32x128xbf16, #tpu.memory_space<vmem>>, vector<32x128xbf16>
    %cst_131 = arith.constant dense<0.000000e+00> : vector<2x128xf32>
    %337 = tpu.matmul %335, %336, %cst_131 {dimension_numbers = #tpu.dot_dimension_numbers<[1], [0], [0], [1], [0, 0, 1, 1], [], []>} : vector<2x32xbf16>, vector<32x128xbf16>, vector<2x128xf32> -> vector<2x128xf32>
    %338 = arith.addf %334, %337 : vector<2x128xf32>
    %339 = vector.extract_strided_slice %338 {offsets = [0, 0], sizes = [2, 96], strides = [1, 1]} : vector<2x128xf32> to vector<2x96xf32>
    %cst_132 = arith.constant 5.000000e-01 : f32
    %340 = vector.broadcast %cst_132 : f32 to vector<2x96xf32>
    %341 = arith.mulf %340, %339 : vector<2x96xf32>
    %342 = math.tanh %341 : vector<2x96xf32>
    %cst_133 = arith.constant 1.000000e+00 : f32
    %343 = vector.broadcast %cst_133 : f32 to vector<2x96xf32>
    %344 = arith.addf %342, %343 : vector<2x96xf32>
    %cst_134 = arith.constant 5.000000e-01 : f32
    %345 = vector.broadcast %cst_134 : f32 to vector<2x96xf32>
    %346 = arith.mulf %345, %344 : vector<2x96xf32>
    %347 = vector.extract_strided_slice %346 {offsets = [0, 0], sizes = [2, 32], strides = [1, 1]} : vector<2x96xf32> to vector<2x32xf32>
    %348 = vector.extract_strided_slice %346 {offsets = [0, 32], sizes = [2, 32], strides = [1, 1]} : vector<2x96xf32> to vector<2x32xf32>
    %349 = vector.extract_strided_slice %346 {offsets = [0, 64], sizes = [2, 32], strides = [1, 1]} : vector<2x96xf32> to vector<2x32xf32>
    %350 = vector.extract_strided_slice %338 {offsets = [0, 96], sizes = [2, 32], strides = [1, 1]} : vector<2x128xf32> to vector<2x32xf32>
    %351 = math.tanh %350 : vector<2x32xf32>
    %352 = arith.mulf %348, %295 : vector<2x32xf32>
    %353 = arith.mulf %347, %351 : vector<2x32xf32>
    %354 = arith.addf %352, %353 : vector<2x32xf32>
    %355 = math.tanh %354 : vector<2x32xf32>
    %356 = arith.mulf %349, %355 : vector<2x32xf32>
    %357 = arith.index_cast %c5_i32 : i32 to index
    %c0_135 = arith.constant 0 : index
    %c0_136 = arith.constant 0 : index
    %358 = vector.load %arg23[%357, %c0_135, %c0_136] : memref<8x2x32xf32, #tpu.memory_space<vmem>>, vector<1x2x32xf32>
    %359 = vector.shape_cast %358 : vector<1x2x32xf32> to vector<2x32xf32>
    %360 = vector.shape_cast %356 : vector<2x32xf32> to vector<1x2x32xf32>
    tpu.vector_store %arg23[%357, %c0_135, %c0_136], %360 {strides = array<i32>} : memref<8x2x32xf32, #tpu.memory_space<vmem>>, vector<1x2x32xf32>,
    %361 = arith.index_cast %331 : i32 to index
    %c0_137 = arith.constant 0 : index
    %c0_138 = arith.constant 0 : index
    %362 = vector.load %arg22[%361, %c0_137, %c0_138] : memref<8x2x128xf32, #tpu.memory_space<vmem>>, vector<1x2x128xf32>
    %363 = vector.shape_cast %362 : vector<1x2x128xf32> to vector<2x128xf32>
    %364 = arith.truncf %326 : vector<2x32xf32> to vector<2x32xbf16>
    %c0_139 = arith.constant 0 : index
    %c0_140 = arith.constant 0 : index
    %365 = vector.load %arg11[%c0_139, %c0_140] : memref<32x128xbf16, #tpu.memory_space<vmem>>, vector<32x128xbf16>
    %cst_141 = arith.constant dense<0.000000e+00> : vector<2x128xf32>
    %366 = tpu.matmul %364, %365, %cst_141 {dimension_numbers = #tpu.dot_dimension_numbers<[1], [0], [0], [1], [0, 0, 1, 1], [], []>} : vector<2x32xbf16>, vector<32x128xbf16>, vector<2x128xf32> -> vector<2x128xf32>
    %367 = arith.addf %363, %366 : vector<2x128xf32>
    %368 = vector.extract_strided_slice %367 {offsets = [0, 0], sizes = [2, 96], strides = [1, 1]} : vector<2x128xf32> to vector<2x96xf32>
    %cst_142 = arith.constant 5.000000e-01 : f32
    %369 = vector.broadcast %cst_142 : f32 to vector<2x96xf32>
    %370 = arith.mulf %369, %368 : vector<2x96xf32>
    %371 = math.tanh %370 : vector<2x96xf32>
    %cst_143 = arith.constant 1.000000e+00 : f32
    %372 = vector.broadcast %cst_143 : f32 to vector<2x96xf32>
    %373 = arith.addf %371, %372 : vector<2x96xf32>
    %cst_144 = arith.constant 5.000000e-01 : f32
    %374 = vector.broadcast %cst_144 : f32 to vector<2x96xf32>
    %375 = arith.mulf %374, %373 : vector<2x96xf32>
    %376 = vector.extract_strided_slice %375 {offsets = [0, 0], sizes = [2, 32], strides = [1, 1]} : vector<2x96xf32> to vector<2x32xf32>
    %377 = vector.extract_strided_slice %375 {offsets = [0, 32], sizes = [2, 32], strides = [1, 1]} : vector<2x96xf32> to vector<2x32xf32>
    %378 = vector.extract_strided_slice %375 {offsets = [0, 64], sizes = [2, 32], strides = [1, 1]} : vector<2x96xf32> to vector<2x32xf32>
    %379 = vector.extract_strided_slice %367 {offsets = [0, 96], sizes = [2, 32], strides = [1, 1]} : vector<2x128xf32> to vector<2x32xf32>
    %380 = math.tanh %379 : vector<2x32xf32>
    %381 = arith.mulf %377, %324 : vector<2x32xf32>
    %382 = arith.mulf %376, %380 : vector<2x32xf32>
    %383 = arith.addf %381, %382 : vector<2x32xf32>
    %384 = math.tanh %383 : vector<2x32xf32>
    %385 = arith.mulf %378, %384 : vector<2x32xf32>
    %386 = arith.index_cast %331 : i32 to index
    %c0_145 = arith.constant 0 : index
    %c0_146 = arith.constant 0 : index
    %387 = vector.load %arg24[%386, %c0_145, %c0_146] : memref<8x2x32xf32, #tpu.memory_space<vmem>>, vector<1x2x32xf32>
    %388 = vector.shape_cast %387 : vector<1x2x32xf32> to vector<2x32xf32>
    %389 = vector.shape_cast %385 : vector<2x32xf32> to vector<1x2x32xf32>
    tpu.vector_store %arg24[%386, %c0_145, %c0_146], %389 {strides = array<i32>} : memref<8x2x32xf32, #tpu.memory_space<vmem>>, vector<1x2x32xf32>,
    %c6_i32 = arith.constant 6 : i32
    %c7_i32_147 = arith.constant 7 : i32
    %390 = arith.subi %c7_i32_147, %c6_i32 : i32
    %391 = arith.index_cast %c6_i32 : i32 to index
    %c0_148 = arith.constant 0 : index
    %c0_149 = arith.constant 0 : index
    %392 = vector.load %arg21[%391, %c0_148, %c0_149] : memref<8x2x128xf32, #tpu.memory_space<vmem>>, vector<1x2x128xf32>
    %393 = vector.shape_cast %392 : vector<1x2x128xf32> to vector<2x128xf32>
    %394 = arith.truncf %356 : vector<2x32xf32> to vector<2x32xbf16>
    %c0_150 = arith.constant 0 : index
    %c0_151 = arith.constant 0 : index
    %395 = vector.load %arg10[%c0_150, %c0_151] : memref<32x128xbf16, #tpu.memory_space<vmem>>, vector<32x128xbf16>
    %cst_152 = arith.constant dense<0.000000e+00> : vector<2x128xf32>
    %396 = tpu.matmul %394, %395, %cst_152 {dimension_numbers = #tpu.dot_dimension_numbers<[1], [0], [0], [1], [0, 0, 1, 1], [], []>} : vector<2x32xbf16>, vector<32x128xbf16>, vector<2x128xf32> -> vector<2x128xf32>
    %397 = arith.addf %393, %396 : vector<2x128xf32>
    %398 = vector.extract_strided_slice %397 {offsets = [0, 0], sizes = [2, 96], strides = [1, 1]} : vector<2x128xf32> to vector<2x96xf32>
    %cst_153 = arith.constant 5.000000e-01 : f32
    %399 = vector.broadcast %cst_153 : f32 to vector<2x96xf32>
    %400 = arith.mulf %399, %398 : vector<2x96xf32>
    %401 = math.tanh %400 : vector<2x96xf32>
    %cst_154 = arith.constant 1.000000e+00 : f32
    %402 = vector.broadcast %cst_154 : f32 to vector<2x96xf32>
    %403 = arith.addf %401, %402 : vector<2x96xf32>
    %cst_155 = arith.constant 5.000000e-01 : f32
    %404 = vector.broadcast %cst_155 : f32 to vector<2x96xf32>
    %405 = arith.mulf %404, %403 : vector<2x96xf32>
    %406 = vector.extract_strided_slice %405 {offsets = [0, 0], sizes = [2, 32], strides = [1, 1]} : vector<2x96xf32> to vector<2x32xf32>
    %407 = vector.extract_strided_slice %405 {offsets = [0, 32], sizes = [2, 32], strides = [1, 1]} : vector<2x96xf32> to vector<2x32xf32>
    %408 = vector.extract_strided_slice %405 {offsets = [0, 64], sizes = [2, 32], strides = [1, 1]} : vector<2x96xf32> to vector<2x32xf32>
    %409 = vector.extract_strided_slice %397 {offsets = [0, 96], sizes = [2, 32], strides = [1, 1]} : vector<2x128xf32> to vector<2x32xf32>
    %410 = math.tanh %409 : vector<2x32xf32>
    %411 = arith.mulf %407, %354 : vector<2x32xf32>
    %412 = arith.mulf %406, %410 : vector<2x32xf32>
    %413 = arith.addf %411, %412 : vector<2x32xf32>
    %414 = math.tanh %413 : vector<2x32xf32>
    %415 = arith.mulf %408, %414 : vector<2x32xf32>
    %416 = arith.index_cast %c6_i32 : i32 to index
    %c0_156 = arith.constant 0 : index
    %c0_157 = arith.constant 0 : index
    %417 = vector.load %arg23[%416, %c0_156, %c0_157] : memref<8x2x32xf32, #tpu.memory_space<vmem>>, vector<1x2x32xf32>
    %418 = vector.shape_cast %417 : vector<1x2x32xf32> to vector<2x32xf32>
    %419 = vector.shape_cast %415 : vector<2x32xf32> to vector<1x2x32xf32>
    tpu.vector_store %arg23[%416, %c0_156, %c0_157], %419 {strides = array<i32>} : memref<8x2x32xf32, #tpu.memory_space<vmem>>, vector<1x2x32xf32>,
    %420 = arith.index_cast %390 : i32 to index
    %c0_158 = arith.constant 0 : index
    %c0_159 = arith.constant 0 : index
    %421 = vector.load %arg22[%420, %c0_158, %c0_159] : memref<8x2x128xf32, #tpu.memory_space<vmem>>, vector<1x2x128xf32>
    %422 = vector.shape_cast %421 : vector<1x2x128xf32> to vector<2x128xf32>
    %423 = arith.truncf %385 : vector<2x32xf32> to vector<2x32xbf16>
    %c0_160 = arith.constant 0 : index
    %c0_161 = arith.constant 0 : index
    %424 = vector.load %arg11[%c0_160, %c0_161] : memref<32x128xbf16, #tpu.memory_space<vmem>>, vector<32x128xbf16>
    %cst_162 = arith.constant dense<0.000000e+00> : vector<2x128xf32>
    %425 = tpu.matmul %423, %424, %cst_162 {dimension_numbers = #tpu.dot_dimension_numbers<[1], [0], [0], [1], [0, 0, 1, 1], [], []>} : vector<2x32xbf16>, vector<32x128xbf16>, vector<2x128xf32> -> vector<2x128xf32>
    %426 = arith.addf %422, %425 : vector<2x128xf32>
    %427 = vector.extract_strided_slice %426 {offsets = [0, 0], sizes = [2, 96], strides = [1, 1]} : vector<2x128xf32> to vector<2x96xf32>
    %cst_163 = arith.constant 5.000000e-01 : f32
    %428 = vector.broadcast %cst_163 : f32 to vector<2x96xf32>
    %429 = arith.mulf %428, %427 : vector<2x96xf32>
    %430 = math.tanh %429 : vector<2x96xf32>
    %cst_164 = arith.constant 1.000000e+00 : f32
    %431 = vector.broadcast %cst_164 : f32 to vector<2x96xf32>
    %432 = arith.addf %430, %431 : vector<2x96xf32>
    %cst_165 = arith.constant 5.000000e-01 : f32
    %433 = vector.broadcast %cst_165 : f32 to vector<2x96xf32>
    %434 = arith.mulf %433, %432 : vector<2x96xf32>
    %435 = vector.extract_strided_slice %434 {offsets = [0, 0], sizes = [2, 32], strides = [1, 1]} : vector<2x96xf32> to vector<2x32xf32>
    %436 = vector.extract_strided_slice %434 {offsets = [0, 32], sizes = [2, 32], strides = [1, 1]} : vector<2x96xf32> to vector<2x32xf32>
    %437 = vector.extract_strided_slice %434 {offsets = [0, 64], sizes = [2, 32], strides = [1, 1]} : vector<2x96xf32> to vector<2x32xf32>
    %438 = vector.extract_strided_slice %426 {offsets = [0, 96], sizes = [2, 32], strides = [1, 1]} : vector<2x128xf32> to vector<2x32xf32>
    %439 = math.tanh %438 : vector<2x32xf32>
    %440 = arith.mulf %436, %383 : vector<2x32xf32>
    %441 = arith.mulf %435, %439 : vector<2x32xf32>
    %442 = arith.addf %440, %441 : vector<2x32xf32>
    %443 = math.tanh %442 : vector<2x32xf32>
    %444 = arith.mulf %437, %443 : vector<2x32xf32>
    %445 = arith.index_cast %390 : i32 to index
    %c0_166 = arith.constant 0 : index
    %c0_167 = arith.constant 0 : index
    %446 = vector.load %arg24[%445, %c0_166, %c0_167] : memref<8x2x32xf32, #tpu.memory_space<vmem>>, vector<1x2x32xf32>
    %447 = vector.shape_cast %446 : vector<1x2x32xf32> to vector<2x32xf32>
    %448 = vector.shape_cast %444 : vector<2x32xf32> to vector<1x2x32xf32>
    tpu.vector_store %arg24[%445, %c0_166, %c0_167], %448 {strides = array<i32>} : memref<8x2x32xf32, #tpu.memory_space<vmem>>, vector<1x2x32xf32>,
    %c7_i32_168 = arith.constant 7 : i32
    %c7_i32_169 = arith.constant 7 : i32
    %449 = arith.subi %c7_i32_169, %c7_i32_168 : i32
    %450 = arith.index_cast %c7_i32_168 : i32 to index
    %c0_170 = arith.constant 0 : index
    %c0_171 = arith.constant 0 : index
    %451 = vector.load %arg21[%450, %c0_170, %c0_171] : memref<8x2x128xf32, #tpu.memory_space<vmem>>, vector<1x2x128xf32>
    %452 = vector.shape_cast %451 : vector<1x2x128xf32> to vector<2x128xf32>
    %453 = arith.truncf %415 : vector<2x32xf32> to vector<2x32xbf16>
    %c0_172 = arith.constant 0 : index
    %c0_173 = arith.constant 0 : index
    %454 = vector.load %arg10[%c0_172, %c0_173] : memref<32x128xbf16, #tpu.memory_space<vmem>>, vector<32x128xbf16>
    %cst_174 = arith.constant dense<0.000000e+00> : vector<2x128xf32>
    %455 = tpu.matmul %453, %454, %cst_174 {dimension_numbers = #tpu.dot_dimension_numbers<[1], [0], [0], [1], [0, 0, 1, 1], [], []>} : vector<2x32xbf16>, vector<32x128xbf16>, vector<2x128xf32> -> vector<2x128xf32>
    %456 = arith.addf %452, %455 : vector<2x128xf32>
    %457 = vector.extract_strided_slice %456 {offsets = [0, 0], sizes = [2, 96], strides = [1, 1]} : vector<2x128xf32> to vector<2x96xf32>
    %cst_175 = arith.constant 5.000000e-01 : f32
    %458 = vector.broadcast %cst_175 : f32 to vector<2x96xf32>
    %459 = arith.mulf %458, %457 : vector<2x96xf32>
    %460 = math.tanh %459 : vector<2x96xf32>
    %cst_176 = arith.constant 1.000000e+00 : f32
    %461 = vector.broadcast %cst_176 : f32 to vector<2x96xf32>
    %462 = arith.addf %460, %461 : vector<2x96xf32>
    %cst_177 = arith.constant 5.000000e-01 : f32
    %463 = vector.broadcast %cst_177 : f32 to vector<2x96xf32>
    %464 = arith.mulf %463, %462 : vector<2x96xf32>
    %465 = vector.extract_strided_slice %464 {offsets = [0, 0], sizes = [2, 32], strides = [1, 1]} : vector<2x96xf32> to vector<2x32xf32>
    %466 = vector.extract_strided_slice %464 {offsets = [0, 32], sizes = [2, 32], strides = [1, 1]} : vector<2x96xf32> to vector<2x32xf32>
    %467 = vector.extract_strided_slice %464 {offsets = [0, 64], sizes = [2, 32], strides = [1, 1]} : vector<2x96xf32> to vector<2x32xf32>
    %468 = vector.extract_strided_slice %456 {offsets = [0, 96], sizes = [2, 32], strides = [1, 1]} : vector<2x128xf32> to vector<2x32xf32>
    %469 = math.tanh %468 : vector<2x32xf32>
    %470 = arith.mulf %466, %413 : vector<2x32xf32>
    %471 = arith.mulf %465, %469 : vector<2x32xf32>
    %472 = arith.addf %470, %471 : vector<2x32xf32>
    %473 = math.tanh %472 : vector<2x32xf32>
    %474 = arith.mulf %467, %473 : vector<2x32xf32>
    %475 = arith.index_cast %c7_i32_168 : i32 to index
    %c0_178 = arith.constant 0 : index
    %c0_179 = arith.constant 0 : index
    %476 = vector.load %arg23[%475, %c0_178, %c0_179] : memref<8x2x32xf32, #tpu.memory_space<vmem>>, vector<1x2x32xf32>
    %477 = vector.shape_cast %476 : vector<1x2x32xf32> to vector<2x32xf32>
    %478 = vector.shape_cast %474 : vector<2x32xf32> to vector<1x2x32xf32>
    tpu.vector_store %arg23[%475, %c0_178, %c0_179], %478 {strides = array<i32>} : memref<8x2x32xf32, #tpu.memory_space<vmem>>, vector<1x2x32xf32>,
    %479 = arith.index_cast %449 : i32 to index
    %c0_180 = arith.constant 0 : index
    %c0_181 = arith.constant 0 : index
    %480 = vector.load %arg22[%479, %c0_180, %c0_181] : memref<8x2x128xf32, #tpu.memory_space<vmem>>, vector<1x2x128xf32>
    %481 = vector.shape_cast %480 : vector<1x2x128xf32> to vector<2x128xf32>
    %482 = arith.truncf %444 : vector<2x32xf32> to vector<2x32xbf16>
    %c0_182 = arith.constant 0 : index
    %c0_183 = arith.constant 0 : index
    %483 = vector.load %arg11[%c0_182, %c0_183] : memref<32x128xbf16, #tpu.memory_space<vmem>>, vector<32x128xbf16>
    %cst_184 = arith.constant dense<0.000000e+00> : vector<2x128xf32>
    %484 = tpu.matmul %482, %483, %cst_184 {dimension_numbers = #tpu.dot_dimension_numbers<[1], [0], [0], [1], [0, 0, 1, 1], [], []>} : vector<2x32xbf16>, vector<32x128xbf16>, vector<2x128xf32> -> vector<2x128xf32>
    %485 = arith.addf %481, %484 : vector<2x128xf32>
    %486 = vector.extract_strided_slice %485 {offsets = [0, 0], sizes = [2, 96], strides = [1, 1]} : vector<2x128xf32> to vector<2x96xf32>
    %cst_185 = arith.constant 5.000000e-01 : f32
    %487 = vector.broadcast %cst_185 : f32 to vector<2x96xf32>
    %488 = arith.mulf %487, %486 : vector<2x96xf32>
    %489 = math.tanh %488 : vector<2x96xf32>
    %cst_186 = arith.constant 1.000000e+00 : f32
    %490 = vector.broadcast %cst_186 : f32 to vector<2x96xf32>
    %491 = arith.addf %489, %490 : vector<2x96xf32>
    %cst_187 = arith.constant 5.000000e-01 : f32
    %492 = vector.broadcast %cst_187 : f32 to vector<2x96xf32>
    %493 = arith.mulf %492, %491 : vector<2x96xf32>
    %494 = vector.extract_strided_slice %493 {offsets = [0, 0], sizes = [2, 32], strides = [1, 1]} : vector<2x96xf32> to vector<2x32xf32>
    %495 = vector.extract_strided_slice %493 {offsets = [0, 32], sizes = [2, 32], strides = [1, 1]} : vector<2x96xf32> to vector<2x32xf32>
    %496 = vector.extract_strided_slice %493 {offsets = [0, 64], sizes = [2, 32], strides = [1, 1]} : vector<2x96xf32> to vector<2x32xf32>
    %497 = vector.extract_strided_slice %485 {offsets = [0, 96], sizes = [2, 32], strides = [1, 1]} : vector<2x128xf32> to vector<2x32xf32>
    %498 = math.tanh %497 : vector<2x32xf32>
    %499 = arith.mulf %495, %442 : vector<2x32xf32>
    %500 = arith.mulf %494, %498 : vector<2x32xf32>
    %501 = arith.addf %499, %500 : vector<2x32xf32>
    %502 = math.tanh %501 : vector<2x32xf32>
    %503 = arith.mulf %496, %502 : vector<2x32xf32>
    %504 = arith.index_cast %449 : i32 to index
    %c0_188 = arith.constant 0 : index
    %c0_189 = arith.constant 0 : index
    %505 = vector.load %arg24[%504, %c0_188, %c0_189] : memref<8x2x32xf32, #tpu.memory_space<vmem>>, vector<1x2x32xf32>
    %506 = vector.shape_cast %505 : vector<1x2x32xf32> to vector<2x32xf32>
    %507 = vector.shape_cast %503 : vector<2x32xf32> to vector<1x2x32xf32>
    tpu.vector_store %arg24[%504, %c0_188, %c0_189], %507 {strides = array<i32>} : memref<8x2x32xf32, #tpu.memory_space<vmem>>, vector<1x2x32xf32>,
    %c8_i32 = arith.constant 8 : i32
    %c0_190 = arith.constant 0 : index
    %c0_191 = arith.constant 0 : index
    %c0_192 = arith.constant 0 : index
    %508 = vector.load %arg23[%c0_190, %c0_191, %c0_192] : memref<8x2x32xf32, #tpu.memory_space<vmem>>, vector<8x2x32xf32>
    %509 = vector.shape_cast %508 : vector<8x2x32xf32> to vector<16x32xf32>
    %510 = arith.truncf %509 : vector<16x32xf32> to vector<16x32xbf16>
    %c0_193 = arith.constant 0 : index
    %c0_194 = arith.constant 0 : index
    %c0_195 = arith.constant 0 : index
    %511 = vector.load %arg24[%c0_193, %c0_194, %c0_195] : memref<8x2x32xf32, #tpu.memory_space<vmem>>, vector<8x2x32xf32>
    %512 = vector.shape_cast %511 : vector<8x2x32xf32> to vector<16x32xf32>
    %513 = arith.truncf %512 : vector<16x32xf32> to vector<16x32xbf16>
    %c0_196 = arith.constant 0 : index
    %c0_197 = arith.constant 0 : index
    %514 = vector.load %arg12[%c0_196, %c0_197] : memref<32x64xbf16, #tpu.memory_space<vmem>>, vector<32x64xbf16>
    %cst_198 = arith.constant dense<0.000000e+00> : vector<16x64xf32>
    %515 = tpu.matmul %510, %514, %cst_198 {dimension_numbers = #tpu.dot_dimension_numbers<[1], [0], [0], [1], [0, 0, 1, 1], [], []>} : vector<16x32xbf16>, vector<32x64xbf16>, vector<16x64xf32> -> vector<16x64xf32>
    %c0_199 = arith.constant 0 : index
    %c0_200 = arith.constant 0 : index
    %516 = vector.load %arg13[%c0_199, %c0_200] : memref<32x64xbf16, #tpu.memory_space<vmem>>, vector<32x64xbf16>
    %cst_201 = arith.constant dense<0.000000e+00> : vector<16x64xf32>
    %517 = tpu.matmul %513, %516, %cst_201 {dimension_numbers = #tpu.dot_dimension_numbers<[1], [0], [0], [1], [0, 0, 1, 1], [], []>} : vector<16x32xbf16>, vector<32x64xbf16>, vector<16x64xf32> -> vector<16x64xf32>
    %518 = arith.addf %515, %517 : vector<16x64xf32>
    %c0_202 = arith.constant 0 : index
    %c0_203 = arith.constant 0 : index
    %519 = vector.load %arg14[%c0_202, %c0_203] : memref<1x64xf32, #tpu.memory_space<vmem>>, vector<1x64xf32>
    %520 = vector.broadcast %519 : vector<1x64xf32> to vector<16x64xf32>
    %521 = arith.addf %518, %520 : vector<16x64xf32>
    %522 = vector.extract_strided_slice %521 {offsets = [0, 0], sizes = [16, 32], strides = [1, 1]} : vector<16x64xf32> to vector<16x32xf32>
    %523 = vector.shape_cast %522 : vector<16x32xf32> to vector<8x2x32xf32>
    %524 = vector.extract_strided_slice %521 {offsets = [0, 32], sizes = [16, 32], strides = [1, 1]} : vector<16x64xf32> to vector<16x32xf32>
    %525 = vector.shape_cast %524 : vector<16x32xf32> to vector<8x2x32xf32>
    %526 = vector.extract_strided_slice %525 {offsets = [0, 0, 0], sizes = [1, 2, 32], strides = [1, 1, 1]} : vector<8x2x32xf32> to vector<1x2x32xf32>
    %527 = vector.shape_cast %526 : vector<1x2x32xf32> to vector<2x32xf32>
    %528 = vector.shape_cast %527 : vector<2x32xf32> to vector<2x1x32xf32>
    %c0_204 = arith.constant 0 : index
    %c0_205 = arith.constant 0 : index
    %c0_206 = arith.constant 0 : index
    %529 = vector.load %arg25[%c0_204, %c0_205, %c0_206] : memref<2x8x32xf32, #tpu.memory_space<vmem>>, vector<2x1x32xf32>
    tpu.vector_store %arg25[%c0_204, %c0_205, %c0_206], %528 {strides = array<i32>} : memref<2x8x32xf32, #tpu.memory_space<vmem>>, vector<2x1x32xf32>,
    %530 = vector.extract_strided_slice %525 {offsets = [1, 0, 0], sizes = [1, 2, 32], strides = [1, 1, 1]} : vector<8x2x32xf32> to vector<1x2x32xf32>
    %531 = vector.shape_cast %530 : vector<1x2x32xf32> to vector<2x32xf32>
    %532 = vector.shape_cast %531 : vector<2x32xf32> to vector<2x1x32xf32>
    %c0_207 = arith.constant 0 : index
    %c1 = arith.constant 1 : index
    %c0_208 = arith.constant 0 : index
    %533 = vector.load %arg25[%c0_207, %c1, %c0_208] : memref<2x8x32xf32, #tpu.memory_space<vmem>>, vector<2x1x32xf32>
    tpu.vector_store %arg25[%c0_207, %c1, %c0_208], %532 {strides = array<i32>} : memref<2x8x32xf32, #tpu.memory_space<vmem>>, vector<2x1x32xf32>,
    %534 = vector.extract_strided_slice %525 {offsets = [2, 0, 0], sizes = [1, 2, 32], strides = [1, 1, 1]} : vector<8x2x32xf32> to vector<1x2x32xf32>
    %535 = vector.shape_cast %534 : vector<1x2x32xf32> to vector<2x32xf32>
    %536 = vector.shape_cast %535 : vector<2x32xf32> to vector<2x1x32xf32>
    %c0_209 = arith.constant 0 : index
    %c2 = arith.constant 2 : index
    %c0_210 = arith.constant 0 : index
    %537 = vector.load %arg25[%c0_209, %c2, %c0_210] : memref<2x8x32xf32, #tpu.memory_space<vmem>>, vector<2x1x32xf32>
    tpu.vector_store %arg25[%c0_209, %c2, %c0_210], %536 {strides = array<i32>} : memref<2x8x32xf32, #tpu.memory_space<vmem>>, vector<2x1x32xf32>,
    %538 = vector.extract_strided_slice %525 {offsets = [3, 0, 0], sizes = [1, 2, 32], strides = [1, 1, 1]} : vector<8x2x32xf32> to vector<1x2x32xf32>
    %539 = vector.shape_cast %538 : vector<1x2x32xf32> to vector<2x32xf32>
    %540 = vector.shape_cast %539 : vector<2x32xf32> to vector<2x1x32xf32>
    %c0_211 = arith.constant 0 : index
    %c3 = arith.constant 3 : index
    %c0_212 = arith.constant 0 : index
    %541 = vector.load %arg25[%c0_211, %c3, %c0_212] : memref<2x8x32xf32, #tpu.memory_space<vmem>>, vector<2x1x32xf32>
    tpu.vector_store %arg25[%c0_211, %c3, %c0_212], %540 {strides = array<i32>} : memref<2x8x32xf32, #tpu.memory_space<vmem>>, vector<2x1x32xf32>,
    %542 = vector.extract_strided_slice %525 {offsets = [4, 0, 0], sizes = [1, 2, 32], strides = [1, 1, 1]} : vector<8x2x32xf32> to vector<1x2x32xf32>
    %543 = vector.shape_cast %542 : vector<1x2x32xf32> to vector<2x32xf32>
    %544 = vector.shape_cast %543 : vector<2x32xf32> to vector<2x1x32xf32>
    %c0_213 = arith.constant 0 : index
    %c4 = arith.constant 4 : index
    %c0_214 = arith.constant 0 : index
    %545 = vector.load %arg25[%c0_213, %c4, %c0_214] : memref<2x8x32xf32, #tpu.memory_space<vmem>>, vector<2x1x32xf32>
    tpu.vector_store %arg25[%c0_213, %c4, %c0_214], %544 {strides = array<i32>} : memref<2x8x32xf32, #tpu.memory_space<vmem>>, vector<2x1x32xf32>,
    %546 = vector.extract_strided_slice %525 {offsets = [5, 0, 0], sizes = [1, 2, 32], strides = [1, 1, 1]} : vector<8x2x32xf32> to vector<1x2x32xf32>
    %547 = vector.shape_cast %546 : vector<1x2x32xf32> to vector<2x32xf32>
    %548 = vector.shape_cast %547 : vector<2x32xf32> to vector<2x1x32xf32>
    %c0_215 = arith.constant 0 : index
    %c5 = arith.constant 5 : index
    %c0_216 = arith.constant 0 : index
    %549 = vector.load %arg25[%c0_215, %c5, %c0_216] : memref<2x8x32xf32, #tpu.memory_space<vmem>>, vector<2x1x32xf32>
    tpu.vector_store %arg25[%c0_215, %c5, %c0_216], %548 {strides = array<i32>} : memref<2x8x32xf32, #tpu.memory_space<vmem>>, vector<2x1x32xf32>,
    %550 = vector.extract_strided_slice %525 {offsets = [6, 0, 0], sizes = [1, 2, 32], strides = [1, 1, 1]} : vector<8x2x32xf32> to vector<1x2x32xf32>
    %551 = vector.shape_cast %550 : vector<1x2x32xf32> to vector<2x32xf32>
    %552 = vector.shape_cast %551 : vector<2x32xf32> to vector<2x1x32xf32>
    %c0_217 = arith.constant 0 : index
    %c6 = arith.constant 6 : index
    %c0_218 = arith.constant 0 : index
    %553 = vector.load %arg25[%c0_217, %c6, %c0_218] : memref<2x8x32xf32, #tpu.memory_space<vmem>>, vector<2x1x32xf32>
    tpu.vector_store %arg25[%c0_217, %c6, %c0_218], %552 {strides = array<i32>} : memref<2x8x32xf32, #tpu.memory_space<vmem>>, vector<2x1x32xf32>,
    %554 = vector.extract_strided_slice %525 {offsets = [7, 0, 0], sizes = [1, 2, 32], strides = [1, 1, 1]} : vector<8x2x32xf32> to vector<1x2x32xf32>
    %555 = vector.shape_cast %554 : vector<1x2x32xf32> to vector<2x32xf32>
    %556 = vector.shape_cast %555 : vector<2x32xf32> to vector<2x1x32xf32>
    %c0_219 = arith.constant 0 : index
    %c7 = arith.constant 7 : index
    %c0_220 = arith.constant 0 : index
    %557 = vector.load %arg25[%c0_219, %c7, %c0_220] : memref<2x8x32xf32, #tpu.memory_space<vmem>>, vector<2x1x32xf32>
    tpu.vector_store %arg25[%c0_219, %c7, %c0_220], %556 {strides = array<i32>} : memref<2x8x32xf32, #tpu.memory_space<vmem>>, vector<2x1x32xf32>,
    %c0_221 = arith.constant 0 : index
    %c0_222 = arith.constant 0 : index
    %558 = vector.load %arg3[%c0_221, %c0_222] : memref<6x2xi32, #tpu.memory_space<vmem>>, vector<6x2xi32>
    %559 = tpu.iota {dimensions = array<i32: 0>} : vector<8x2xi32>
    %c0_223 = arith.constant 0 : index
    %c0_224 = arith.constant 0 : index
    %560 = vector.load %arg17[%c0_223, %c0_224] : memref<1x32xf32, #tpu.memory_space<vmem>>, vector<1x32xf32>
    %561 = vector.shape_cast %560 : vector<1x32xf32> to vector<1x32xf32>
    %562 = vector.broadcast %561 : vector<1x32xf32> to vector<2x32xf32>
    %563 = vector.extract_strided_slice %558 {offsets = [0, 0], sizes = [1, 2], strides = [1, 1]} : vector<6x2xi32> to vector<1x2xi32>
    %564 = vector.broadcast %563 : vector<1x2xi32> to vector<8x2xi32>
    %565 = arith.cmpi eq, %559, %564 : vector<8x2xi32>
    %566 = arith.extui %565 : vector<8x2xi1> to vector<8x2xi32>
    %567 = arith.sitofp %566 : vector<8x2xi32> to vector<8x2xf32>
    %568 = vector.shape_cast %567 : vector<8x2xf32> to vector<8x2x1xf32>
    %569 = vector.broadcast %568 : vector<8x2x1xf32> to vector<8x2x32xf32>
    %570 = arith.mulf %569, %523 : vector<8x2x32xf32>
    %cst_225 = arith.constant dense<0.000000e+00> : vector<2x32xf32>
    %571 = vector.multi_reduction <add>, %570, %cst_225 [0] : vector<8x2x32xf32> to vector<2x32xf32>
    %572 = vector.extract_strided_slice %558 {offsets = [1, 0], sizes = [1, 2], strides = [1, 1]} : vector<6x2xi32> to vector<1x2xi32>
    %573 = vector.broadcast %572 : vector<1x2xi32> to vector<8x2xi32>
    %574 = arith.cmpi eq, %559, %573 : vector<8x2xi32>
    %575 = arith.extui %574 : vector<8x2xi1> to vector<8x2xi32>
    %576 = arith.sitofp %575 : vector<8x2xi32> to vector<8x2xf32>
    %577 = vector.shape_cast %576 : vector<8x2xf32> to vector<8x2x1xf32>
    %578 = vector.broadcast %577 : vector<8x2x1xf32> to vector<8x2x32xf32>
    %579 = arith.mulf %578, %523 : vector<8x2x32xf32>
    %cst_226 = arith.constant dense<0.000000e+00> : vector<2x32xf32>
    %580 = vector.multi_reduction <add>, %579, %cst_226 [0] : vector<8x2x32xf32> to vector<2x32xf32>
    %581 = vector.extract_strided_slice %558 {offsets = [2, 0], sizes = [1, 2], strides = [1, 1]} : vector<6x2xi32> to vector<1x2xi32>
    %582 = vector.broadcast %581 : vector<1x2xi32> to vector<8x2xi32>
    %583 = arith.cmpi eq, %559, %582 : vector<8x2xi32>
    %584 = arith.extui %583 : vector<8x2xi1> to vector<8x2xi32>
    %585 = arith.sitofp %584 : vector<8x2xi32> to vector<8x2xf32>
    %586 = vector.shape_cast %585 : vector<8x2xf32> to vector<8x2x1xf32>
    %587 = vector.broadcast %586 : vector<8x2x1xf32> to vector<8x2x32xf32>
    %588 = arith.mulf %587, %523 : vector<8x2x32xf32>
    %cst_227 = arith.constant dense<0.000000e+00> : vector<2x32xf32>
    %589 = vector.multi_reduction <add>, %588, %cst_227 [0] : vector<8x2x32xf32> to vector<2x32xf32>
    %590 = vector.extract_strided_slice %558 {offsets = [3, 0], sizes = [1, 2], strides = [1, 1]} : vector<6x2xi32> to vector<1x2xi32>
    %591 = vector.broadcast %590 : vector<1x2xi32> to vector<8x2xi32>
    %592 = arith.cmpi eq, %559, %591 : vector<8x2xi32>
    %593 = arith.extui %592 : vector<8x2xi1> to vector<8x2xi32>
    %594 = arith.sitofp %593 : vector<8x2xi32> to vector<8x2xf32>
    %595 = vector.shape_cast %594 : vector<8x2xf32> to vector<8x2x1xf32>
    %596 = vector.broadcast %595 : vector<8x2x1xf32> to vector<8x2x32xf32>
    %597 = arith.mulf %596, %523 : vector<8x2x32xf32>
    %cst_228 = arith.constant dense<0.000000e+00> : vector<2x32xf32>
    %598 = vector.multi_reduction <add>, %597, %cst_228 [0] : vector<8x2x32xf32> to vector<2x32xf32>
    %599 = vector.extract_strided_slice %558 {offsets = [4, 0], sizes = [1, 2], strides = [1, 1]} : vector<6x2xi32> to vector<1x2xi32>
    %600 = vector.broadcast %599 : vector<1x2xi32> to vector<8x2xi32>
    %601 = arith.cmpi eq, %559, %600 : vector<8x2xi32>
    %602 = arith.extui %601 : vector<8x2xi1> to vector<8x2xi32>
    %603 = arith.sitofp %602 : vector<8x2xi32> to vector<8x2xf32>
    %604 = vector.shape_cast %603 : vector<8x2xf32> to vector<8x2x1xf32>
    %605 = vector.broadcast %604 : vector<8x2x1xf32> to vector<8x2x32xf32>
    %606 = arith.mulf %605, %523 : vector<8x2x32xf32>
    %cst_229 = arith.constant dense<0.000000e+00> : vector<2x32xf32>
    %607 = vector.multi_reduction <add>, %606, %cst_229 [0] : vector<8x2x32xf32> to vector<2x32xf32>
    %608 = tpu.concatenate %562, %571, %580, %589, %598, %607 in 0 : vector<2x32xf32>, vector<2x32xf32>, vector<2x32xf32>, vector<2x32xf32>, vector<2x32xf32>, vector<2x32xf32> -> vector<12x32xf32>
    %609 = arith.truncf %608 : vector<12x32xf32> to vector<12x32xbf16>
    %c0_230 = arith.constant 0 : index
    %c0_231 = arith.constant 0 : index
    %610 = vector.load %arg15[%c0_230, %c0_231] : memref<32x128xbf16, #tpu.memory_space<vmem>>, vector<32x128xbf16>
    %cst_232 = arith.constant dense<0.000000e+00> : vector<12x128xf32>
    %611 = tpu.matmul %609, %610, %cst_232 {dimension_numbers = #tpu.dot_dimension_numbers<[1], [0], [0], [1], [0, 0, 1, 1], [], []>} : vector<12x32xbf16>, vector<32x128xbf16>, vector<12x128xf32> -> vector<12x128xf32>
    %c0_233 = arith.constant 0 : index
    %c0_234 = arith.constant 0 : index
    %612 = vector.load %arg16[%c0_233, %c0_234] : memref<1x128xf32, #tpu.memory_space<vmem>>, vector<1x128xf32>
    %613 = vector.broadcast %612 : vector<1x128xf32> to vector<12x128xf32>
    %614 = arith.addf %611, %613 : vector<12x128xf32>
    %615 = vector.shape_cast %614 : vector<12x128xf32> to vector<6x2x128xf32>
    %c0_235 = arith.constant 0 : index
    %c0_236 = arith.constant 0 : index
    %c0_237 = arith.constant 0 : index
    %616 = vector.load %arg26[%c0_235, %c0_236, %c0_237] : memref<6x2x128xf32, #tpu.memory_space<vmem>>, vector<6x2x128xf32>
    tpu.vector_store %arg26[%c0_235, %c0_236, %c0_237], %615 {strides = array<i32>} : memref<6x2x128xf32, #tpu.memory_space<vmem>>, vector<6x2x128xf32>,
    %c0_238 = arith.constant 0 : index
    %c0_239 = arith.constant 0 : index
    %617 = vector.load %arg1[%c0_238, %c0_239] : memref<2x8xf32, #tpu.memory_space<vmem>>, vector<2x8xf32>
    %cst_240 = arith.constant 5.000000e-01 : f32
    %618 = vector.broadcast %cst_240 : f32 to vector<2x8xf32>
    %619 = arith.cmpf ogt, %617, %618 : vector<2x8xf32>
    %cst_241 = arith.constant 0.000000e+00 : f32
    %cst_242 = arith.constant 0xFF800000 : f32
    %620 = vector.broadcast %cst_241 : f32 to vector<2x8xf32>
    %621 = vector.broadcast %cst_242 : f32 to vector<2x8xf32>
    %622 = arith.select %619, %620, %621 : vector<2x8xi1>, vector<2x8xf32>
    %c0_243 = arith.constant 0 : index
    %c0_244 = arith.constant 0 : index
    %623 = vector.load %arg19[%c0_243, %c0_244] : memref<1x32xf32, #tpu.memory_space<vmem>>, vector<1x32xf32>
    %624 = vector.shape_cast %623 : vector<1x32xf32> to vector<1x1x32xf32>
    %cst_245 = arith.constant 0.000000e+00 : f32
    %625 = vector.broadcast %cst_245 : f32 to vector<2x160xf32>
    %c0_i32_246 = arith.constant 0 : i32
    %626 = arith.index_cast %c0_i32_246 : i32 to index
    %c0_247 = arith.constant 0 : index
    %c0_248 = arith.constant 0 : index
    %627 = vector.load %arg26[%626, %c0_247, %c0_248] : memref<6x2x128xf32, #tpu.memory_space<vmem>>, vector<1x2x128xf32>
    %628 = vector.shape_cast %627 : vector<1x2x128xf32> to vector<2x128xf32>
    %629 = vector.extract_strided_slice %625 {offsets = [0, 0], sizes = [2, 128], strides = [1, 1]} : vector<2x160xf32> to vector<2x128xf32>
    %630 = arith.addf %628, %629 : vector<2x128xf32>
    %631 = vector.extract_strided_slice %630 {offsets = [0, 0], sizes = [2, 96], strides = [1, 1]} : vector<2x128xf32> to vector<2x96xf32>
    %cst_249 = arith.constant 5.000000e-01 : f32
    %632 = vector.broadcast %cst_249 : f32 to vector<2x96xf32>
    %633 = arith.mulf %632, %631 : vector<2x96xf32>
    %634 = math.tanh %633 : vector<2x96xf32>
    %cst_250 = arith.constant 1.000000e+00 : f32
    %635 = vector.broadcast %cst_250 : f32 to vector<2x96xf32>
    %636 = arith.addf %634, %635 : vector<2x96xf32>
    %cst_251 = arith.constant 5.000000e-01 : f32
    %637 = vector.broadcast %cst_251 : f32 to vector<2x96xf32>
    %638 = arith.mulf %637, %636 : vector<2x96xf32>
    %639 = vector.extract_strided_slice %638 {offsets = [0, 0], sizes = [2, 32], strides = [1, 1]} : vector<2x96xf32> to vector<2x32xf32>
    %640 = vector.extract_strided_slice %638 {offsets = [0, 32], sizes = [2, 32], strides = [1, 1]} : vector<2x96xf32> to vector<2x32xf32>
    %641 = vector.extract_strided_slice %638 {offsets = [0, 64], sizes = [2, 32], strides = [1, 1]} : vector<2x96xf32> to vector<2x32xf32>
    %642 = vector.extract_strided_slice %630 {offsets = [0, 96], sizes = [2, 32], strides = [1, 1]} : vector<2x128xf32> to vector<2x32xf32>
    %643 = math.tanh %642 : vector<2x32xf32>
    %644 = arith.mulf %640, %35 : vector<2x32xf32>
    %645 = arith.mulf %639, %643 : vector<2x32xf32>
    %646 = arith.addf %644, %645 : vector<2x32xf32>
    %647 = math.tanh %646 : vector<2x32xf32>
    %648 = arith.mulf %641, %647 : vector<2x32xf32>
    %649 = arith.truncf %648 : vector<2x32xf32> to vector<2x32xbf16>
    %c0_252 = arith.constant 0 : index
    %c0_253 = arith.constant 0 : index
    %650 = vector.load %arg18[%c0_252, %c0_253] : memref<32x160xbf16, #tpu.memory_space<vmem>>, vector<32x160xbf16>
    %cst_254 = arith.constant dense<0.000000e+00> : vector<2x160xf32>
    %651 = tpu.matmul %649, %650, %cst_254 {dimension_numbers = #tpu.dot_dimension_numbers<[1], [0], [0], [1], [0, 0, 1, 1], [], []>} : vector<2x32xbf16>, vector<32x160xbf16>, vector<2x160xf32> -> vector<2x160xf32>
    %652 = vector.extract_strided_slice %651 {offsets = [0, 128], sizes = [2, 32], strides = [1, 1]} : vector<2x160xf32> to vector<2x32xf32>
    %c0_255 = arith.constant 0 : index
    %c0_256 = arith.constant 0 : index
    %c0_257 = arith.constant 0 : index
    %653 = vector.load %arg25[%c0_255, %c0_256, %c0_257] : memref<2x8x32xf32, #tpu.memory_space<vmem>>, vector<2x8x32xf32>
    %654 = vector.shape_cast %652 : vector<2x32xf32> to vector<2x1x32xf32>
    %655 = vector.broadcast %654 : vector<2x1x32xf32> to vector<2x8x32xf32>
    %656 = arith.addf %653, %655 : vector<2x8x32xf32>
    %657 = math.tanh %656 : vector<2x8x32xf32>
    %658 = vector.broadcast %624 : vector<1x1x32xf32> to vector<2x8x32xf32>
    %659 = arith.mulf %657, %658 : vector<2x8x32xf32>
    %cst_258 = arith.constant dense<0.000000e+00> : vector<2x8xf32>
    %660 = vector.multi_reduction <add>, %659, %cst_258 [2] : vector<2x8x32xf32> to vector<2x8xf32>
    %661 = arith.addf %660, %622 : vector<2x8xf32>
    %cst_259 = arith.constant dense<0xFF800000> : vector<2xf32>
    %662 = vector.multi_reduction <maximumf>, %661, %cst_259 [1] : vector<2x8xf32> to vector<2xf32>
    %663 = vector.shape_cast %662 : vector<2xf32> to vector<2x1xf32>
    %cst_260 = arith.constant 0.000000e+00 : f32
    %664 = vector.broadcast %cst_260 : f32 to vector<2x1xf32>
    %665 = arith.maximumf %663, %664 : vector<2x1xf32>
    %666 = vector.broadcast %665 : vector<2x1xf32> to vector<2x8xf32>
    %667 = arith.subf %661, %666 : vector<2x8xf32>
    %668 = math.exp %667 : vector<2x8xf32>
    %cst_261 = arith.constant dense<0.000000e+00> : vector<2xf32>
    %669 = vector.multi_reduction <add>, %668, %cst_261 [1] : vector<2x8xf32> to vector<2xf32>
    %670 = vector.shape_cast %669 : vector<2xf32> to vector<2x1xf32>
    %cst_262 = arith.constant 0.000000e+00 : f32
    %671 = vector.broadcast %cst_262 : f32 to vector<2x1xf32>
    %672 = arith.subf %671, %665 : vector<2x1xf32>
    %673 = math.exp %672 : vector<2x1xf32>
    %674 = arith.addf %670, %673 : vector<2x1xf32>
    %675 = math.log %674 : vector<2x1xf32>
    %676 = arith.addf %675, %665 : vector<2x1xf32>
    %677 = vector.broadcast %676 : vector<2x1xf32> to vector<2x8xf32>
    %678 = arith.subf %661, %677 : vector<2x8xf32>
    %cst_263 = arith.constant 0.000000e+00 : f32
    %679 = vector.broadcast %cst_263 : f32 to vector<2x1xf32>
    %680 = arith.subf %679, %676 : vector<2x1xf32>
    %681 = tpu.concatenate %678, %680 in 1 : vector<2x8xf32>, vector<2x1xf32> -> vector<2x9xf32>
    %682 = arith.index_cast %c0_i32_246 : i32 to index
    %c0_264 = arith.constant 0 : index
    %c0_265 = arith.constant 0 : index
    %683 = vector.load %arg20[%682, %c0_264, %c0_265] : memref<6x2x9xf32, #tpu.memory_space<vmem>>, vector<1x2x9xf32>
    %684 = vector.shape_cast %683 : vector<1x2x9xf32> to vector<2x9xf32>
    %685 = vector.shape_cast %681 : vector<2x9xf32> to vector<1x2x9xf32>
    tpu.vector_store %arg20[%682, %c0_264, %c0_265], %685 {strides = array<i32>} : memref<6x2x9xf32, #tpu.memory_space<vmem>>, vector<1x2x9xf32>,
    %c1_i32_266 = arith.constant 1 : i32
    %686 = arith.index_cast %c1_i32_266 : i32 to index
    %c0_267 = arith.constant 0 : index
    %c0_268 = arith.constant 0 : index
    %687 = vector.load %arg26[%686, %c0_267, %c0_268] : memref<6x2x128xf32, #tpu.memory_space<vmem>>, vector<1x2x128xf32>
    %688 = vector.shape_cast %687 : vector<1x2x128xf32> to vector<2x128xf32>
    %689 = vector.extract_strided_slice %651 {offsets = [0, 0], sizes = [2, 128], strides = [1, 1]} : vector<2x160xf32> to vector<2x128xf32>
    %690 = arith.addf %688, %689 : vector<2x128xf32>
    %691 = vector.extract_strided_slice %690 {offsets = [0, 0], sizes = [2, 96], strides = [1, 1]} : vector<2x128xf32> to vector<2x96xf32>
    %cst_269 = arith.constant 5.000000e-01 : f32
    %692 = vector.broadcast %cst_269 : f32 to vector<2x96xf32>
    %693 = arith.mulf %692, %691 : vector<2x96xf32>
    %694 = math.tanh %693 : vector<2x96xf32>
    %cst_270 = arith.constant 1.000000e+00 : f32
    %695 = vector.broadcast %cst_270 : f32 to vector<2x96xf32>
    %696 = arith.addf %694, %695 : vector<2x96xf32>
    %cst_271 = arith.constant 5.000000e-01 : f32
    %697 = vector.broadcast %cst_271 : f32 to vector<2x96xf32>
    %698 = arith.mulf %697, %696 : vector<2x96xf32>
    %699 = vector.extract_strided_slice %698 {offsets = [0, 0], sizes = [2, 32], strides = [1, 1]} : vector<2x96xf32> to vector<2x32xf32>
    %700 = vector.extract_strided_slice %698 {offsets = [0, 32], sizes = [2, 32], strides = [1, 1]} : vector<2x96xf32> to vector<2x32xf32>
    %701 = vector.extract_strided_slice %698 {offsets = [0, 64], sizes = [2, 32], strides = [1, 1]} : vector<2x96xf32> to vector<2x32xf32>
    %702 = vector.extract_strided_slice %690 {offsets = [0, 96], sizes = [2, 32], strides = [1, 1]} : vector<2x128xf32> to vector<2x32xf32>
    %703 = math.tanh %702 : vector<2x32xf32>
    %704 = arith.mulf %700, %646 : vector<2x32xf32>
    %705 = arith.mulf %699, %703 : vector<2x32xf32>
    %706 = arith.addf %704, %705 : vector<2x32xf32>
    %707 = math.tanh %706 : vector<2x32xf32>
    %708 = arith.mulf %701, %707 : vector<2x32xf32>
    %709 = arith.truncf %708 : vector<2x32xf32> to vector<2x32xbf16>
    %c0_272 = arith.constant 0 : index
    %c0_273 = arith.constant 0 : index
    %710 = vector.load %arg18[%c0_272, %c0_273] : memref<32x160xbf16, #tpu.memory_space<vmem>>, vector<32x160xbf16>
    %cst_274 = arith.constant dense<0.000000e+00> : vector<2x160xf32>
    %711 = tpu.matmul %709, %710, %cst_274 {dimension_numbers = #tpu.dot_dimension_numbers<[1], [0], [0], [1], [0, 0, 1, 1], [], []>} : vector<2x32xbf16>, vector<32x160xbf16>, vector<2x160xf32> -> vector<2x160xf32>
    %712 = vector.extract_strided_slice %711 {offsets = [0, 128], sizes = [2, 32], strides = [1, 1]} : vector<2x160xf32> to vector<2x32xf32>
    %c0_275 = arith.constant 0 : index
    %c0_276 = arith.constant 0 : index
    %c0_277 = arith.constant 0 : index
    %713 = vector.load %arg25[%c0_275, %c0_276, %c0_277] : memref<2x8x32xf32, #tpu.memory_space<vmem>>, vector<2x8x32xf32>
    %714 = vector.shape_cast %712 : vector<2x32xf32> to vector<2x1x32xf32>
    %715 = vector.broadcast %714 : vector<2x1x32xf32> to vector<2x8x32xf32>
    %716 = arith.addf %713, %715 : vector<2x8x32xf32>
    %717 = math.tanh %716 : vector<2x8x32xf32>
    %718 = vector.broadcast %624 : vector<1x1x32xf32> to vector<2x8x32xf32>
    %719 = arith.mulf %717, %718 : vector<2x8x32xf32>
    %cst_278 = arith.constant dense<0.000000e+00> : vector<2x8xf32>
    %720 = vector.multi_reduction <add>, %719, %cst_278 [2] : vector<2x8x32xf32> to vector<2x8xf32>
    %721 = arith.addf %720, %622 : vector<2x8xf32>
    %cst_279 = arith.constant dense<0xFF800000> : vector<2xf32>
    %722 = vector.multi_reduction <maximumf>, %721, %cst_279 [1] : vector<2x8xf32> to vector<2xf32>
    %723 = vector.shape_cast %722 : vector<2xf32> to vector<2x1xf32>
    %cst_280 = arith.constant 0.000000e+00 : f32
    %724 = vector.broadcast %cst_280 : f32 to vector<2x1xf32>
    %725 = arith.maximumf %723, %724 : vector<2x1xf32>
    %726 = vector.broadcast %725 : vector<2x1xf32> to vector<2x8xf32>
    %727 = arith.subf %721, %726 : vector<2x8xf32>
    %728 = math.exp %727 : vector<2x8xf32>
    %cst_281 = arith.constant dense<0.000000e+00> : vector<2xf32>
    %729 = vector.multi_reduction <add>, %728, %cst_281 [1] : vector<2x8xf32> to vector<2xf32>
    %730 = vector.shape_cast %729 : vector<2xf32> to vector<2x1xf32>
    %cst_282 = arith.constant 0.000000e+00 : f32
    %731 = vector.broadcast %cst_282 : f32 to vector<2x1xf32>
    %732 = arith.subf %731, %725 : vector<2x1xf32>
    %733 = math.exp %732 : vector<2x1xf32>
    %734 = arith.addf %730, %733 : vector<2x1xf32>
    %735 = math.log %734 : vector<2x1xf32>
    %736 = arith.addf %735, %725 : vector<2x1xf32>
    %737 = vector.broadcast %736 : vector<2x1xf32> to vector<2x8xf32>
    %738 = arith.subf %721, %737 : vector<2x8xf32>
    %cst_283 = arith.constant 0.000000e+00 : f32
    %739 = vector.broadcast %cst_283 : f32 to vector<2x1xf32>
    %740 = arith.subf %739, %736 : vector<2x1xf32>
    %741 = tpu.concatenate %738, %740 in 1 : vector<2x8xf32>, vector<2x1xf32> -> vector<2x9xf32>
    %742 = arith.index_cast %c1_i32_266 : i32 to index
    %c0_284 = arith.constant 0 : index
    %c0_285 = arith.constant 0 : index
    %743 = vector.load %arg20[%742, %c0_284, %c0_285] : memref<6x2x9xf32, #tpu.memory_space<vmem>>, vector<1x2x9xf32>
    %744 = vector.shape_cast %743 : vector<1x2x9xf32> to vector<2x9xf32>
    %745 = vector.shape_cast %741 : vector<2x9xf32> to vector<1x2x9xf32>
    tpu.vector_store %arg20[%742, %c0_284, %c0_285], %745 {strides = array<i32>} : memref<6x2x9xf32, #tpu.memory_space<vmem>>, vector<1x2x9xf32>,
    %c2_i32_286 = arith.constant 2 : i32
    %746 = arith.index_cast %c2_i32_286 : i32 to index
    %c0_287 = arith.constant 0 : index
    %c0_288 = arith.constant 0 : index
    %747 = vector.load %arg26[%746, %c0_287, %c0_288] : memref<6x2x128xf32, #tpu.memory_space<vmem>>, vector<1x2x128xf32>
    %748 = vector.shape_cast %747 : vector<1x2x128xf32> to vector<2x128xf32>
    %749 = vector.extract_strided_slice %711 {offsets = [0, 0], sizes = [2, 128], strides = [1, 1]} : vector<2x160xf32> to vector<2x128xf32>
    %750 = arith.addf %748, %749 : vector<2x128xf32>
    %751 = vector.extract_strided_slice %750 {offsets = [0, 0], sizes = [2, 96], strides = [1, 1]} : vector<2x128xf32> to vector<2x96xf32>
    %cst_289 = arith.constant 5.000000e-01 : f32
    %752 = vector.broadcast %cst_289 : f32 to vector<2x96xf32>
    %753 = arith.mulf %752, %751 : vector<2x96xf32>
    %754 = math.tanh %753 : vector<2x96xf32>
    %cst_290 = arith.constant 1.000000e+00 : f32
    %755 = vector.broadcast %cst_290 : f32 to vector<2x96xf32>
    %756 = arith.addf %754, %755 : vector<2x96xf32>
    %cst_291 = arith.constant 5.000000e-01 : f32
    %757 = vector.broadcast %cst_291 : f32 to vector<2x96xf32>
    %758 = arith.mulf %757, %756 : vector<2x96xf32>
    %759 = vector.extract_strided_slice %758 {offsets = [0, 0], sizes = [2, 32], strides = [1, 1]} : vector<2x96xf32> to vector<2x32xf32>
    %760 = vector.extract_strided_slice %758 {offsets = [0, 32], sizes = [2, 32], strides = [1, 1]} : vector<2x96xf32> to vector<2x32xf32>
    %761 = vector.extract_strided_slice %758 {offsets = [0, 64], sizes = [2, 32], strides = [1, 1]} : vector<2x96xf32> to vector<2x32xf32>
    %762 = vector.extract_strided_slice %750 {offsets = [0, 96], sizes = [2, 32], strides = [1, 1]} : vector<2x128xf32> to vector<2x32xf32>
    %763 = math.tanh %762 : vector<2x32xf32>
    %764 = arith.mulf %760, %706 : vector<2x32xf32>
    %765 = arith.mulf %759, %763 : vector<2x32xf32>
    %766 = arith.addf %764, %765 : vector<2x32xf32>
    %767 = math.tanh %766 : vector<2x32xf32>
    %768 = arith.mulf %761, %767 : vector<2x32xf32>
    %769 = arith.truncf %768 : vector<2x32xf32> to vector<2x32xbf16>
    %c0_292 = arith.constant 0 : index
    %c0_293 = arith.constant 0 : index
    %770 = vector.load %arg18[%c0_292, %c0_293] : memref<32x160xbf16, #tpu.memory_space<vmem>>, vector<32x160xbf16>
    %cst_294 = arith.constant dense<0.000000e+00> : vector<2x160xf32>
    %771 = tpu.matmul %769, %770, %cst_294 {dimension_numbers = #tpu.dot_dimension_numbers<[1], [0], [0], [1], [0, 0, 1, 1], [], []>} : vector<2x32xbf16>, vector<32x160xbf16>, vector<2x160xf32> -> vector<2x160xf32>
    %772 = vector.extract_strided_slice %771 {offsets = [0, 128], sizes = [2, 32], strides = [1, 1]} : vector<2x160xf32> to vector<2x32xf32>
    %c0_295 = arith.constant 0 : index
    %c0_296 = arith.constant 0 : index
    %c0_297 = arith.constant 0 : index
    %773 = vector.load %arg25[%c0_295, %c0_296, %c0_297] : memref<2x8x32xf32, #tpu.memory_space<vmem>>, vector<2x8x32xf32>
    %774 = vector.shape_cast %772 : vector<2x32xf32> to vector<2x1x32xf32>
    %775 = vector.broadcast %774 : vector<2x1x32xf32> to vector<2x8x32xf32>
    %776 = arith.addf %773, %775 : vector<2x8x32xf32>
    %777 = math.tanh %776 : vector<2x8x32xf32>
    %778 = vector.broadcast %624 : vector<1x1x32xf32> to vector<2x8x32xf32>
    %779 = arith.mulf %777, %778 : vector<2x8x32xf32>
    %cst_298 = arith.constant dense<0.000000e+00> : vector<2x8xf32>
    %780 = vector.multi_reduction <add>, %779, %cst_298 [2] : vector<2x8x32xf32> to vector<2x8xf32>
    %781 = arith.addf %780, %622 : vector<2x8xf32>
    %cst_299 = arith.constant dense<0xFF800000> : vector<2xf32>
    %782 = vector.multi_reduction <maximumf>, %781, %cst_299 [1] : vector<2x8xf32> to vector<2xf32>
    %783 = vector.shape_cast %782 : vector<2xf32> to vector<2x1xf32>
    %cst_300 = arith.constant 0.000000e+00 : f32
    %784 = vector.broadcast %cst_300 : f32 to vector<2x1xf32>
    %785 = arith.maximumf %783, %784 : vector<2x1xf32>
    %786 = vector.broadcast %785 : vector<2x1xf32> to vector<2x8xf32>
    %787 = arith.subf %781, %786 : vector<2x8xf32>
    %788 = math.exp %787 : vector<2x8xf32>
    %cst_301 = arith.constant dense<0.000000e+00> : vector<2xf32>
    %789 = vector.multi_reduction <add>, %788, %cst_301 [1] : vector<2x8xf32> to vector<2xf32>
    %790 = vector.shape_cast %789 : vector<2xf32> to vector<2x1xf32>
    %cst_302 = arith.constant 0.000000e+00 : f32
    %791 = vector.broadcast %cst_302 : f32 to vector<2x1xf32>
    %792 = arith.subf %791, %785 : vector<2x1xf32>
    %793 = math.exp %792 : vector<2x1xf32>
    %794 = arith.addf %790, %793 : vector<2x1xf32>
    %795 = math.log %794 : vector<2x1xf32>
    %796 = arith.addf %795, %785 : vector<2x1xf32>
    %797 = vector.broadcast %796 : vector<2x1xf32> to vector<2x8xf32>
    %798 = arith.subf %781, %797 : vector<2x8xf32>
    %cst_303 = arith.constant 0.000000e+00 : f32
    %799 = vector.broadcast %cst_303 : f32 to vector<2x1xf32>
    %800 = arith.subf %799, %796 : vector<2x1xf32>
    %801 = tpu.concatenate %798, %800 in 1 : vector<2x8xf32>, vector<2x1xf32> -> vector<2x9xf32>
    %802 = arith.index_cast %c2_i32_286 : i32 to index
    %c0_304 = arith.constant 0 : index
    %c0_305 = arith.constant 0 : index
    %803 = vector.load %arg20[%802, %c0_304, %c0_305] : memref<6x2x9xf32, #tpu.memory_space<vmem>>, vector<1x2x9xf32>
    %804 = vector.shape_cast %803 : vector<1x2x9xf32> to vector<2x9xf32>
    %805 = vector.shape_cast %801 : vector<2x9xf32> to vector<1x2x9xf32>
    tpu.vector_store %arg20[%802, %c0_304, %c0_305], %805 {strides = array<i32>} : memref<6x2x9xf32, #tpu.memory_space<vmem>>, vector<1x2x9xf32>,
    %c3_i32_306 = arith.constant 3 : i32
    %806 = arith.index_cast %c3_i32_306 : i32 to index
    %c0_307 = arith.constant 0 : index
    %c0_308 = arith.constant 0 : index
    %807 = vector.load %arg26[%806, %c0_307, %c0_308] : memref<6x2x128xf32, #tpu.memory_space<vmem>>, vector<1x2x128xf32>
    %808 = vector.shape_cast %807 : vector<1x2x128xf32> to vector<2x128xf32>
    %809 = vector.extract_strided_slice %771 {offsets = [0, 0], sizes = [2, 128], strides = [1, 1]} : vector<2x160xf32> to vector<2x128xf32>
    %810 = arith.addf %808, %809 : vector<2x128xf32>
    %811 = vector.extract_strided_slice %810 {offsets = [0, 0], sizes = [2, 96], strides = [1, 1]} : vector<2x128xf32> to vector<2x96xf32>
    %cst_309 = arith.constant 5.000000e-01 : f32
    %812 = vector.broadcast %cst_309 : f32 to vector<2x96xf32>
    %813 = arith.mulf %812, %811 : vector<2x96xf32>
    %814 = math.tanh %813 : vector<2x96xf32>
    %cst_310 = arith.constant 1.000000e+00 : f32
    %815 = vector.broadcast %cst_310 : f32 to vector<2x96xf32>
    %816 = arith.addf %814, %815 : vector<2x96xf32>
    %cst_311 = arith.constant 5.000000e-01 : f32
    %817 = vector.broadcast %cst_311 : f32 to vector<2x96xf32>
    %818 = arith.mulf %817, %816 : vector<2x96xf32>
    %819 = vector.extract_strided_slice %818 {offsets = [0, 0], sizes = [2, 32], strides = [1, 1]} : vector<2x96xf32> to vector<2x32xf32>
    %820 = vector.extract_strided_slice %818 {offsets = [0, 32], sizes = [2, 32], strides = [1, 1]} : vector<2x96xf32> to vector<2x32xf32>
    %821 = vector.extract_strided_slice %818 {offsets = [0, 64], sizes = [2, 32], strides = [1, 1]} : vector<2x96xf32> to vector<2x32xf32>
    %822 = vector.extract_strided_slice %810 {offsets = [0, 96], sizes = [2, 32], strides = [1, 1]} : vector<2x128xf32> to vector<2x32xf32>
    %823 = math.tanh %822 : vector<2x32xf32>
    %824 = arith.mulf %820, %766 : vector<2x32xf32>
    %825 = arith.mulf %819, %823 : vector<2x32xf32>
    %826 = arith.addf %824, %825 : vector<2x32xf32>
    %827 = math.tanh %826 : vector<2x32xf32>
    %828 = arith.mulf %821, %827 : vector<2x32xf32>
    %829 = arith.truncf %828 : vector<2x32xf32> to vector<2x32xbf16>
    %c0_312 = arith.constant 0 : index
    %c0_313 = arith.constant 0 : index
    %830 = vector.load %arg18[%c0_312, %c0_313] : memref<32x160xbf16, #tpu.memory_space<vmem>>, vector<32x160xbf16>
    %cst_314 = arith.constant dense<0.000000e+00> : vector<2x160xf32>
    %831 = tpu.matmul %829, %830, %cst_314 {dimension_numbers = #tpu.dot_dimension_numbers<[1], [0], [0], [1], [0, 0, 1, 1], [], []>} : vector<2x32xbf16>, vector<32x160xbf16>, vector<2x160xf32> -> vector<2x160xf32>
    %832 = vector.extract_strided_slice %831 {offsets = [0, 128], sizes = [2, 32], strides = [1, 1]} : vector<2x160xf32> to vector<2x32xf32>
    %c0_315 = arith.constant 0 : index
    %c0_316 = arith.constant 0 : index
    %c0_317 = arith.constant 0 : index
    %833 = vector.load %arg25[%c0_315, %c0_316, %c0_317] : memref<2x8x32xf32, #tpu.memory_space<vmem>>, vector<2x8x32xf32>
    %834 = vector.shape_cast %832 : vector<2x32xf32> to vector<2x1x32xf32>
    %835 = vector.broadcast %834 : vector<2x1x32xf32> to vector<2x8x32xf32>
    %836 = arith.addf %833, %835 : vector<2x8x32xf32>
    %837 = math.tanh %836 : vector<2x8x32xf32>
    %838 = vector.broadcast %624 : vector<1x1x32xf32> to vector<2x8x32xf32>
    %839 = arith.mulf %837, %838 : vector<2x8x32xf32>
    %cst_318 = arith.constant dense<0.000000e+00> : vector<2x8xf32>
    %840 = vector.multi_reduction <add>, %839, %cst_318 [2] : vector<2x8x32xf32> to vector<2x8xf32>
    %841 = arith.addf %840, %622 : vector<2x8xf32>
    %cst_319 = arith.constant dense<0xFF800000> : vector<2xf32>
    %842 = vector.multi_reduction <maximumf>, %841, %cst_319 [1] : vector<2x8xf32> to vector<2xf32>
    %843 = vector.shape_cast %842 : vector<2xf32> to vector<2x1xf32>
    %cst_320 = arith.constant 0.000000e+00 : f32
    %844 = vector.broadcast %cst_320 : f32 to vector<2x1xf32>
    %845 = arith.maximumf %843, %844 : vector<2x1xf32>
    %846 = vector.broadcast %845 : vector<2x1xf32> to vector<2x8xf32>
    %847 = arith.subf %841, %846 : vector<2x8xf32>
    %848 = math.exp %847 : vector<2x8xf32>
    %cst_321 = arith.constant dense<0.000000e+00> : vector<2xf32>
    %849 = vector.multi_reduction <add>, %848, %cst_321 [1] : vector<2x8xf32> to vector<2xf32>
    %850 = vector.shape_cast %849 : vector<2xf32> to vector<2x1xf32>
    %cst_322 = arith.constant 0.000000e+00 : f32
    %851 = vector.broadcast %cst_322 : f32 to vector<2x1xf32>
    %852 = arith.subf %851, %845 : vector<2x1xf32>
    %853 = math.exp %852 : vector<2x1xf32>
    %854 = arith.addf %850, %853 : vector<2x1xf32>
    %855 = math.log %854 : vector<2x1xf32>
    %856 = arith.addf %855, %845 : vector<2x1xf32>
    %857 = vector.broadcast %856 : vector<2x1xf32> to vector<2x8xf32>
    %858 = arith.subf %841, %857 : vector<2x8xf32>
    %cst_323 = arith.constant 0.000000e+00 : f32
    %859 = vector.broadcast %cst_323 : f32 to vector<2x1xf32>
    %860 = arith.subf %859, %856 : vector<2x1xf32>
    %861 = tpu.concatenate %858, %860 in 1 : vector<2x8xf32>, vector<2x1xf32> -> vector<2x9xf32>
    %862 = arith.index_cast %c3_i32_306 : i32 to index
    %c0_324 = arith.constant 0 : index
    %c0_325 = arith.constant 0 : index
    %863 = vector.load %arg20[%862, %c0_324, %c0_325] : memref<6x2x9xf32, #tpu.memory_space<vmem>>, vector<1x2x9xf32>
    %864 = vector.shape_cast %863 : vector<1x2x9xf32> to vector<2x9xf32>
    %865 = vector.shape_cast %861 : vector<2x9xf32> to vector<1x2x9xf32>
    tpu.vector_store %arg20[%862, %c0_324, %c0_325], %865 {strides = array<i32>} : memref<6x2x9xf32, #tpu.memory_space<vmem>>, vector<1x2x9xf32>,
    %c4_i32_326 = arith.constant 4 : i32
    %866 = arith.index_cast %c4_i32_326 : i32 to index
    %c0_327 = arith.constant 0 : index
    %c0_328 = arith.constant 0 : index
    %867 = vector.load %arg26[%866, %c0_327, %c0_328] : memref<6x2x128xf32, #tpu.memory_space<vmem>>, vector<1x2x128xf32>
    %868 = vector.shape_cast %867 : vector<1x2x128xf32> to vector<2x128xf32>
    %869 = vector.extract_strided_slice %831 {offsets = [0, 0], sizes = [2, 128], strides = [1, 1]} : vector<2x160xf32> to vector<2x128xf32>
    %870 = arith.addf %868, %869 : vector<2x128xf32>
    %871 = vector.extract_strided_slice %870 {offsets = [0, 0], sizes = [2, 96], strides = [1, 1]} : vector<2x128xf32> to vector<2x96xf32>
    %cst_329 = arith.constant 5.000000e-01 : f32
    %872 = vector.broadcast %cst_329 : f32 to vector<2x96xf32>
    %873 = arith.mulf %872, %871 : vector<2x96xf32>
    %874 = math.tanh %873 : vector<2x96xf32>
    %cst_330 = arith.constant 1.000000e+00 : f32
    %875 = vector.broadcast %cst_330 : f32 to vector<2x96xf32>
    %876 = arith.addf %874, %875 : vector<2x96xf32>
    %cst_331 = arith.constant 5.000000e-01 : f32
    %877 = vector.broadcast %cst_331 : f32 to vector<2x96xf32>
    %878 = arith.mulf %877, %876 : vector<2x96xf32>
    %879 = vector.extract_strided_slice %878 {offsets = [0, 0], sizes = [2, 32], strides = [1, 1]} : vector<2x96xf32> to vector<2x32xf32>
    %880 = vector.extract_strided_slice %878 {offsets = [0, 32], sizes = [2, 32], strides = [1, 1]} : vector<2x96xf32> to vector<2x32xf32>
    %881 = vector.extract_strided_slice %878 {offsets = [0, 64], sizes = [2, 32], strides = [1, 1]} : vector<2x96xf32> to vector<2x32xf32>
    %882 = vector.extract_strided_slice %870 {offsets = [0, 96], sizes = [2, 32], strides = [1, 1]} : vector<2x128xf32> to vector<2x32xf32>
    %883 = math.tanh %882 : vector<2x32xf32>
    %884 = arith.mulf %880, %826 : vector<2x32xf32>
    %885 = arith.mulf %879, %883 : vector<2x32xf32>
    %886 = arith.addf %884, %885 : vector<2x32xf32>
    %887 = math.tanh %886 : vector<2x32xf32>
    %888 = arith.mulf %881, %887 : vector<2x32xf32>
    %889 = arith.truncf %888 : vector<2x32xf32> to vector<2x32xbf16>
    %c0_332 = arith.constant 0 : index
    %c0_333 = arith.constant 0 : index
    %890 = vector.load %arg18[%c0_332, %c0_333] : memref<32x160xbf16, #tpu.memory_space<vmem>>, vector<32x160xbf16>
    %cst_334 = arith.constant dense<0.000000e+00> : vector<2x160xf32>
    %891 = tpu.matmul %889, %890, %cst_334 {dimension_numbers = #tpu.dot_dimension_numbers<[1], [0], [0], [1], [0, 0, 1, 1], [], []>} : vector<2x32xbf16>, vector<32x160xbf16>, vector<2x160xf32> -> vector<2x160xf32>
    %892 = vector.extract_strided_slice %891 {offsets = [0, 128], sizes = [2, 32], strides = [1, 1]} : vector<2x160xf32> to vector<2x32xf32>
    %c0_335 = arith.constant 0 : index
    %c0_336 = arith.constant 0 : index
    %c0_337 = arith.constant 0 : index
    %893 = vector.load %arg25[%c0_335, %c0_336, %c0_337] : memref<2x8x32xf32, #tpu.memory_space<vmem>>, vector<2x8x32xf32>
    %894 = vector.shape_cast %892 : vector<2x32xf32> to vector<2x1x32xf32>
    %895 = vector.broadcast %894 : vector<2x1x32xf32> to vector<2x8x32xf32>
    %896 = arith.addf %893, %895 : vector<2x8x32xf32>
    %897 = math.tanh %896 : vector<2x8x32xf32>
    %898 = vector.broadcast %624 : vector<1x1x32xf32> to vector<2x8x32xf32>
    %899 = arith.mulf %897, %898 : vector<2x8x32xf32>
    %cst_338 = arith.constant dense<0.000000e+00> : vector<2x8xf32>
    %900 = vector.multi_reduction <add>, %899, %cst_338 [2] : vector<2x8x32xf32> to vector<2x8xf32>
    %901 = arith.addf %900, %622 : vector<2x8xf32>
    %cst_339 = arith.constant dense<0xFF800000> : vector<2xf32>
    %902 = vector.multi_reduction <maximumf>, %901, %cst_339 [1] : vector<2x8xf32> to vector<2xf32>
    %903 = vector.shape_cast %902 : vector<2xf32> to vector<2x1xf32>
    %cst_340 = arith.constant 0.000000e+00 : f32
    %904 = vector.broadcast %cst_340 : f32 to vector<2x1xf32>
    %905 = arith.maximumf %903, %904 : vector<2x1xf32>
    %906 = vector.broadcast %905 : vector<2x1xf32> to vector<2x8xf32>
    %907 = arith.subf %901, %906 : vector<2x8xf32>
    %908 = math.exp %907 : vector<2x8xf32>
    %cst_341 = arith.constant dense<0.000000e+00> : vector<2xf32>
    %909 = vector.multi_reduction <add>, %908, %cst_341 [1] : vector<2x8xf32> to vector<2xf32>
    %910 = vector.shape_cast %909 : vector<2xf32> to vector<2x1xf32>
    %cst_342 = arith.constant 0.000000e+00 : f32
    %911 = vector.broadcast %cst_342 : f32 to vector<2x1xf32>
    %912 = arith.subf %911, %905 : vector<2x1xf32>
    %913 = math.exp %912 : vector<2x1xf32>
    %914 = arith.addf %910, %913 : vector<2x1xf32>
    %915 = math.log %914 : vector<2x1xf32>
    %916 = arith.addf %915, %905 : vector<2x1xf32>
    %917 = vector.broadcast %916 : vector<2x1xf32> to vector<2x8xf32>
    %918 = arith.subf %901, %917 : vector<2x8xf32>
    %cst_343 = arith.constant 0.000000e+00 : f32
    %919 = vector.broadcast %cst_343 : f32 to vector<2x1xf32>
    %920 = arith.subf %919, %916 : vector<2x1xf32>
    %921 = tpu.concatenate %918, %920 in 1 : vector<2x8xf32>, vector<2x1xf32> -> vector<2x9xf32>
    %922 = arith.index_cast %c4_i32_326 : i32 to index
    %c0_344 = arith.constant 0 : index
    %c0_345 = arith.constant 0 : index
    %923 = vector.load %arg20[%922, %c0_344, %c0_345] : memref<6x2x9xf32, #tpu.memory_space<vmem>>, vector<1x2x9xf32>
    %924 = vector.shape_cast %923 : vector<1x2x9xf32> to vector<2x9xf32>
    %925 = vector.shape_cast %921 : vector<2x9xf32> to vector<1x2x9xf32>
    tpu.vector_store %arg20[%922, %c0_344, %c0_345], %925 {strides = array<i32>} : memref<6x2x9xf32, #tpu.memory_space<vmem>>, vector<1x2x9xf32>,
    %c5_i32_346 = arith.constant 5 : i32
    %926 = arith.index_cast %c5_i32_346 : i32 to index
    %c0_347 = arith.constant 0 : index
    %c0_348 = arith.constant 0 : index
    %927 = vector.load %arg26[%926, %c0_347, %c0_348] : memref<6x2x128xf32, #tpu.memory_space<vmem>>, vector<1x2x128xf32>
    %928 = vector.shape_cast %927 : vector<1x2x128xf32> to vector<2x128xf32>
    %929 = vector.extract_strided_slice %891 {offsets = [0, 0], sizes = [2, 128], strides = [1, 1]} : vector<2x160xf32> to vector<2x128xf32>
    %930 = arith.addf %928, %929 : vector<2x128xf32>
    %931 = vector.extract_strided_slice %930 {offsets = [0, 0], sizes = [2, 96], strides = [1, 1]} : vector<2x128xf32> to vector<2x96xf32>
    %cst_349 = arith.constant 5.000000e-01 : f32
    %932 = vector.broadcast %cst_349 : f32 to vector<2x96xf32>
    %933 = arith.mulf %932, %931 : vector<2x96xf32>
    %934 = math.tanh %933 : vector<2x96xf32>
    %cst_350 = arith.constant 1.000000e+00 : f32
    %935 = vector.broadcast %cst_350 : f32 to vector<2x96xf32>
    %936 = arith.addf %934, %935 : vector<2x96xf32>
    %cst_351 = arith.constant 5.000000e-01 : f32
    %937 = vector.broadcast %cst_351 : f32 to vector<2x96xf32>
    %938 = arith.mulf %937, %936 : vector<2x96xf32>
    %939 = vector.extract_strided_slice %938 {offsets = [0, 0], sizes = [2, 32], strides = [1, 1]} : vector<2x96xf32> to vector<2x32xf32>
    %940 = vector.extract_strided_slice %938 {offsets = [0, 32], sizes = [2, 32], strides = [1, 1]} : vector<2x96xf32> to vector<2x32xf32>
    %941 = vector.extract_strided_slice %938 {offsets = [0, 64], sizes = [2, 32], strides = [1, 1]} : vector<2x96xf32> to vector<2x32xf32>
    %942 = vector.extract_strided_slice %930 {offsets = [0, 96], sizes = [2, 32], strides = [1, 1]} : vector<2x128xf32> to vector<2x32xf32>
    %943 = math.tanh %942 : vector<2x32xf32>
    %944 = arith.mulf %940, %886 : vector<2x32xf32>
    %945 = arith.mulf %939, %943 : vector<2x32xf32>
    %946 = arith.addf %944, %945 : vector<2x32xf32>
    %947 = math.tanh %946 : vector<2x32xf32>
    %948 = arith.mulf %941, %947 : vector<2x32xf32>
    %949 = arith.truncf %948 : vector<2x32xf32> to vector<2x32xbf16>
    %c0_352 = arith.constant 0 : index
    %c0_353 = arith.constant 0 : index
    %950 = vector.load %arg18[%c0_352, %c0_353] : memref<32x160xbf16, #tpu.memory_space<vmem>>, vector<32x160xbf16>
    %cst_354 = arith.constant dense<0.000000e+00> : vector<2x160xf32>
    %951 = tpu.matmul %949, %950, %cst_354 {dimension_numbers = #tpu.dot_dimension_numbers<[1], [0], [0], [1], [0, 0, 1, 1], [], []>} : vector<2x32xbf16>, vector<32x160xbf16>, vector<2x160xf32> -> vector<2x160xf32>
    %952 = vector.extract_strided_slice %951 {offsets = [0, 128], sizes = [2, 32], strides = [1, 1]} : vector<2x160xf32> to vector<2x32xf32>
    %c0_355 = arith.constant 0 : index
    %c0_356 = arith.constant 0 : index
    %c0_357 = arith.constant 0 : index
    %953 = vector.load %arg25[%c0_355, %c0_356, %c0_357] : memref<2x8x32xf32, #tpu.memory_space<vmem>>, vector<2x8x32xf32>
    %954 = vector.shape_cast %952 : vector<2x32xf32> to vector<2x1x32xf32>
    %955 = vector.broadcast %954 : vector<2x1x32xf32> to vector<2x8x32xf32>
    %956 = arith.addf %953, %955 : vector<2x8x32xf32>
    %957 = math.tanh %956 : vector<2x8x32xf32>
    %958 = vector.broadcast %624 : vector<1x1x32xf32> to vector<2x8x32xf32>
    %959 = arith.mulf %957, %958 : vector<2x8x32xf32>
    %cst_358 = arith.constant dense<0.000000e+00> : vector<2x8xf32>
    %960 = vector.multi_reduction <add>, %959, %cst_358 [2] : vector<2x8x32xf32> to vector<2x8xf32>
    %961 = arith.addf %960, %622 : vector<2x8xf32>
    %cst_359 = arith.constant dense<0xFF800000> : vector<2xf32>
    %962 = vector.multi_reduction <maximumf>, %961, %cst_359 [1] : vector<2x8xf32> to vector<2xf32>
    %963 = vector.shape_cast %962 : vector<2xf32> to vector<2x1xf32>
    %cst_360 = arith.constant 0.000000e+00 : f32
    %964 = vector.broadcast %cst_360 : f32 to vector<2x1xf32>
    %965 = arith.maximumf %963, %964 : vector<2x1xf32>
    %966 = vector.broadcast %965 : vector<2x1xf32> to vector<2x8xf32>
    %967 = arith.subf %961, %966 : vector<2x8xf32>
    %968 = math.exp %967 : vector<2x8xf32>
    %cst_361 = arith.constant dense<0.000000e+00> : vector<2xf32>
    %969 = vector.multi_reduction <add>, %968, %cst_361 [1] : vector<2x8xf32> to vector<2xf32>
    %970 = vector.shape_cast %969 : vector<2xf32> to vector<2x1xf32>
    %cst_362 = arith.constant 0.000000e+00 : f32
    %971 = vector.broadcast %cst_362 : f32 to vector<2x1xf32>
    %972 = arith.subf %971, %965 : vector<2x1xf32>
    %973 = math.exp %972 : vector<2x1xf32>
    %974 = arith.addf %970, %973 : vector<2x1xf32>
    %975 = math.log %974 : vector<2x1xf32>
    %976 = arith.addf %975, %965 : vector<2x1xf32>
    %977 = vector.broadcast %976 : vector<2x1xf32> to vector<2x8xf32>
    %978 = arith.subf %961, %977 : vector<2x8xf32>
    %cst_363 = arith.constant 0.000000e+00 : f32
    %979 = vector.broadcast %cst_363 : f32 to vector<2x1xf32>
    %980 = arith.subf %979, %976 : vector<2x1xf32>
    %981 = tpu.concatenate %978, %980 in 1 : vector<2x8xf32>, vector<2x1xf32> -> vector<2x9xf32>
    %982 = arith.index_cast %c5_i32_346 : i32 to index
    %c0_364 = arith.constant 0 : index
    %c0_365 = arith.constant 0 : index
    %983 = vector.load %arg20[%982, %c0_364, %c0_365] : memref<6x2x9xf32, #tpu.memory_space<vmem>>, vector<1x2x9xf32>
    %984 = vector.shape_cast %983 : vector<1x2x9xf32> to vector<2x9xf32>
    %985 = vector.shape_cast %981 : vector<2x9xf32> to vector<1x2x9xf32>
    tpu.vector_store %arg20[%982, %c0_364, %c0_365], %985 {strides = array<i32>} : memref<6x2x9xf32, #tpu.memory_space<vmem>>, vector<1x2x9xf32>,
    %c6_i32_366 = arith.constant 6 : i32
    return
  }
}

</mosaic_0001>

<llo_original>
// kernel: tpu_custom_call.1
$region0: #{tpu_custom_call.1}
  #allocation0 [shape = 'u32[]', space=smem, size = 0x4, offset = 0x4, fixed_abs, tag = 'smem constant byte address 0x4 - core index']
  #allocation1 [shape = 'u32[72,128]{1,0:T(1,128)}', space=vmem, size = 0x9000, scoped, tag = 'internal scratch']
  #allocation2 [shape = 'f32[8,2,128]{2,1,0:T(2,128)}', space=vmem, size = 0x2000, scoped, tag = 'scratch operand']
  #allocation3 [shape = 'f32[8,2,128]{2,1,0:T(2,128)}', space=vmem, size = 0x2000, scoped, tag = 'scratch operand']
  #allocation4 [shape = 'f32[8,2,32]{2,1,0:T(2,128)}', space=vmem, size = 0x2000, scoped, tag = 'scratch operand']
  #allocation5 [shape = 'f32[8,2,32]{2,1,0:T(2,128)}', space=vmem, size = 0x2000, scoped, tag = 'scratch operand']
  #allocation6 [shape = 'f32[2,8,32]{2,1,0:T(8,128)}', space=vmem, size = 0x2000, scoped, tag = 'scratch operand']
  #allocation7 [shape = 'f32[6,2,128]{2,1,0:T(2,128)}', space=vmem, size = 0x1800, scoped, tag = 'scratch operand']
  %s0 = inlined_call_operand.vmem [shape: f32[8,2], index: 0, kind: input, shape index: {}]
  %s1 = inlined_call_operand.vmem [shape: f32[2,8], index: 1, kind: input, shape index: {}]
  %s2 = inlined_call_operand.vmem [shape: f32[2,1], index: 2, kind: input, shape index: {}]
  %s3 = inlined_call_operand.vmem [shape: s32[6,2], index: 3, kind: input, shape index: {}]
  %s4 = inlined_call_operand.vmem [shape: f32[1,32], index: 4, kind: input, shape index: {}]
  %s5 = inlined_call_operand.vmem [shape: f32[1,32], index: 5, kind: input, shape index: {}]
  %s6 = inlined_call_operand.vmem [shape: f32[1,32], index: 6, kind: input, shape index: {}]
  %s7 = inlined_call_operand.vmem [shape: f32[1,32], index: 7, kind: input, shape index: {}]
  %s8 = inlined_call_operand.hbm [shape: bf16[32,256], index: 8, kind: input, shape index: {}]
  %s9 = inlined_call_operand.vmem [shape: f32[1,256], index: 9, kind: input, shape index: {}]
  %s10 = inlined_call_operand.vmem [shape: bf16[32,128], index: 10, kind: input, shape index: {}]
  %s11 = inlined_call_operand.hbm [shape: bf16[32,128], index: 11, kind: input, shape index: {}]
  %s12 = inlined_call_operand.hbm [shape: bf16[32,64], index: 12, kind: input, shape index: {}]
  %s13 = inlined_call_operand.hbm [shape: bf16[32,64], index: 13, kind: input, shape index: {}]
  %s14 = inlined_call_operand.vmem [shape: f32[1,64], index: 14, kind: input, shape index: {}]
  %s15 = inlined_call_operand.hbm [shape: bf16[32,128], index: 15, kind: input, shape index: {}]
  %s16 = inlined_call_operand.vmem [shape: f32[1,128], index: 16, kind: input, shape index: {}]
  %s17 = inlined_call_operand.vmem [shape: f32[1,32], index: 17, kind: input, shape index: {}]
  %s18 = inlined_call_operand.hbm [shape: bf16[32,160], index: 18, kind: input, shape index: {}]
  %s19 = inlined_call_operand.vmem [shape: f32[1,32], index: 19, kind: input, shape index: {}]
  %s20 = inlined_call_operand.hbm [shape: f32[6,2,9], index: 20, kind: output, shape index: {}]
  %s21 = sld [smem:[#allocation0]]
  $region114: #{tpu_custom_call.1} parent=0
    _
  %s23 = ssub.s32 1, %s21
  %s24 = scalar_select 0, %s23, %s21
  $region1: #{tpu_custom_call.1} parent=0
    #allocation8 [shape = 'u8[16384]{0}', space=vmem, size = 0x4000, scoped, tag = 'input window, operand 8, single buffered']
    #allocation9 [shape = 's32[1]{0}', space=sflag, size = 0x4, scoped, tag = 'scoped memory for tpu_custom_call.1']
    #allocation10 [shape = 's32[1]{0}', space=sflag, size = 0x4, scoped, tag = 'scoped memory for tpu_custom_call.1']
    #allocation11 [shape = 'u8[8192]{0}', space=vmem, size = 0x2000, scoped, tag = 'input window, operand 11, single buffered']
    #allocation12 [shape = 's32[1]{0}', space=sflag, size = 0x4, scoped, tag = 'scoped memory for tpu_custom_call.1']
    #allocation13 [shape = 'u8[8192]{0}', space=vmem, size = 0x2000, scoped, tag = 'input window, operand 12, single buffered']
    #allocation14 [shape = 'u8[8192]{0}', space=vmem, size = 0x2000, scoped, tag = 'input window, operand 13, single buffered']
    #allocation15 [shape = 's32[1]{0}', space=sflag, size = 0x4, scoped, tag = 'scoped memory for tpu_custom_call.1']
    #allocation16 [shape = 'u8[8192]{0}', space=vmem, size = 0x2000, scoped, tag = 'input window, operand 15, single buffered']
    #allocation17 [shape = 'u8[16384]{0}', space=vmem, size = 0x4000, scoped, tag = 'input window, operand 18, single buffered']
    #allocation18 [shape = 's32[1]{0}', space=sflag, size = 0x4, scoped, tag = 'scoped memory for tpu_custom_call.1']
    #allocation19 [shape = 'u8[6144]{0}', space=vmem, size = 0x1800, scoped, tag = 'output window, operand 0, single buffered']
    %25 = vsyncpa [#allocation9], 0
    %26 = vsyncpa [#allocation12], 0
    %27 = vsyncpa [#allocation15], 0
    %28 = vsyncpa [#allocation18], 0
    %29 = vsyncpa [#allocation10], 0
    // Predicated region
    $region2: #{tpu_custom_call.1} parent=1 // pred_check
      _
    $region3: #{tpu_custom_call.1} parent=1 // pred_check_branch
      %31 = sbr.rel (0) target = $region5
    $region4: #{tpu_custom_call.1} parent=1 // pred_region
      _
    $region5: #{tpu_custom_call.1} parent=1 // pred_fallthru
      _
    // Predicated region
    $region6: #{tpu_custom_call.1} parent=1 // pred_check
      _
    $region7: #{tpu_custom_call.1} parent=1 // pred_check_branch
      %33 = sbr.rel (0) target = $region9
    $region8: #{tpu_custom_call.1} parent=1 // pred_region
      _
    $region9: #{tpu_custom_call.1} parent=1 // pred_fallthru
      _
    // Predicated region
    $region10: #{tpu_custom_call.1} parent=1 // pred_check
      _
    $region11: #{tpu_custom_call.1} parent=1 // pred_check_branch
      %35 = sbr.rel (0) target = $region13
    $region12: #{tpu_custom_call.1} parent=1 // pred_region
      _
    $region13: #{tpu_custom_call.1} parent=1 // pred_fallthru
      _
    // Predicated region
    $region14: #{tpu_custom_call.1} parent=1 // pred_check
      _
    $region15: #{tpu_custom_call.1} parent=1 // pred_check_branch
      %37 = sbr.rel (0) target = $region17
    $region16: #{tpu_custom_call.1} parent=1 // pred_region
      _
    $region17: #{tpu_custom_call.1} parent=1 // pred_fallthru
      _
    // Predicated region
    $region18: #{tpu_custom_call.1} parent=1 // pred_check
      _
    $region19: #{tpu_custom_call.1} parent=1 // pred_check_branch
      %39 = sbr.rel (0) target = $region21
    $region20: #{tpu_custom_call.1} parent=1 // pred_region
      _
    $region21: #{tpu_custom_call.1} parent=1 // pred_fallthru
      _
    // Predicated region
    $region22: #{tpu_custom_call.1} parent=1 // pred_check
      _
    $region23: #{tpu_custom_call.1} parent=1 // pred_check_branch
      %41 = sbr.rel (0) target = $region25
    $region24: #{tpu_custom_call.1} parent=1 // pred_region
      _
    $region25: #{tpu_custom_call.1} parent=1 // pred_fallthru
      _
    // Predicated region
    $region26: #{tpu_custom_call.1} parent=1 // pred_check
      _
    $region27: #{tpu_custom_call.1} parent=1 // pred_check_branch
      %43 = sbr.rel (0) target = $region29
    $region28: #{tpu_custom_call.1} parent=1 // pred_region
      _
    $region29: #{tpu_custom_call.1} parent=1 // pred_fallthru
      _
    // Predicated region
    $region30: #{tpu_custom_call.1} parent=1 // pred_check
      _
    $region31: #{tpu_custom_call.1} parent=1 // pred_check_branch
      %45 = sbr.rel (0) target = $region33
    $region32: #{tpu_custom_call.1} parent=1 // pred_region
      _
    $region33: #{tpu_custom_call.1} parent=1 // pred_fallthru
      _
    // Predicated region
    $region34: #{tpu_custom_call.1} parent=1 // pred_check
      _
    $region35: #{tpu_custom_call.1} parent=1 // pred_check_branch
      %47 = sbr.rel (0) target = $region37
    $region36: #{tpu_custom_call.1} parent=1 // pred_region
      %49 = vsyncadd [#allocation9], 0
      %s50 = sshll.u32 %s8, 4
      %s51 = int_to_ptr.hbm [resolvable:$true] %s50
      %s52 = sshll.u32 [#allocation8], 4
      %s53 = int_to_ptr.vmem [resolvable:$true] %s52
      %58 = dma.hbm_to_vmem [thread:$0]  %s51, 512, %s53, [#allocation9], 128, 128, 8
    $region37: #{tpu_custom_call.1} parent=1 // pred_fallthru
      _
    // Predicated region
    $region38: #{tpu_custom_call.1} parent=1 // pred_check
      _
    $region39: #{tpu_custom_call.1} parent=1 // pred_check_branch
      %60 = sbr.rel (0) target = $region41
    $region40: #{tpu_custom_call.1} parent=1 // pred_region
      _
    $region41: #{tpu_custom_call.1} parent=1 // pred_fallthru
      _
    // Predicated region
    $region42: #{tpu_custom_call.1} parent=1 // pred_check
      _
    $region43: #{tpu_custom_call.1} parent=1 // pred_check_branch
      %62 = sbr.rel (0) target = $region45
    $region44: #{tpu_custom_call.1} parent=1 // pred_region
      _
    $region45: #{tpu_custom_call.1} parent=1 // pred_fallthru
      _
    // Predicated region
    $region46: #{tpu_custom_call.1} parent=1 // pred_check
      _
    $region47: #{tpu_custom_call.1} parent=1 // pred_check_branch
      %64 = sbr.rel (0) target = $region49
    $region48: #{tpu_custom_call.1} parent=1 // pred_region
      %66 = vsyncadd [#allocation12], 0
      %s67 = sshll.u32 %s11, 4
      %s68 = int_to_ptr.hbm [resolvable:$true] %s67
      %s69 = sshll.u32 [#allocation11], 4
      %s70 = int_to_ptr.vmem [resolvable:$true] %s69
      %75 = dma.hbm_to_vmem [thread:$0]  %s68, 256, %s70, [#allocation12], 64, 64, 4
    $region49: #{tpu_custom_call.1} parent=1 // pred_fallthru
      _
    // Predicated region
    $region50: #{tpu_custom_call.1} parent=1 // pred_check
      _
    $region51: #{tpu_custom_call.1} parent=1 // pred_check_branch
      %77 = sbr.rel (0) target = $region53
    $region52: #{tpu_custom_call.1} parent=1 // pred_region
      %79 = vsyncadd [#allocation12], 0
      %s80 = sshll.u32 %s12, 4
      %s81 = int_to_ptr.hbm [resolvable:$true] %s80
      %s82 = sshll.u32 [#allocation13], 4
      %s83 = int_to_ptr.vmem [resolvable:$true] %s82
      %88 = dma.hbm_to_vmem [thread:$0]  %s81, 256, %s83, [#allocation12], 64, 64, 4
    $region53: #{tpu_custom_call.1} parent=1 // pred_fallthru
      _
    // Predicated region
    $region54: #{tpu_custom_call.1} parent=1 // pred_check
      _
    $region55: #{tpu_custom_call.1} parent=1 // pred_check_branch
      %90 = sbr.rel (0) target = $region57
    $region56: #{tpu_custom_call.1} parent=1 // pred_region
      %92 = vsyncadd [#allocation15], 0
      %s93 = sshll.u32 %s13, 4
      %s94 = int_to_ptr.hbm [resolvable:$true] %s93
      %s95 = sshll.u32 [#allocation14], 4
      %s96 = int_to_ptr.vmem [resolvable:$true] %s95
      %101 = dma.hbm_to_vmem [thread:$0]  %s94, 256, %s96, [#allocation15], 64, 64, 4
    $region57: #{tpu_custom_call.1} parent=1 // pred_fallthru
      _
    // Predicated region
    $region58: #{tpu_custom_call.1} parent=1 // pred_check
      _
    $region59: #{tpu_custom_call.1} parent=1 // pred_check_branch
      %103 = sbr.rel (0) target = $region61
    $region60: #{tpu_custom_call.1} parent=1 // pred_region
      _
    $region61: #{tpu_custom_call.1} parent=1 // pred_fallthru
      _
    // Predicated region
    $region62: #{tpu_custom_call.1} parent=1 // pred_check
      _
    $region63: #{tpu_custom_call.1} parent=1 // pred_check_branch
      %105 = sbr.rel (0) target = $region65
    $region64: #{tpu_custom_call.1} parent=1 // pred_region
      %107 = vsyncadd [#allocation15], 0
      %s108 = sshll.u32 %s15, 4
      %s109 = int_to_ptr.hbm [resolvable:$true] %s108
      %s110 = sshll.u32 [#allocation16], 4
      %s111 = int_to_ptr.vmem [resolvable:$true] %s110
      %116 = dma.hbm_to_vmem [thread:$0]  %s109, 256, %s111, [#allocation15], 64, 64, 4
    $region65: #{tpu_custom_call.1} parent=1 // pred_fallthru
      _
    // Predicated region
    $region66: #{tpu_custom_call.1} parent=1 // pred_check
      _
    $region67: #{tpu_custom_call.1} parent=1 // pred_check_branch
      %118 = sbr.rel (0) target = $region69
    $region68: #{tpu_custom_call.1} parent=1 // pred_region
      _
    $region69: #{tpu_custom_call.1} parent=1 // pred_fallthru
      _
    // Predicated region
    $region70: #{tpu_custom_call.1} parent=1 // pred_check
      _
    $region71: #{tpu_custom_call.1} parent=1 // pred_check_branch
      %120 = sbr.rel (0) target = $region73
    $region72: #{tpu_custom_call.1} parent=1 // pred_region
      _
    $region73: #{tpu_custom_call.1} parent=1 // pred_fallthru
      _
    // Predicated region
    $region74: #{tpu_custom_call.1} parent=1 // pred_check
      _
    $region75: #{tpu_custom_call.1} parent=1 // pred_check_branch
      %122 = sbr.rel (0) target = $region77
    $region76: #{tpu_custom_call.1} parent=1 // pred_region
      %124 = vsyncadd [#allocation18], 0
      %s125 = sshll.u32 %s18, 4
      %s126 = int_to_ptr.hbm [resolvable:$true] %s125
      %s127 = sshll.u32 [#allocation17], 4
      %s128 = int_to_ptr.vmem [resolvable:$true] %s127
      %133 = dma.hbm_to_vmem [thread:$0]  %s126, 512, %s128, [#allocation18], 128, 128, 8
    $region77: #{tpu_custom_call.1} parent=1 // pred_fallthru
      _
    // Predicated region
    $region78: #{tpu_custom_call.1} parent=1 // pred_check
      _
    $region79: #{tpu_custom_call.1} parent=1 // pred_check_branch
      %135 = sbr.rel (0) target = $region81
    $region80: #{tpu_custom_call.1} parent=1 // pred_region
      _
    $region81: #{tpu_custom_call.1} parent=1 // pred_fallthru
      _
    // Predicated region
    $region82: #{tpu_custom_call.1} parent=1 // pred_check
      _
    $region83: #{tpu_custom_call.1} parent=1 // pred_check_branch
      %137 = sbr.rel (0) target = $region85
    $region84: #{tpu_custom_call.1} parent=1 // pred_region
      %139 = dma.done [#allocation9], 512
    $region85: #{tpu_custom_call.1} parent=1 // pred_fallthru
      _
    // Predicated region
    $region86: #{tpu_custom_call.1} parent=1 // pred_check
      _
    $region87: #{tpu_custom_call.1} parent=1 // pred_check_branch
      %141 = sbr.rel (0) target = $region89
    $region88: #{tpu_custom_call.1} parent=1 // pred_region
      %143 = dma.done [#allocation12], 256
    $region89: #{tpu_custom_call.1} parent=1 // pred_fallthru
      _
    // Predicated region
    $region90: #{tpu_custom_call.1} parent=1 // pred_check
      _
    $region91: #{tpu_custom_call.1} parent=1 // pred_check_branch
      %145 = sbr.rel (0) target = $region93
    $region92: #{tpu_custom_call.1} parent=1 // pred_region
      %147 = dma.done [#allocation12], 256
    $region93: #{tpu_custom_call.1} parent=1 // pred_fallthru
      _
    // Predicated region
    $region94: #{tpu_custom_call.1} parent=1 // pred_check
      _
    $region95: #{tpu_custom_call.1} parent=1 // pred_check_branch
      %149 = sbr.rel (0) target = $region97
    $region96: #{tpu_custom_call.1} parent=1 // pred_region
      %151 = dma.done [#allocation15], 256
    $region97: #{tpu_custom_call.1} parent=1 // pred_fallthru
      _
    // Predicated region
    $region98: #{tpu_custom_call.1} parent=1 // pred_check
      _
    $region99: #{tpu_custom_call.1} parent=1 // pred_check_branch
      %153 = sbr.rel (0) target = $region101
    $region100: #{tpu_custom_call.1} parent=1 // pred_region
      %155 = dma.done [#allocation15], 256
    $region101: #{tpu_custom_call.1} parent=1 // pred_fallthru
      _
    // Predicated region
    $region102: #{tpu_custom_call.1} parent=1 // pred_check
      _
    $region103: #{tpu_custom_call.1} parent=1 // pred_check_branch
      %157 = sbr.rel (0) target = $region105
    $region104: #{tpu_custom_call.1} parent=1 // pred_region
      %159 = dma.done [#allocation18], 512
    $region105: #{tpu_custom_call.1} parent=1 // pred_fallthru
      _
    %v161 = vld [vmem:[%s0] sm:$0xff]
    %v162 = vld [vmem:[%s2] sm:$0x3]
    %v163 = vld [vmem:[%s6] sm:$0x1]
    %165 = vset.pattern.permute.xlu0 0
    %166 = vperm.xlu0 %165, %v162
    %v167 = vpop.permute.xlu0 %166
    %v170 = vperm.slane %v163, 0
    %v172 = vmul.f32 %v167, %v170
    %v173 = vld [vmem:[%s7] sm:$0x1]
    %v175 = vperm.slane %v173, 0
    %v177 = vadd.f32 %v172, %v175
    %v178 = vperm.slane %v161, 0
    %v179 = vlaneseq
    %v180 = vshrl.u32 %v179, 7
    %182 = vset.pattern.permute.xlu0 %v180
    %183 = vperm.xlu0 %182, %v178
    %v184 = vpop.permute.xlu0 %183
    %v185 = vperm.slane %v161, 1
    %v186 = vlaneseq
    %v187 = vshrl.u32 %v186, 7
    %189 = vset.pattern.permute.xlu0 %v187
    %190 = vperm.xlu0 %189, %v185
    %v191 = vpop.permute.xlu0 %190
    %v192 = vperm.slane %v161, 2
    %v193 = vlaneseq
    %v194 = vshrl.u32 %v193, 7
    %196 = vset.pattern.permute.xlu0 %v194
    %197 = vperm.xlu0 %196, %v192
    %v198 = vpop.permute.xlu0 %197
    %v199 = vperm.slane %v161, 3
    %v200 = vlaneseq
    %v201 = vshrl.u32 %v200, 7
    %203 = vset.pattern.permute.xlu0 %v201
    %204 = vperm.xlu0 %203, %v199
    %v205 = vpop.permute.xlu0 %204
    %v206 = vperm.slane %v161, 4
    %v207 = vlaneseq
    %v208 = vshrl.u32 %v207, 7
    %210 = vset.pattern.permute.xlu0 %v208
    %211 = vperm.xlu0 %210, %v206
    %v212 = vpop.permute.xlu0 %211
    %v213 = vperm.slane %v161, 5
    %v214 = vlaneseq
    %v215 = vshrl.u32 %v214, 7
    %217 = vset.pattern.permute.xlu0 %v215
    %218 = vperm.xlu0 %217, %v213
    %v219 = vpop.permute.xlu0 %218
    %v220 = vperm.slane %v161, 6
    %v221 = vlaneseq
    %v222 = vshrl.u32 %v221, 7
    %224 = vset.pattern.permute.xlu0 %v222
    %225 = vperm.xlu0 %224, %v220
    %v226 = vpop.permute.xlu0 %225
    %v227 = vperm.slane %v161, 7
    %v228 = vlaneseq
    %v229 = vshrl.u32 %v228, 7
    %231 = vset.pattern.permute.xlu0 %v229
    %232 = vperm.xlu0 %231, %v227
    %v233 = vpop.permute.xlu0 %232
    %v234 = vld [vmem:[%s4] sm:$0x1]
    %v236 = vperm.slane %v234, 0
    %v238 = vmul.f32 %v184, %v236
    %v239 = vmul.f32 %v191, %v236
    %v240 = vmul.f32 %v198, %v236
    %v241 = vmul.f32 %v205, %v236
    %v242 = vmul.f32 %v212, %v236
    %v243 = vmul.f32 %v219, %v236
    %v244 = vmul.f32 %v226, %v236
    %v245 = vmul.f32 %v233, %v236
    %v246 = vld [vmem:[%s5] sm:$0x1]
    %v248 = vperm.slane %v246, 0
    %v250 = vadd.f32 %v238, %v248
    %v251 = vadd.f32 %v239, %v248
    %v252 = vadd.f32 %v240, %v248
    %v253 = vadd.f32 %v241, %v248
    %v254 = vadd.f32 %v242, %v248
    %v255 = vadd.f32 %v243, %v248
    %v256 = vadd.f32 %v244, %v248
    %v257 = vadd.f32 %v245, %v248
    %v258 = vadd.f32 %v250, %v177
    %v259 = vadd.f32 %v251, %v177
    %v260 = vadd.f32 %v252, %v177
    %v261 = vadd.f32 %v253, %v177
    %v262 = vadd.f32 %v254, %v177
    %v263 = vadd.f32 %v255, %v177
    %v264 = vadd.f32 %v256, %v177
    %v265 = vadd.f32 %v257, %v177
    %274 = vst [vmem:[#allocation1] ss:$4 sm:$0xff] %v258
    %s275 = scalar_lea.vmem [#allocation1], 1
    %276 = vst [vmem:[%s275] ss:$4 sm:$0xff] %v259
    %s277 = scalar_lea.vmem [#allocation1], 2
    %278 = vst [vmem:[%s277] ss:$4 sm:$0xff] %v260
    %s279 = scalar_lea.vmem [#allocation1], 3
    %280 = vst [vmem:[%s279] ss:$4 sm:$0xff] %v261
    %s281 = scalar_lea.vmem [#allocation1], 32
    %282 = vst [vmem:[%s281] ss:$4 sm:$0xff] %v262
    %s283 = scalar_lea.vmem [#allocation1], 33
    %284 = vst [vmem:[%s283] ss:$4 sm:$0xff] %v263
    %s285 = scalar_lea.vmem [#allocation1], 34
    %286 = vst [vmem:[%s285] ss:$4 sm:$0xff] %v264
    %s287 = scalar_lea.vmem [#allocation1], 35
    %288 = vst [vmem:[%s287] ss:$4 sm:$0xff] %v265
    %v289 = vld.sshfl [vmem:[#allocation1] sm:$0xff pattern:$0x73625140]
    %v290 = vld.sshfl [vmem:[#allocation1 + $0x20] sm:$0xff pattern:$0x73625140]
    %v293 = vpack.c.bf16 %v290, %v289
    %v294 = vld [vmem:[#allocation8] sm:$0xff]
    %v295 = vld [vmem:[#allocation8 + $0x8] sm:$0xff]
    %v296 = vld [vmem:[#allocation8 + $0x10] sm:$0xff]
    %v297 = vld [vmem:[#allocation8 + $0x18] sm:$0xff]
    %v298 = vld [vmem:[%s9] sm:$0x3]
    %v300 = vperm.slane %v298, 0
    %v301 = vperm.slane %v298, 1
    %v308 = vunpack.c.l.b16 %v294
    %v309 = vunpack.c.h.b16 %v294
    %v310 = vunpack.c.l.b16 %v295
    %v311 = vunpack.c.h.b16 %v295
    %v312 = vunpack.c.l.b16 %v296
    %v313 = vunpack.c.h.b16 %v296
    %v314 = vunpack.c.l.b16 %v297
    %v315 = vunpack.c.h.b16 %v297
    %v316 = vpack.c.b16 %v310, %v308
    %v317 = vpack.c.b16 %v311, %v309
    %v318 = vpack.c.b16 %v314, %v312
    %v319 = vpack.c.b16 %v315, %v313
    %vm324 = vcmask 261120
    %v326 = vsel %vm324, %v293, 0
    %328 = vmatpush.bf16.msra.mxu0 0
    %329 = vmatpush.bf16.msra.mxu0 0
    %330 = vmatpush.bf16.msra.mxu0 0
    %331 = vmatpush.bf16.msra.mxu0 0
    %332 = vmatpush.bf16.msra.mxu0 0
    %333 = vmatpush.bf16.msra.mxu0 0
    %334 = vmatpush.bf16.msra.mxu0 %v318
    %335 = vmatpush.bf16.msra.mxu0 %v316
    %336 = vmatmul.bf16.gmra.mxu0 %v326
    %v337 = vpop.f32.mrf.mxu0
    %v338 = vadd.f32 %v300, %v337
    %v339 = vpop.f32.mrf.mxu0
    %v340 = vadd.f32 %v300, %v339
    %341 = vdwg.mxu0
    %342 = vmatpush.bf16.msra.mxu0 0
    %343 = vmatpush.bf16.msra.mxu0 0
    %344 = vmatpush.bf16.msra.mxu0 0
    %345 = vmatpush.bf16.msra.mxu0 0
    %346 = vmatpush.bf16.msra.mxu0 0
    %347 = vmatpush.bf16.msra.mxu0 0
    %348 = vmatpush.bf16.msra.mxu0 %v319
    %349 = vmatpush.bf16.msra.mxu0 %v317
    %350 = vmatmul.bf16.gmra.mxu0 %v326
    %v351 = vpop.f32.mrf.mxu0
    %v352 = vadd.f32 %v301, %v351
    %v353 = vpop.f32.mrf.mxu0
    %v354 = vadd.f32 %v301, %v353
    %355 = vdwg.mxu0
    %v358 = vrot.slane %v338, 2
    %v359 = vrot.slane %v338, 4
    %v360 = vrot.slane %v338, 6
    %v361 = vrot.slane %v340, 2
    %v362 = vrot.slane %v340, 4
    %v363 = vrot.slane %v340, 6
    %370 = vst [vmem:[#allocation2] sm:$0x3] %v338
    %371 = vst [vmem:[#allocation2 + $0x2] sm:$0x3] %v358
    %372 = vst [vmem:[#allocation2 + $0x4] sm:$0x3] %v359
    %373 = vst [vmem:[#allocation2 + $0x6] sm:$0x3] %v360
    %374 = vst [vmem:[#allocation2 + $0x8] sm:$0x3] %v340
    %375 = vst [vmem:[#allocation2 + $0xa] sm:$0x3] %v361
    %376 = vst [vmem:[#allocation2 + $0xc] sm:$0x3] %v362
    %377 = vst [vmem:[#allocation2 + $0xe] sm:$0x3] %v363
    %v380 = vrot.slane %v352, 2
    %v381 = vrot.slane %v352, 4
    %v382 = vrot.slane %v352, 6
    %v383 = vrot.slane %v354, 2
    %v384 = vrot.slane %v354, 4
    %v385 = vrot.slane %v354, 6
    %392 = vst [vmem:[#allocation3] sm:$0x3] %v352
    %393 = vst [vmem:[#allocation3 + $0x2] sm:$0x3] %v380
    %394 = vst [vmem:[#allocation3 + $0x4] sm:$0x3] %v381
    %395 = vst [vmem:[#allocation3 + $0x6] sm:$0x3] %v382
    %396 = vst [vmem:[#allocation3 + $0x8] sm:$0x3] %v354
    %397 = vst [vmem:[#allocation3 + $0xa] sm:$0x3] %v383
    %398 = vst [vmem:[#allocation3 + $0xc] sm:$0x3] %v384
    %399 = vst [vmem:[#allocation3 + $0xe] sm:$0x3] %v385
    %v400 = vld [vmem:[#allocation2] sm:$0x3]
    %v401 = vld [vmem:[%s10] sm:$0xf]
    %v402 = vld [vmem:[%s10 + $0x4] sm:$0xf]
    %v403 = vld [vmem:[%s10 + $0x8] sm:$0xf]
    %v404 = vld [vmem:[%s10 + $0xc] sm:$0xf]
    %v409 = vunpack.c.l.b16 %v401
    %v410 = vunpack.c.l.b16 %v402
    %v411 = vunpack.c.l.b16 %v403
    %v412 = vunpack.c.l.b16 %v404
    %v413 = vpack.c.b16 %v410, %v409
    %v414 = vpack.c.b16 %v412, %v411
    %v418 = vsel %vm324, 0, 0
    %420 = vmatpush.bf16.msra.mxu0 0
    %421 = vmatpush.bf16.msra.mxu0 0
    %422 = vmatpush.bf16.msra.mxu0 0
    %423 = vmatpush.bf16.msra.mxu0 0
    %424 = vmatpush.bf16.msra.mxu0 0
    %425 = vmatpush.bf16.msra.mxu0 0
    %426 = vmatpush.bf16.msra.mxu0 %v414
    %427 = vmatpush.bf16.msra.mxu0 %v413
    %428 = vmatmul.bf16.gmra.mxu0 %v418
    %v429 = vpop.f32.mrf.mxu0
    %v430 = vadd.f32 0.0, %v429
    %v431 = vpop.f32.mrf.mxu0
    %432 = vdwg.mxu0
    %v433 = vadd.f32 %v400, %v430
    %v434 = vmul.f32 %v433, 0.5
    %v435 = vtanh.pop %v434
    %v436 = vadd.f32 %v435, 1.0
    %v437 = vmul.f32 %v436, 0.5
    %v438 = vtanh.pop %v433
    %v439 = vmul.f32 %v437, 0.0
    %441 = vrot.lane.b32.xlu0 %v438, 32
    %v442 = vpop.permute.xlu0 %441
    %v444 = vmul.f32 %v437, %v442
    %446 = vrot.lane.b32.xlu0 %v444, 32
    %v447 = vpop.permute.xlu0 %446
    %v449 = vadd.f32 %v439, %v447
    %v450 = vtanh.pop %v449
    %452 = vrot.lane.b32.xlu0 %v450, 32
    %v453 = vpop.permute.xlu0 %452
    %v455 = vmul.f32 %v437, %v453
    %457 = vrot.lane.b32.xlu0 %v455, 64
    %v458 = vpop.permute.xlu0 %457
    %vm460 = vcmask 254976
    %461 = vst.msk [vmem:[#allocation4] sm:$0x3] %vm460, %v458
    %s462 = scalar_lea.vmem [#allocation3], 14
    %v463 = vld [vmem:[%s462] sm:$0x3]
    %v464 = vld [vmem:[#allocation11] sm:$0xf]
    %v465 = vld [vmem:[#allocation11 + $0x4] sm:$0xf]
    %v466 = vld [vmem:[#allocation11 + $0x8] sm:$0xf]
    %v467 = vld [vmem:[#allocation11 + $0xc] sm:$0xf]
    %v472 = vunpack.c.l.b16 %v464
    %v473 = vunpack.c.l.b16 %v465
    %v474 = vunpack.c.l.b16 %v466
    %v475 = vunpack.c.l.b16 %v467
    %v476 = vpack.c.b16 %v473, %v472
    %v477 = vpack.c.b16 %v475, %v474
    %480 = vmatpush.bf16.msra.mxu0 0
    %481 = vmatpush.bf16.msra.mxu0 0
    %482 = vmatpush.bf16.msra.mxu0 0
    %483 = vmatpush.bf16.msra.mxu0 0
    %484 = vmatpush.bf16.msra.mxu0 0
    %485 = vmatpush.bf16.msra.mxu0 0
    %486 = vmatpush.bf16.msra.mxu0 %v477
    %487 = vmatpush.bf16.msra.mxu0 %v476
    %488 = vmatmul.bf16.gmra.mxu0 %v418
    %v489 = vpop.f32.mrf.mxu0
    %v490 = vadd.f32 0.0, %v489
    %v491 = vpop.f32.mrf.mxu0
    %492 = vdwg.mxu0
    %v493 = vadd.f32 %v463, %v490
    %v494 = vmul.f32 %v493, 0.5
    %v495 = vtanh.pop %v494
    %v496 = vadd.f32 %v495, 1.0
    %v497 = vmul.f32 %v496, 0.5
    %v498 = vtanh.pop %v493
    %v499 = vmul.f32 %v497, 0.0
    %501 = vrot.lane.b32.xlu0 %v498, 32
    %v502 = vpop.permute.xlu0 %501
    %v504 = vmul.f32 %v497, %v502
    %506 = vrot.lane.b32.xlu0 %v504, 32
    %v507 = vpop.permute.xlu0 %506
    %v509 = vadd.f32 %v499, %v507
    %v510 = vtanh.pop %v509
    %512 = vrot.lane.b32.xlu0 %v510, 32
    %v513 = vpop.permute.xlu0 %512
    %v515 = vmul.f32 %v497, %v513
    %517 = vrot.lane.b32.xlu0 %v515, 64
    %v518 = vpop.permute.xlu0 %517
    %s520 = scalar_lea.vmem [#allocation5], 14
    %521 = vst.msk [vmem:[%s520] sm:$0x3] %vm460, %v518
    %s522 = scalar_lea.vmem [#allocation2], 2
    %v523 = vld [vmem:[%s522] sm:$0x3]
    %v524 = vpack.c.bf16 %v455, %v455
    %v525 = vld [vmem:[%s10] sm:$0xf]
    %v526 = vld [vmem:[%s10 + $0x4] sm:$0xf]
    %v527 = vld [vmem:[%s10 + $0x8] sm:$0xf]
    %v528 = vld [vmem:[%s10 + $0xc] sm:$0xf]
    %530 = vrot.lane.b32.xlu0 %v524, 64
    %v531 = vpop.permute.xlu0 %530
    %v536 = vunpack.c.l.b16 %v525
    %v537 = vunpack.c.l.b16 %v526
    %v538 = vunpack.c.l.b16 %v527
    %v539 = vunpack.c.l.b16 %v528
    %v540 = vpack.c.b16 %v537, %v536
    %v541 = vpack.c.b16 %v539, %v538
    %v545 = vsel %vm324, %v531, 0
    %547 = vmatpush.bf16.msra.mxu0 0
    %548 = vmatpush.bf16.msra.mxu0 0
    %549 = vmatpush.bf16.msra.mxu0 0
    %550 = vmatpush.bf16.msra.mxu0 0
    %551 = vmatpush.bf16.msra.mxu0 0
    %552 = vmatpush.bf16.msra.mxu0 0
    %553 = vmatpush.bf16.msra.mxu0 %v541
    %554 = vmatpush.bf16.msra.mxu0 %v540
    %555 = vmatmul.bf16.gmra.mxu0 %v545
    %v556 = vpop.f32.mrf.mxu0
    %v557 = vadd.f32 0.0, %v556
    %v558 = vpop.f32.mrf.mxu0
    %559 = vdwg.mxu0
    %v560 = vadd.f32 %v523, %v557
    %v561 = vmul.f32 %v560, 0.5
    %v562 = vtanh.pop %v561
    %v563 = vadd.f32 %v562, 1.0
    %v564 = vmul.f32 %v563, 0.5
    %v565 = vtanh.pop %v560
    %v566 = vmul.f32 %v564, %v449
    %568 = vrot.lane.b32.xlu0 %v565, 32
    %v569 = vpop.permute.xlu0 %568
    %v571 = vmul.f32 %v564, %v569
    %573 = vrot.lane.b32.xlu0 %v571, 32
    %v574 = vpop.permute.xlu0 %573
    %v576 = vadd.f32 %v566, %v574
    %v577 = vtanh.pop %v576
    %579 = vrot.lane.b32.xlu0 %v577, 32
    %v580 = vpop.permute.xlu0 %579
    %v582 = vmul.f32 %v564, %v580
    %584 = vrot.lane.b32.xlu0 %v582, 64
    %v585 = vpop.permute.xlu0 %584
    %s587 = scalar_lea.vmem [#allocation4], 2
    %588 = vst.msk [vmem:[%s587] sm:$0x3] %vm460, %v585
    %s589 = scalar_lea.vmem [#allocation3], 12
    %v590 = vld [vmem:[%s589] sm:$0x3]
    %v591 = vpack.c.bf16 %v515, %v515
    %v592 = vld [vmem:[#allocation11] sm:$0xf]
    %v593 = vld [vmem:[#allocation11 + $0x4] sm:$0xf]
    %v594 = vld [vmem:[#allocation11 + $0x8] sm:$0xf]
    %v595 = vld [vmem:[#allocation11 + $0xc] sm:$0xf]
    %597 = vrot.lane.b32.xlu0 %v591, 64
    %v598 = vpop.permute.xlu0 %597
    %v603 = vunpack.c.l.b16 %v592
    %v604 = vunpack.c.l.b16 %v593
    %v605 = vunpack.c.l.b16 %v594
    %v606 = vunpack.c.l.b16 %v595
    %v607 = vpack.c.b16 %v604, %v603
    %v608 = vpack.c.b16 %v606, %v605
    %v612 = vsel %vm324, %v598, 0
    %614 = vmatpush.bf16.msra.mxu0 0
    %615 = vmatpush.bf16.msra.mxu0 0
    %616 = vmatpush.bf16.msra.mxu0 0
    %617 = vmatpush.bf16.msra.mxu0 0
    %618 = vmatpush.bf16.msra.mxu0 0
    %619 = vmatpush.bf16.msra.mxu0 0
    %620 = vmatpush.bf16.msra.mxu0 %v608
    %621 = vmatpush.bf16.msra.mxu0 %v607
    %622 = vmatmul.bf16.gmra.mxu0 %v612
    %v623 = vpop.f32.mrf.mxu0
    %v624 = vadd.f32 0.0, %v623
    %v625 = vpop.f32.mrf.mxu0
    %626 = vdwg.mxu0
    %v627 = vadd.f32 %v590, %v624
    %v628 = vmul.f32 %v627, 0.5
    %v629 = vtanh.pop %v628
    %v630 = vadd.f32 %v629, 1.0
    %v631 = vmul.f32 %v630, 0.5
    %v632 = vtanh.pop %v627
    %v633 = vmul.f32 %v631, %v509
    %635 = vrot.lane.b32.xlu0 %v632, 32
    %v636 = vpop.permute.xlu0 %635
    %v638 = vmul.f32 %v631, %v636
    %640 = vrot.lane.b32.xlu0 %v638, 32
    %v641 = vpop.permute.xlu0 %640
    %v643 = vadd.f32 %v633, %v641
    %v644 = vtanh.pop %v643
    %646 = vrot.lane.b32.xlu0 %v644, 32
    %v647 = vpop.permute.xlu0 %646
    %v649 = vmul.f32 %v631, %v647
    %651 = vrot.lane.b32.xlu0 %v649, 64
    %v652 = vpop.permute.xlu0 %651
    %s654 = scalar_lea.vmem [#allocation5], 12
    %655 = vst.msk [vmem:[%s654] sm:$0x3] %vm460, %v652
    %s656 = scalar_lea.vmem [#allocation2], 4
    %v657 = vld [vmem:[%s656] sm:$0x3]
    %v658 = vpack.c.bf16 %v582, %v582
    %v659 = vld [vmem:[%s10] sm:$0xf]
    %v660 = vld [vmem:[%s10 + $0x4] sm:$0xf]
    %v661 = vld [vmem:[%s10 + $0x8] sm:$0xf]
    %v662 = vld [vmem:[%s10 + $0xc] sm:$0xf]
    %664 = vrot.lane.b32.xlu0 %v658, 64
    %v665 = vpop.permute.xlu0 %664
    %v670 = vunpack.c.l.b16 %v659
    %v671 = vunpack.c.l.b16 %v660
    %v672 = vunpack.c.l.b16 %v661
    %v673 = vunpack.c.l.b16 %v662
    %v674 = vpack.c.b16 %v671, %v670
    %v675 = vpack.c.b16 %v673, %v672
    %v679 = vsel %vm324, %v665, 0
    %681 = vmatpush.bf16.msra.mxu0 0
    %682 = vmatpush.bf16.msra.mxu0 0
    %683 = vmatpush.bf16.msra.mxu0 0
    %684 = vmatpush.bf16.msra.mxu0 0
    %685 = vmatpush.bf16.msra.mxu0 0
    %686 = vmatpush.bf16.msra.mxu0 0
    %687 = vmatpush.bf16.msra.mxu0 %v675
    %688 = vmatpush.bf16.msra.mxu0 %v674
    %689 = vmatmul.bf16.gmra.mxu0 %v679
    %v690 = vpop.f32.mrf.mxu0
    %v691 = vadd.f32 0.0, %v690
    %v692 = vpop.f32.mrf.mxu0
    %693 = vdwg.mxu0
    %v694 = vadd.f32 %v657, %v691
    %v695 = vmul.f32 %v694, 0.5
    %v696 = vtanh.pop %v695
    %v697 = vadd.f32 %v696, 1.0
    %v698 = vmul.f32 %v697, 0.5
    %v699 = vtanh.pop %v694
    %v700 = vmul.f32 %v698, %v576
    %702 = vrot.lane.b32.xlu0 %v699, 32
    %v703 = vpop.permute.xlu0 %702
    %v705 = vmul.f32 %v698, %v703
    %707 = vrot.lane.b32.xlu0 %v705, 32
    %v708 = vpop.permute.xlu0 %707
    %v710 = vadd.f32 %v700, %v708
    %v711 = vtanh.pop %v710
    %713 = vrot.lane.b32.xlu0 %v711, 32
    %v714 = vpop.permute.xlu0 %713
    %v716 = vmul.f32 %v698, %v714
    %718 = vrot.lane.b32.xlu0 %v716, 64
    %v719 = vpop.permute.xlu0 %718
    %s721 = scalar_lea.vmem [#allocation4], 4
    %722 = vst.msk [vmem:[%s721] sm:$0x3] %vm460, %v719
    %s723 = scalar_lea.vmem [#allocation3], 10
    %v724 = vld [vmem:[%s723] sm:$0x3]
    %v725 = vpack.c.bf16 %v649, %v649
    %v726 = vld [vmem:[#allocation11] sm:$0xf]
    %v727 = vld [vmem:[#allocation11 + $0x4] sm:$0xf]
    %v728 = vld [vmem:[#allocation11 + $0x8] sm:$0xf]
    %v729 = vld [vmem:[#allocation11 + $0xc] sm:$0xf]
    %731 = vrot.lane.b32.xlu0 %v725, 64
    %v732 = vpop.permute.xlu0 %731
    %v737 = vunpack.c.l.b16 %v726
    %v738 = vunpack.c.l.b16 %v727
    %v739 = vunpack.c.l.b16 %v728
    %v740 = vunpack.c.l.b16 %v729
    %v741 = vpack.c.b16 %v738, %v737
    %v742 = vpack.c.b16 %v740, %v739
    %v746 = vsel %vm324, %v732, 0
    %748 = vmatpush.bf16.msra.mxu0 0
    %749 = vmatpush.bf16.msra.mxu0 0
    %750 = vmatpush.bf16.msra.mxu0 0
    %751 = vmatpush.bf16.msra.mxu0 0
    %752 = vmatpush.bf16.msra.mxu0 0
    %753 = vmatpush.bf16.msra.mxu0 0
    %754 = vmatpush.bf16.msra.mxu0 %v742
    %755 = vmatpush.bf16.msra.mxu0 %v741
    %756 = vmatmul.bf16.gmra.mxu0 %v746
    %v757 = vpop.f32.mrf.mxu0
    %v758 = vadd.f32 0.0, %v757
    %v759 = vpop.f32.mrf.mxu0
    %760 = vdwg.mxu0
    %v761 = vadd.f32 %v724, %v758
    %v762 = vmul.f32 %v761, 0.5
    %v763 = vtanh.pop %v762
    %v764 = vadd.f32 %v763, 1.0
    %v765 = vmul.f32 %v764, 0.5
    %v766 = vtanh.pop %v761
    %v767 = vmul.f32 %v765, %v643
    %769 = vrot.lane.b32.xlu0 %v766, 32
    %v770 = vpop.permute.xlu0 %769
    %v772 = vmul.f32 %v765, %v770
    %774 = vrot.lane.b32.xlu0 %v772, 32
    %v775 = vpop.permute.xlu0 %774
    %v777 = vadd.f32 %v767, %v775
    %v778 = vtanh.pop %v777
    %780 = vrot.lane.b32.xlu0 %v778, 32
    %v781 = vpop.permute.xlu0 %780
    %v783 = vmul.f32 %v765, %v781
    %785 = vrot.lane.b32.xlu0 %v783, 64
    %v786 = vpop.permute.xlu0 %785
    %s788 = scalar_lea.vmem [#allocation5], 10
    %789 = vst.msk [vmem:[%s788] sm:$0x3] %vm460, %v786
    %s790 = scalar_lea.vmem [#allocation2], 6
    %v791 = vld [vmem:[%s790] sm:$0x3]
    %v792 = vpack.c.bf16 %v716, %v716
    %v793 = vld [vmem:[%s10] sm:$0xf]
    %v794 = vld [vmem:[%s10 + $0x4] sm:$0xf]
    %v795 = vld [vmem:[%s10 + $0x8] sm:$0xf]
    %v796 = vld [vmem:[%s10 + $0xc] sm:$0xf]
    %798 = vrot.lane.b32.xlu0 %v792, 64
    %v799 = vpop.permute.xlu0 %798
    %v804 = vunpack.c.l.b16 %v793
    %v805 = vunpack.c.l.b16 %v794
    %v806 = vunpack.c.l.b16 %v795
    %v807 = vunpack.c.l.b16 %v796
    %v808 = vpack.c.b16 %v805, %v804
    %v809 = vpack.c.b16 %v807, %v806
    %v813 = vsel %vm324, %v799, 0
    %815 = vmatpush.bf16.msra.mxu0 0
    %816 = vmatpush.bf16.msra.mxu0 0
    %817 = vmatpush.bf16.msra.mxu0 0
    %818 = vmatpush.bf16.msra.mxu0 0
    %819 = vmatpush.bf16.msra.mxu0 0
    %820 = vmatpush.bf16.msra.mxu0 0
    %821 = vmatpush.bf16.msra.mxu0 %v809
    %822 = vmatpush.bf16.msra.mxu0 %v808
    %823 = vmatmul.bf16.gmra.mxu0 %v813
    %v824 = vpop.f32.mrf.mxu0
    %v825 = vadd.f32 0.0, %v824
    %v826 = vpop.f32.mrf.mxu0
    %827 = vdwg.mxu0
    %v828 = vadd.f32 %v791, %v825
    %v829 = vmul.f32 %v828, 0.5
    %v830 = vtanh.pop %v829
    %v831 = vadd.f32 %v830, 1.0
    %v832 = vmul.f32 %v831, 0.5
    %v833 = vtanh.pop %v828
    %v834 = vmul.f32 %v832, %v710
    %836 = vrot.lane.b32.xlu0 %v833, 32
    %v837 = vpop.permute.xlu0 %836
    %v839 = vmul.f32 %v832, %v837
    %841 = vrot.lane.b32.xlu0 %v839, 32
    %v842 = vpop.permute.xlu0 %841
    %v844 = vadd.f32 %v834, %v842
    %v845 = vtanh.pop %v844
    %847 = vrot.lane.b32.xlu0 %v845, 32
    %v848 = vpop.permute.xlu0 %847
    %v850 = vmul.f32 %v832, %v848
    %852 = vrot.lane.b32.xlu0 %v850, 64
    %v853 = vpop.permute.xlu0 %852
    %s855 = scalar_lea.vmem [#allocation4], 6
    %856 = vst.msk [vmem:[%s855] sm:$0x3] %vm460, %v853
    %s857 = scalar_lea.vmem [#allocation3], 8
    %v858 = vld [vmem:[%s857] sm:$0x3]
    %v859 = vpack.c.bf16 %v783, %v783
    %v860 = vld [vmem:[#allocation11] sm:$0xf]
    %v861 = vld [vmem:[#allocation11 + $0x4] sm:$0xf]
    %v862 = vld [vmem:[#allocation11 + $0x8] sm:$0xf]
    %v863 = vld [vmem:[#allocation11 + $0xc] sm:$0xf]
    %865 = vrot.lane.b32.xlu0 %v859, 64
    %v866 = vpop.permute.xlu0 %865
    %v871 = vunpack.c.l.b16 %v860
    %v872 = vunpack.c.l.b16 %v861
    %v873 = vunpack.c.l.b16 %v862
    %v874 = vunpack.c.l.b16 %v863
    %v875 = vpack.c.b16 %v872, %v871
    %v876 = vpack.c.b16 %v874, %v873
    %v880 = vsel %vm324, %v866, 0
    %882 = vmatpush.bf16.msra.mxu0 0
    %883 = vmatpush.bf16.msra.mxu0 0
    %884 = vmatpush.bf16.msra.mxu0 0
    %885 = vmatpush.bf16.msra.mxu0 0
    %886 = vmatpush.bf16.msra.mxu0 0
    %887 = vmatpush.bf16.msra.mxu0 0
    %888 = vmatpush.bf16.msra.mxu0 %v876
    %889 = vmatpush.bf16.msra.mxu0 %v875
    %890 = vmatmul.bf16.gmra.mxu0 %v880
    %v891 = vpop.f32.mrf.mxu0
    %v892 = vadd.f32 0.0, %v891
    %v893 = vpop.f32.mrf.mxu0
    %894 = vdwg.mxu0
    %v895 = vadd.f32 %v858, %v892
    %v896 = vmul.f32 %v895, 0.5
    %v897 = vtanh.pop %v896
    %v898 = vadd.f32 %v897, 1.0
    %v899 = vmul.f32 %v898, 0.5
    %v900 = vtanh.pop %v895
    %v901 = vmul.f32 %v899, %v777
    %903 = vrot.lane.b32.xlu0 %v900, 32
    %v904 = vpop.permute.xlu0 %903
    %v906 = vmul.f32 %v899, %v904
    %908 = vrot.lane.b32.xlu0 %v906, 32
    %v909 = vpop.permute.xlu0 %908
    %v911 = vadd.f32 %v901, %v909
    %v912 = vtanh.pop %v911
    %914 = vrot.lane.b32.xlu0 %v912, 32
    %v915 = vpop.permute.xlu0 %914
    %v917 = vmul.f32 %v899, %v915
    %919 = vrot.lane.b32.xlu0 %v917, 64
    %v920 = vpop.permute.xlu0 %919
    %s922 = scalar_lea.vmem [#allocation5], 8
    %923 = vst.msk [vmem:[%s922] sm:$0x3] %vm460, %v920
    %s924 = scalar_lea.vmem [#allocation2], 8
    %v925 = vld [vmem:[%s924] sm:$0x3]
    %v926 = vpack.c.bf16 %v850, %v850
    %v927 = vld [vmem:[%s10] sm:$0xf]
    %v928 = vld [vmem:[%s10 + $0x4] sm:$0xf]
    %v929 = vld [vmem:[%s10 + $0x8] sm:$0xf]
    %v930 = vld [vmem:[%s10 + $0xc] sm:$0xf]
    %932 = vrot.lane.b32.xlu0 %v926, 64
    %v933 = vpop.permute.xlu0 %932
    %v938 = vunpack.c.l.b16 %v927
    %v939 = vunpack.c.l.b16 %v928
    %v940 = vunpack.c.l.b16 %v929
    %v941 = vunpack.c.l.b16 %v930
    %v942 = vpack.c.b16 %v939, %v938
    %v943 = vpack.c.b16 %v941, %v940
    %v947 = vsel %vm324, %v933, 0
    %949 = vmatpush.bf16.msra.mxu0 0
    %950 = vmatpush.bf16.msra.mxu0 0
    %951 = vmatpush.bf16.msra.mxu0 0
    %952 = vmatpush.bf16.msra.mxu0 0
    %953 = vmatpush.bf16.msra.mxu0 0
    %954 = vmatpush.bf16.msra.mxu0 0
    %955 = vmatpush.bf16.msra.mxu0 %v943
    %956 = vmatpush.bf16.msra.mxu0 %v942
    %957 = vmatmul.bf16.gmra.mxu0 %v947
    %v958 = vpop.f32.mrf.mxu0
    %v959 = vadd.f32 0.0, %v958
    %v960 = vpop.f32.mrf.mxu0
    %961 = vdwg.mxu0
    %v962 = vadd.f32 %v925, %v959
    %v963 = vmul.f32 %v962, 0.5
    %v964 = vtanh.pop %v963
    %v965 = vadd.f32 %v964, 1.0
    %v966 = vmul.f32 %v965, 0.5
    %v967 = vtanh.pop %v962
    %v968 = vmul.f32 %v966, %v844
    %970 = vrot.lane.b32.xlu0 %v967, 32
    %v971 = vpop.permute.xlu0 %970
    %v973 = vmul.f32 %v966, %v971
    %975 = vrot.lane.b32.xlu0 %v973, 32
    %v976 = vpop.permute.xlu0 %975
    %v978 = vadd.f32 %v968, %v976
    %v979 = vtanh.pop %v978
    %981 = vrot.lane.b32.xlu0 %v979, 32
    %v982 = vpop.permute.xlu0 %981
    %v984 = vmul.f32 %v966, %v982
    %986 = vrot.lane.b32.xlu0 %v984, 64
    %v987 = vpop.permute.xlu0 %986
    %s989 = scalar_lea.vmem [#allocation4], 8
    %990 = vst.msk [vmem:[%s989] sm:$0x3] %vm460, %v987
    %s991 = scalar_lea.vmem [#allocation3], 6
    %v992 = vld [vmem:[%s991] sm:$0x3]
    %v993 = vpack.c.bf16 %v917, %v917
    %v994 = vld [vmem:[#allocation11] sm:$0xf]
    %v995 = vld [vmem:[#allocation11 + $0x4] sm:$0xf]
    %v996 = vld [vmem:[#allocation11 + $0x8] sm:$0xf]
    %v997 = vld [vmem:[#allocation11 + $0xc] sm:$0xf]
    %999 = vrot.lane.b32.xlu0 %v993, 64
    %v1000 = vpop.permute.xlu0 %999
    %v1005 = vunpack.c.l.b16 %v994
    %v1006 = vunpack.c.l.b16 %v995
    %v1007 = vunpack.c.l.b16 %v996
    %v1008 = vunpack.c.l.b16 %v997
    %v1009 = vpack.c.b16 %v1006, %v1005
    %v1010 = vpack.c.b16 %v1008, %v1007
    %v1014 = vsel %vm324, %v1000, 0
    %1016 = vmatpush.bf16.msra.mxu0 0
    %1017 = vmatpush.bf16.msra.mxu0 0
    %1018 = vmatpush.bf16.msra.mxu0 0
    %1019 = vmatpush.bf16.msra.mxu0 0
    %1020 = vmatpush.bf16.msra.mxu0 0
    %1021 = vmatpush.bf16.msra.mxu0 0
    %1022 = vmatpush.bf16.msra.mxu0 %v1010
    %1023 = vmatpush.bf16.msra.mxu0 %v1009
    %1024 = vmatmul.bf16.gmra.mxu0 %v1014
    %v1025 = vpop.f32.mrf.mxu0
    %v1026 = vadd.f32 0.0, %v1025
    %v1027 = vpop.f32.mrf.mxu0
    %1028 = vdwg.mxu0
    %v1029 = vadd.f32 %v992, %v1026
    %v1030 = vmul.f32 %v1029, 0.5
    %v1031 = vtanh.pop %v1030
    %v1032 = vadd.f32 %v1031, 1.0
    %v1033 = vmul.f32 %v1032, 0.5
    %v1034 = vtanh.pop %v1029
    %v1035 = vmul.f32 %v1033, %v911
    %1037 = vrot.lane.b32.xlu0 %v1034, 32
    %v1038 = vpop.permute.xlu0 %1037
    %v1040 = vmul.f32 %v1033, %v1038
    %1042 = vrot.lane.b32.xlu0 %v1040, 32
    %v1043 = vpop.permute.xlu0 %1042
    %v1045 = vadd.f32 %v1035, %v1043
    %v1046 = vtanh.pop %v1045
    %1048 = vrot.lane.b32.xlu0 %v1046, 32
    %v1049 = vpop.permute.xlu0 %1048
    %v1051 = vmul.f32 %v1033, %v1049
    %1053 = vrot.lane.b32.xlu0 %v1051, 64
    %v1054 = vpop.permute.xlu0 %1053
    %s1056 = scalar_lea.vmem [#allocation5], 6
    %1057 = vst.msk [vmem:[%s1056] sm:$0x3] %vm460, %v1054
    %s1058 = scalar_lea.vmem [#allocation2], 10
    %v1059 = vld [vmem:[%s1058] sm:$0x3]
    %v1060 = vpack.c.bf16 %v984, %v984
    %v1061 = vld [vmem:[%s10] sm:$0xf]
    %v1062 = vld [vmem:[%s10 + $0x4] sm:$0xf]
    %v1063 = vld [vmem:[%s10 + $0x8] sm:$0xf]
    %v1064 = vld [vmem:[%s10 + $0xc] sm:$0xf]
    %1066 = vrot.lane.b32.xlu0 %v1060, 64
    %v1067 = vpop.permute.xlu0 %1066
    %v1072 = vunpack.c.l.b16 %v1061
    %v1073 = vunpack.c.l.b16 %v1062
    %v1074 = vunpack.c.l.b16 %v1063
    %v1075 = vunpack.c.l.b16 %v1064
    %v1076 = vpack.c.b16 %v1073, %v1072
    %v1077 = vpack.c.b16 %v1075, %v1074
    %v1081 = vsel %vm324, %v1067, 0
    %1083 = vmatpush.bf16.msra.mxu0 0
    %1084 = vmatpush.bf16.msra.mxu0 0
    %1085 = vmatpush.bf16.msra.mxu0 0
    %1086 = vmatpush.bf16.msra.mxu0 0
    %1087 = vmatpush.bf16.msra.mxu0 0
    %1088 = vmatpush.bf16.msra.mxu0 0
    %1089 = vmatpush.bf16.msra.mxu0 %v1077
    %1090 = vmatpush.bf16.msra.mxu0 %v1076
    %1091 = vmatmul.bf16.gmra.mxu0 %v1081
    %v1092 = vpop.f32.mrf.mxu0
    %v1093 = vadd.f32 0.0, %v1092
    %v1094 = vpop.f32.mrf.mxu0
    %1095 = vdwg.mxu0
    %v1096 = vadd.f32 %v1059, %v1093
    %v1097 = vmul.f32 %v1096, 0.5
    %v1098 = vtanh.pop %v1097
    %v1099 = vadd.f32 %v1098, 1.0
    %v1100 = vmul.f32 %v1099, 0.5
    %v1101 = vtanh.pop %v1096
    %v1102 = vmul.f32 %v1100, %v978
    %1104 = vrot.lane.b32.xlu0 %v1101, 32
    %v1105 = vpop.permute.xlu0 %1104
    %v1107 = vmul.f32 %v1100, %v1105
    %1109 = vrot.lane.b32.xlu0 %v1107, 32
    %v1110 = vpop.permute.xlu0 %1109
    %v1112 = vadd.f32 %v1102, %v1110
    %v1113 = vtanh.pop %v1112
    %1115 = vrot.lane.b32.xlu0 %v1113, 32
    %v1116 = vpop.permute.xlu0 %1115
    %v1118 = vmul.f32 %v1100, %v1116
    %1120 = vrot.lane.b32.xlu0 %v1118, 64
    %v1121 = vpop.permute.xlu0 %1120
    %s1123 = scalar_lea.vmem [#allocation4], 10
    %1124 = vst.msk [vmem:[%s1123] sm:$0x3] %vm460, %v1121
    %s1125 = scalar_lea.vmem [#allocation3], 4
    %v1126 = vld [vmem:[%s1125] sm:$0x3]
    %v1127 = vpack.c.bf16 %v1051, %v1051
    %v1128 = vld [vmem:[#allocation11] sm:$0xf]
    %v1129 = vld [vmem:[#allocation11 + $0x4] sm:$0xf]
    %v1130 = vld [vmem:[#allocation11 + $0x8] sm:$0xf]
    %v1131 = vld [vmem:[#allocation11 + $0xc] sm:$0xf]
    %1133 = vrot.lane.b32.xlu0 %v1127, 64
    %v1134 = vpop.permute.xlu0 %1133
    %v1139 = vunpack.c.l.b16 %v1128
    %v1140 = vunpack.c.l.b16 %v1129
    %v1141 = vunpack.c.l.b16 %v1130
    %v1142 = vunpack.c.l.b16 %v1131
    %v1143 = vpack.c.b16 %v1140, %v1139
    %v1144 = vpack.c.b16 %v1142, %v1141
    %v1148 = vsel %vm324, %v1134, 0
    %1150 = vmatpush.bf16.msra.mxu0 0
    %1151 = vmatpush.bf16.msra.mxu0 0
    %1152 = vmatpush.bf16.msra.mxu0 0
    %1153 = vmatpush.bf16.msra.mxu0 0
    %1154 = vmatpush.bf16.msra.mxu0 0
    %1155 = vmatpush.bf16.msra.mxu0 0
    %1156 = vmatpush.bf16.msra.mxu0 %v1144
    %1157 = vmatpush.bf16.msra.mxu0 %v1143
    %1158 = vmatmul.bf16.gmra.mxu0 %v1148
    %v1159 = vpop.f32.mrf.mxu0
    %v1160 = vadd.f32 0.0, %v1159
    %v1161 = vpop.f32.mrf.mxu0
    %1162 = vdwg.mxu0
    %v1163 = vadd.f32 %v1126, %v1160
    %v1164 = vmul.f32 %v1163, 0.5
    %v1165 = vtanh.pop %v1164
    %v1166 = vadd.f32 %v1165, 1.0
    %v1167 = vmul.f32 %v1166, 0.5
    %v1168 = vtanh.pop %v1163
    %v1169 = vmul.f32 %v1167, %v1045
    %1171 = vrot.lane.b32.xlu0 %v1168, 32
    %v1172 = vpop.permute.xlu0 %1171
    %v1174 = vmul.f32 %v1167, %v1172
    %1176 = vrot.lane.b32.xlu0 %v1174, 32
    %v1177 = vpop.permute.xlu0 %1176
    %v1179 = vadd.f32 %v1169, %v1177
    %v1180 = vtanh.pop %v1179
    %1182 = vrot.lane.b32.xlu0 %v1180, 32
    %v1183 = vpop.permute.xlu0 %1182
    %v1185 = vmul.f32 %v1167, %v1183
    %1187 = vrot.lane.b32.xlu0 %v1185, 64
    %v1188 = vpop.permute.xlu0 %1187
    %s1190 = scalar_lea.vmem [#allocation5], 4
    %1191 = vst.msk [vmem:[%s1190] sm:$0x3] %vm460, %v1188
    %s1192 = scalar_lea.vmem [#allocation2], 12
    %v1193 = vld [vmem:[%s1192] sm:$0x3]
    %v1194 = vpack.c.bf16 %v1118, %v1118
    %v1195 = vld [vmem:[%s10] sm:$0xf]
    %v1196 = vld [vmem:[%s10 + $0x4] sm:$0xf]
    %v1197 = vld [vmem:[%s10 + $0x8] sm:$0xf]
    %v1198 = vld [vmem:[%s10 + $0xc] sm:$0xf]
    %1200 = vrot.lane.b32.xlu0 %v1194, 64
    %v1201 = vpop.permute.xlu0 %1200
    %v1206 = vunpack.c.l.b16 %v1195
    %v1207 = vunpack.c.l.b16 %v1196
    %v1208 = vunpack.c.l.b16 %v1197
    %v1209 = vunpack.c.l.b16 %v1198
    %v1210 = vpack.c.b16 %v1207, %v1206
    %v1211 = vpack.c.b16 %v1209, %v1208
    %v1215 = vsel %vm324, %v1201, 0
    %1217 = vmatpush.bf16.msra.mxu0 0
    %1218 = vmatpush.bf16.msra.mxu0 0
    %1219 = vmatpush.bf16.msra.mxu0 0
    %1220 = vmatpush.bf16.msra.mxu0 0
    %1221 = vmatpush.bf16.msra.mxu0 0
    %1222 = vmatpush.bf16.msra.mxu0 0
    %1223 = vmatpush.bf16.msra.mxu0 %v1211
    %1224 = vmatpush.bf16.msra.mxu0 %v1210
    %1225 = vmatmul.bf16.gmra.mxu0 %v1215
    %v1226 = vpop.f32.mrf.mxu0
    %v1227 = vadd.f32 0.0, %v1226
    %v1228 = vpop.f32.mrf.mxu0
    %1229 = vdwg.mxu0
    %v1230 = vadd.f32 %v1193, %v1227
    %v1231 = vmul.f32 %v1230, 0.5
    %v1232 = vtanh.pop %v1231
    %v1233 = vadd.f32 %v1232, 1.0
    %v1234 = vmul.f32 %v1233, 0.5
    %v1235 = vtanh.pop %v1230
    %v1236 = vmul.f32 %v1234, %v1112
    %1238 = vrot.lane.b32.xlu0 %v1235, 32
    %v1239 = vpop.permute.xlu0 %1238
    %v1241 = vmul.f32 %v1234, %v1239
    %1243 = vrot.lane.b32.xlu0 %v1241, 32
    %v1244 = vpop.permute.xlu0 %1243
    %v1246 = vadd.f32 %v1236, %v1244
    %v1247 = vtanh.pop %v1246
    %1249 = vrot.lane.b32.xlu0 %v1247, 32
    %v1250 = vpop.permute.xlu0 %1249
    %v1252 = vmul.f32 %v1234, %v1250
    %1254 = vrot.lane.b32.xlu0 %v1252, 64
    %v1255 = vpop.permute.xlu0 %1254
    %s1257 = scalar_lea.vmem [#allocation4], 12
    %1258 = vst.msk [vmem:[%s1257] sm:$0x3] %vm460, %v1255
    %s1259 = scalar_lea.vmem [#allocation3], 2
    %v1260 = vld [vmem:[%s1259] sm:$0x3]
    %v1261 = vpack.c.bf16 %v1185, %v1185
    %v1262 = vld [vmem:[#allocation11] sm:$0xf]
    %v1263 = vld [vmem:[#allocation11 + $0x4] sm:$0xf]
    %v1264 = vld [vmem:[#allocation11 + $0x8] sm:$0xf]
    %v1265 = vld [vmem:[#allocation11 + $0xc] sm:$0xf]
    %1267 = vrot.lane.b32.xlu0 %v1261, 64
    %v1268 = vpop.permute.xlu0 %1267
    %v1273 = vunpack.c.l.b16 %v1262
    %v1274 = vunpack.c.l.b16 %v1263
    %v1275 = vunpack.c.l.b16 %v1264
    %v1276 = vunpack.c.l.b16 %v1265
    %v1277 = vpack.c.b16 %v1274, %v1273
    %v1278 = vpack.c.b16 %v1276, %v1275
    %v1282 = vsel %vm324, %v1268, 0
    %1284 = vmatpush.bf16.msra.mxu0 0
    %1285 = vmatpush.bf16.msra.mxu0 0
    %1286 = vmatpush.bf16.msra.mxu0 0
    %1287 = vmatpush.bf16.msra.mxu0 0
    %1288 = vmatpush.bf16.msra.mxu0 0
    %1289 = vmatpush.bf16.msra.mxu0 0
    %1290 = vmatpush.bf16.msra.mxu0 %v1278
    %1291 = vmatpush.bf16.msra.mxu0 %v1277
    %1292 = vmatmul.bf16.gmra.mxu0 %v1282
    %v1293 = vpop.f32.mrf.mxu0
    %v1294 = vadd.f32 0.0, %v1293
    %v1295 = vpop.f32.mrf.mxu0
    %1296 = vdwg.mxu0
    %v1297 = vadd.f32 %v1260, %v1294
    %v1298 = vmul.f32 %v1297, 0.5
    %v1299 = vtanh.pop %v1298
    %v1300 = vadd.f32 %v1299, 1.0
    %v1301 = vmul.f32 %v1300, 0.5
    %v1302 = vtanh.pop %v1297
    %v1303 = vmul.f32 %v1301, %v1179
    %1305 = vrot.lane.b32.xlu0 %v1302, 32
    %v1306 = vpop.permute.xlu0 %1305
    %v1308 = vmul.f32 %v1301, %v1306
    %1310 = vrot.lane.b32.xlu0 %v1308, 32
    %v1311 = vpop.permute.xlu0 %1310
    %v1313 = vadd.f32 %v1303, %v1311
    %v1314 = vtanh.pop %v1313
    %1316 = vrot.lane.b32.xlu0 %v1314, 32
    %v1317 = vpop.permute.xlu0 %1316
    %v1319 = vmul.f32 %v1301, %v1317
    %1321 = vrot.lane.b32.xlu0 %v1319, 64
    %v1322 = vpop.permute.xlu0 %1321
    %s1324 = scalar_lea.vmem [#allocation5], 2
    %1325 = vst.msk [vmem:[%s1324] sm:$0x3] %vm460, %v1322
    %s1326 = scalar_lea.vmem [#allocation2], 14
    %v1327 = vld [vmem:[%s1326] sm:$0x3]
    %v1328 = vpack.c.bf16 %v1252, %v1252
    %v1329 = vld [vmem:[%s10] sm:$0xf]
    %v1330 = vld [vmem:[%s10 + $0x4] sm:$0xf]
    %v1331 = vld [vmem:[%s10 + $0x8] sm:$0xf]
    %v1332 = vld [vmem:[%s10 + $0xc] sm:$0xf]
    %1334 = vrot.lane.b32.xlu0 %v1328, 64
    %v1335 = vpop.permute.xlu0 %1334
    %v1340 = vunpack.c.l.b16 %v1329
    %v1341 = vunpack.c.l.b16 %v1330
    %v1342 = vunpack.c.l.b16 %v1331
    %v1343 = vunpack.c.l.b16 %v1332
    %v1344 = vpack.c.b16 %v1341, %v1340
    %v1345 = vpack.c.b16 %v1343, %v1342
    %v1349 = vsel %vm324, %v1335, 0
    %1351 = vmatpush.bf16.msra.mxu0 0
    %1352 = vmatpush.bf16.msra.mxu0 0
    %1353 = vmatpush.bf16.msra.mxu0 0
    %1354 = vmatpush.bf16.msra.mxu0 0
    %1355 = vmatpush.bf16.msra.mxu0 0
    %1356 = vmatpush.bf16.msra.mxu0 0
    %1357 = vmatpush.bf16.msra.mxu0 %v1345
    %1358 = vmatpush.bf16.msra.mxu0 %v1344
    %1359 = vmatmul.bf16.gmra.mxu0 %v1349
    %v1360 = vpop.f32.mrf.mxu0
    %v1361 = vadd.f32 0.0, %v1360
    %v1362 = vpop.f32.mrf.mxu0
    %1363 = vdwg.mxu0
    %v1364 = vadd.f32 %v1327, %v1361
    %v1365 = vmul.f32 %v1364, 0.5
    %v1366 = vtanh.pop %v1365
    %v1367 = vadd.f32 %v1366, 1.0
    %v1368 = vmul.f32 %v1367, 0.5
    %v1369 = vtanh.pop %v1364
    %v1370 = vmul.f32 %v1368, %v1246
    %1372 = vrot.lane.b32.xlu0 %v1369, 32
    %v1373 = vpop.permute.xlu0 %1372
    %v1375 = vmul.f32 %v1368, %v1373
    %1377 = vrot.lane.b32.xlu0 %v1375, 32
    %v1378 = vpop.permute.xlu0 %1377
    %v1380 = vadd.f32 %v1370, %v1378
    %v1381 = vtanh.pop %v1380
    %1383 = vrot.lane.b32.xlu0 %v1381, 32
    %v1384 = vpop.permute.xlu0 %1383
    %v1386 = vmul.f32 %v1368, %v1384
    %1388 = vrot.lane.b32.xlu0 %v1386, 64
    %v1389 = vpop.permute.xlu0 %1388
    %s1391 = scalar_lea.vmem [#allocation4], 14
    %1392 = vst.msk [vmem:[%s1391] sm:$0x3] %vm460, %v1389
    %v1393 = vld [vmem:[#allocation3] sm:$0x3]
    %v1394 = vpack.c.bf16 %v1319, %v1319
    %v1395 = vld [vmem:[#allocation11] sm:$0xf]
    %v1396 = vld [vmem:[#allocation11 + $0x4] sm:$0xf]
    %v1397 = vld [vmem:[#allocation11 + $0x8] sm:$0xf]
    %v1398 = vld [vmem:[#allocation11 + $0xc] sm:$0xf]
    %1400 = vrot.lane.b32.xlu0 %v1394, 64
    %v1401 = vpop.permute.xlu0 %1400
    %v1406 = vunpack.c.l.b16 %v1395
    %v1407 = vunpack.c.l.b16 %v1396
    %v1408 = vunpack.c.l.b16 %v1397
    %v1409 = vunpack.c.l.b16 %v1398
    %v1410 = vpack.c.b16 %v1407, %v1406
    %v1411 = vpack.c.b16 %v1409, %v1408
    %v1415 = vsel %vm324, %v1401, 0
    %1417 = vmatpush.bf16.msra.mxu0 0
    %1418 = vmatpush.bf16.msra.mxu0 0
    %1419 = vmatpush.bf16.msra.mxu0 0
    %1420 = vmatpush.bf16.msra.mxu0 0
    %1421 = vmatpush.bf16.msra.mxu0 0
    %1422 = vmatpush.bf16.msra.mxu0 0
    %1423 = vmatpush.bf16.msra.mxu0 %v1411
    %1424 = vmatpush.bf16.msra.mxu0 %v1410
    %1425 = vmatmul.bf16.gmra.mxu0 %v1415
    %v1426 = vpop.f32.mrf.mxu0
    %v1427 = vadd.f32 0.0, %v1426
    %v1428 = vpop.f32.mrf.mxu0
    %1429 = vdwg.mxu0
    %v1430 = vadd.f32 %v1393, %v1427
    %v1431 = vmul.f32 %v1430, 0.5
    %v1432 = vtanh.pop %v1431
    %v1433 = vadd.f32 %v1432, 1.0
    %v1434 = vmul.f32 %v1433, 0.5
    %v1435 = vtanh.pop %v1430
    %v1436 = vmul.f32 %v1434, %v1313
    %1438 = vrot.lane.b32.xlu0 %v1435, 32
    %v1439 = vpop.permute.xlu0 %1438
    %v1441 = vmul.f32 %v1434, %v1439
    %1443 = vrot.lane.b32.xlu0 %v1441, 32
    %v1444 = vpop.permute.xlu0 %1443
    %v1446 = vadd.f32 %v1436, %v1444
    %v1447 = vtanh.pop %v1446
    %1449 = vrot.lane.b32.xlu0 %v1447, 32
    %v1450 = vpop.permute.xlu0 %1449
    %v1452 = vmul.f32 %v1434, %v1450
    %1454 = vrot.lane.b32.xlu0 %v1452, 64
    %v1455 = vpop.permute.xlu0 %1454
    %1457 = vst.msk [vmem:[#allocation5] sm:$0x3] %vm460, %v1455
    %v1458 = vld [vmem:[#allocation4] sm:$0x3]
    %v1459 = vld [vmem:[#allocation4 + $0x2] sm:$0x3]
    %v1460 = vld [vmem:[#allocation4 + $0x4] sm:$0x3]
    %v1461 = vld [vmem:[#allocation4 + $0x6] sm:$0x3]
    %v1462 = vld [vmem:[#allocation4 + $0x8] sm:$0x3]
    %v1463 = vld [vmem:[#allocation4 + $0xa] sm:$0x3]
    %v1464 = vld [vmem:[#allocation4 + $0xc] sm:$0x3]
    %v1465 = vld [vmem:[#allocation4 + $0xe] sm:$0x3]
    %1474 = vst [vmem:[#allocation1] ss:$4 sm:$0xff] %v1458
    %s1475 = scalar_lea.vmem [#allocation1], 1
    %1476 = vst [vmem:[%s1475] ss:$4 sm:$0xff] %v1459
    %s1477 = scalar_lea.vmem [#allocation1], 2
    %1478 = vst [vmem:[%s1477] ss:$4 sm:$0xff] %v1460
    %s1479 = scalar_lea.vmem [#allocation1], 3
    %1480 = vst [vmem:[%s1479] ss:$4 sm:$0xff] %v1461
    %s1481 = scalar_lea.vmem [#allocation1], 32
    %1482 = vst [vmem:[%s1481] ss:$4 sm:$0xff] %v1462
    %s1483 = scalar_lea.vmem [#allocation1], 33
    %1484 = vst [vmem:[%s1483] ss:$4 sm:$0xff] %v1463
    %s1485 = scalar_lea.vmem [#allocation1], 34
    %1486 = vst [vmem:[%s1485] ss:$4 sm:$0xff] %v1464
    %s1487 = scalar_lea.vmem [#allocation1], 35
    %1488 = vst [vmem:[%s1487] ss:$4 sm:$0xff] %v1465
    %v1489 = vld.sshfl [vmem:[#allocation1] sm:$0xff pattern:$0x73625140]
    %v1490 = vld.sshfl [vmem:[#allocation1 + $0x20] sm:$0xff pattern:$0x73625140]
    %v1493 = vpack.c.bf16 %v1490, %v1489
    %v1494 = vld [vmem:[#allocation5] sm:$0x3]
    %v1495 = vld [vmem:[#allocation5 + $0x2] sm:$0x3]
    %v1496 = vld [vmem:[#allocation5 + $0x4] sm:$0x3]
    %v1497 = vld [vmem:[#allocation5 + $0x6] sm:$0x3]
    %v1498 = vld [vmem:[#allocation5 + $0x8] sm:$0x3]
    %v1499 = vld [vmem:[#allocation5 + $0xa] sm:$0x3]
    %v1500 = vld [vmem:[#allocation5 + $0xc] sm:$0x3]
    %v1501 = vld [vmem:[#allocation5 + $0xe] sm:$0x3]
    %1510 = vst [vmem:[#allocation1] ss:$4 sm:$0xff] %v1494
    %s1511 = scalar_lea.vmem [#allocation1], 1
    %1512 = vst [vmem:[%s1511] ss:$4 sm:$0xff] %v1495
    %s1513 = scalar_lea.vmem [#allocation1], 2
    %1514 = vst [vmem:[%s1513] ss:$4 sm:$0xff] %v1496
    %s1515 = scalar_lea.vmem [#allocation1], 3
    %1516 = vst [vmem:[%s1515] ss:$4 sm:$0xff] %v1497
    %s1517 = scalar_lea.vmem [#allocation1], 32
    %1518 = vst [vmem:[%s1517] ss:$4 sm:$0xff] %v1498
    %s1519 = scalar_lea.vmem [#allocation1], 33
    %1520 = vst [vmem:[%s1519] ss:$4 sm:$0xff] %v1499
    %s1521 = scalar_lea.vmem [#allocation1], 34
    %1522 = vst [vmem:[%s1521] ss:$4 sm:$0xff] %v1500
    %s1523 = scalar_lea.vmem [#allocation1], 35
    %1524 = vst [vmem:[%s1523] ss:$4 sm:$0xff] %v1501
    %v1525 = vld.sshfl [vmem:[#allocation1] sm:$0xff pattern:$0x73625140]
    %v1526 = vld.sshfl [vmem:[#allocation1 + $0x20] sm:$0xff pattern:$0x73625140]
    %v1529 = vpack.c.bf16 %v1526, %v1525
    %v1530 = vld [vmem:[#allocation13] sm:$0xf]
    %v1531 = vld [vmem:[#allocation13 + $0x4] sm:$0xf]
    %v1532 = vld [vmem:[#allocation13 + $0x8] sm:$0xf]
    %v1533 = vld [vmem:[#allocation13 + $0xc] sm:$0xf]
    %v1534 = vld [vmem:[#allocation14] sm:$0xf]
    %v1535 = vld [vmem:[#allocation14 + $0x4] sm:$0xf]
    %v1536 = vld [vmem:[#allocation14 + $0x8] sm:$0xf]
    %v1537 = vld [vmem:[#allocation14 + $0xc] sm:$0xf]
    %v1542 = vunpack.c.l.b16 %v1534
    %v1543 = vunpack.c.l.b16 %v1535
    %v1544 = vunpack.c.l.b16 %v1536
    %v1545 = vunpack.c.l.b16 %v1537
    %v1546 = vpack.c.b16 %v1543, %v1542
    %v1547 = vpack.c.b16 %v1545, %v1544
    %v1551 = vsel %vm324, %v1529, 0
    %1553 = vmatpush.bf16.msra.mxu0 0
    %1554 = vmatpush.bf16.msra.mxu0 0
    %1555 = vmatpush.bf16.msra.mxu0 0
    %1556 = vmatpush.bf16.msra.mxu0 0
    %1557 = vmatpush.bf16.msra.mxu0 0
    %1558 = vmatpush.bf16.msra.mxu0 0
    %1559 = vmatpush.bf16.msra.mxu0 %v1547
    %1560 = vmatpush.bf16.msra.mxu0 %v1546
    %1561 = vmatmul.bf16.gmra.mxu0 %v1551
    %v1562 = vpop.f32.mrf.mxu0
    %v1563 = vadd.f32 0.0, %v1562
    %v1564 = vpop.f32.mrf.mxu0
    %v1565 = vadd.f32 0.0, %v1564
    %1566 = vdwg.mxu0
    %v1571 = vunpack.c.l.b16 %v1530
    %v1572 = vunpack.c.l.b16 %v1531
    %v1573 = vunpack.c.l.b16 %v1532
    %v1574 = vunpack.c.l.b16 %v1533
    %v1575 = vpack.c.b16 %v1572, %v1571
    %v1576 = vpack.c.b16 %v1574, %v1573
    %v1580 = vsel %vm324, %v1493, 0
    %1582 = vmatpush.bf16.msra.mxu0 0
    %1583 = vmatpush.bf16.msra.mxu0 0
    %1584 = vmatpush.bf16.msra.mxu0 0
    %1585 = vmatpush.bf16.msra.mxu0 0
    %1586 = vmatpush.bf16.msra.mxu0 0
    %1587 = vmatpush.bf16.msra.mxu0 0
    %1588 = vmatpush.bf16.msra.mxu0 %v1576
    %1589 = vmatpush.bf16.msra.mxu0 %v1575
    %1590 = vmatmul.bf16.gmra.mxu0 %v1580
    %v1591 = vpop.f32.mrf.mxu0
    %v1592 = vadd.f32 %v1563, %v1591
    %v1593 = vpop.f32.mrf.mxu0
    %v1594 = vadd.f32 %v1565, %v1593
    %1595 = vdwg.mxu0
    %v1596 = vld [vmem:[%s14] sm:$0x1]
    %v1598 = vperm.slane %v1596, 0
    %v1600 = vadd.f32 %v1592, %v1598
    %v1601 = vadd.f32 %v1594, %v1598
    %v1604 = vrot.slane %v1600, 2
    %v1605 = vrot.slane %v1600, 4
    %v1606 = vrot.slane %v1600, 6
    %v1607 = vrot.slane %v1601, 2
    %v1608 = vrot.slane %v1601, 4
    %v1609 = vrot.slane %v1601, 6
    %v1616 = vrot.slane %v1600, 1
    %v1617 = vrot.slane %v1600, 3
    %vm1618 = vcmask 1040384
    %v1619 = vsel %vm1618, %v1600, %v1616
    %vm1620 = vcmask 1042434
    %v1621 = vsel %vm1620, %v1604, %v1617
    %vm1622 = vcmask 1041408
    %v1623 = vsel %vm1622, %v1619, %v1621
    %vm1624 = vcmask 1041409
    %v1625 = vsel %vm1624, %v1600, %v1616
    %vm1626 = vcmask 1043459
    %v1627 = vsel %vm1626, %v1604, %v1617
    %vm1628 = vcmask 1042433
    %v1629 = vsel %vm1628, %v1625, %v1627
    %v1630 = vrot.slane %v1629, 1
    %v1631 = vperm.slane %v1623, 0
    %v1632 = vperm.slane %v1630, 0
    %1633 = vrot.lane.b32.xlu0 %v1631, 96
    %v1634 = vpop.permute.xlu0 %1633
    %1635 = vrot.lane.b32.xlu0 %v1632, 96
    %v1636 = vpop.permute.xlu0 %1635
    %vm1639 = vcmask 253952
    %1640 = vst.msk [vmem:[#allocation6] sm:$0x1] %vm1639, %v1634
    %1641 = vst.msk [vmem:[#allocation6 + $0x8] sm:$0x1] %vm1639, %v1636
    %v1642 = vrot.slane %v1604, 1
    %v1643 = vrot.slane %v1604, 2
    %v1644 = vrot.slane %v1604, 3
    %v1645 = vsel %vm1618, %v1604, %v1642
    %v1646 = vsel %vm1620, %v1643, %v1644
    %v1647 = vsel %vm1622, %v1645, %v1646
    %v1648 = vsel %vm1624, %v1604, %v1642
    %v1649 = vsel %vm1626, %v1643, %v1644
    %v1650 = vsel %vm1628, %v1648, %v1649
    %v1651 = vrot.slane %v1650, 1
    %v1652 = vperm.slane %v1647, 0
    %v1653 = vperm.slane %v1651, 0
    %1654 = vrot.lane.b32.xlu0 %v1652, 96
    %v1655 = vpop.permute.xlu0 %1654
    %1656 = vrot.lane.b32.xlu0 %v1653, 96
    %v1657 = vpop.permute.xlu0 %1656
    %1660 = vst.msk [vmem:[#allocation6 + $0x1] sm:$0x1] %vm1639, %v1655
    %1661 = vst.msk [vmem:[#allocation6 + $0x9] sm:$0x1] %vm1639, %v1657
    %v1662 = vrot.slane %v1605, 1
    %v1663 = vrot.slane %v1605, 2
    %v1664 = vrot.slane %v1605, 3
    %v1665 = vsel %vm1618, %v1605, %v1662
    %v1666 = vsel %vm1620, %v1663, %v1664
    %v1667 = vsel %vm1622, %v1665, %v1666
    %v1668 = vsel %vm1624, %v1605, %v1662
    %v1669 = vsel %vm1626, %v1663, %v1664
    %v1670 = vsel %vm1628, %v1668, %v1669
    %v1671 = vrot.slane %v1670, 1
    %v1672 = vperm.slane %v1667, 0
    %v1673 = vperm.slane %v1671, 0
    %1674 = vrot.lane.b32.xlu0 %v1672, 96
    %v1675 = vpop.permute.xlu0 %1674
    %1676 = vrot.lane.b32.xlu0 %v1673, 96
    %v1677 = vpop.permute.xlu0 %1676
    %1680 = vst.msk [vmem:[#allocation6 + $0x2] sm:$0x1] %vm1639, %v1675
    %1681 = vst.msk [vmem:[#allocation6 + $0xa] sm:$0x1] %vm1639, %v1677
    %v1682 = vrot.slane %v1606, 1
    %v1683 = vrot.slane %v1606, 2
    %v1684 = vrot.slane %v1606, 3
    %v1685 = vsel %vm1618, %v1606, %v1682
    %v1686 = vsel %vm1620, %v1683, %v1684
    %v1687 = vsel %vm1622, %v1685, %v1686
    %v1688 = vsel %vm1624, %v1606, %v1682
    %v1689 = vsel %vm1626, %v1683, %v1684
    %v1690 = vsel %vm1628, %v1688, %v1689
    %v1691 = vrot.slane %v1690, 1
    %v1692 = vperm.slane %v1687, 0
    %v1693 = vperm.slane %v1691, 0
    %1694 = vrot.lane.b32.xlu0 %v1692, 96
    %v1695 = vpop.permute.xlu0 %1694
    %1696 = vrot.lane.b32.xlu0 %v1693, 96
    %v1697 = vpop.permute.xlu0 %1696
    %1700 = vst.msk [vmem:[#allocation6 + $0x3] sm:$0x1] %vm1639, %v1695
    %1701 = vst.msk [vmem:[#allocation6 + $0xb] sm:$0x1] %vm1639, %v1697
    %v1702 = vrot.slane %v1601, 1
    %v1703 = vrot.slane %v1601, 3
    %v1704 = vsel %vm1618, %v1601, %v1702
    %v1705 = vsel %vm1620, %v1607, %v1703
    %v1706 = vsel %vm1622, %v1704, %v1705
    %v1707 = vsel %vm1624, %v1601, %v1702
    %v1708 = vsel %vm1626, %v1607, %v1703
    %v1709 = vsel %vm1628, %v1707, %v1708
    %v1710 = vrot.slane %v1709, 1
    %v1711 = vperm.slane %v1706, 0
    %v1712 = vperm.slane %v1710, 0
    %1713 = vrot.lane.b32.xlu0 %v1711, 96
    %v1714 = vpop.permute.xlu0 %1713
    %1715 = vrot.lane.b32.xlu0 %v1712, 96
    %v1716 = vpop.permute.xlu0 %1715
    %1719 = vst.msk [vmem:[#allocation6 + $0x4] sm:$0x1] %vm1639, %v1714
    %1720 = vst.msk [vmem:[#allocation6 + $0xc] sm:$0x1] %vm1639, %v1716
    %v1721 = vrot.slane %v1607, 1
    %v1722 = vrot.slane %v1607, 2
    %v1723 = vrot.slane %v1607, 3
    %v1724 = vsel %vm1618, %v1607, %v1721
    %v1725 = vsel %vm1620, %v1722, %v1723
    %v1726 = vsel %vm1622, %v1724, %v1725
    %v1727 = vsel %vm1624, %v1607, %v1721
    %v1728 = vsel %vm1626, %v1722, %v1723
    %v1729 = vsel %vm1628, %v1727, %v1728
    %v1730 = vrot.slane %v1729, 1
    %v1731 = vperm.slane %v1726, 0
    %v1732 = vperm.slane %v1730, 0
    %1733 = vrot.lane.b32.xlu0 %v1731, 96
    %v1734 = vpop.permute.xlu0 %1733
    %1735 = vrot.lane.b32.xlu0 %v1732, 96
    %v1736 = vpop.permute.xlu0 %1735
    %1739 = vst.msk [vmem:[#allocation6 + $0x5] sm:$0x1] %vm1639, %v1734
    %1740 = vst.msk [vmem:[#allocation6 + $0xd] sm:$0x1] %vm1639, %v1736
    %v1741 = vrot.slane %v1608, 1
    %v1742 = vrot.slane %v1608, 2
    %v1743 = vrot.slane %v1608, 3
    %v1744 = vsel %vm1618, %v1608, %v1741
    %v1745 = vsel %vm1620, %v1742, %v1743
    %v1746 = vsel %vm1622, %v1744, %v1745
    %v1747 = vsel %vm1624, %v1608, %v1741
    %v1748 = vsel %vm1626, %v1742, %v1743
    %v1749 = vsel %vm1628, %v1747, %v1748
    %v1750 = vrot.slane %v1749, 1
    %v1751 = vperm.slane %v1746, 0
    %v1752 = vperm.slane %v1750, 0
    %1753 = vrot.lane.b32.xlu0 %v1751, 96
    %v1754 = vpop.permute.xlu0 %1753
    %1755 = vrot.lane.b32.xlu0 %v1752, 96
    %v1756 = vpop.permute.xlu0 %1755
    %1759 = vst.msk [vmem:[#allocation6 + $0x6] sm:$0x1] %vm1639, %v1754
    %1760 = vst.msk [vmem:[#allocation6 + $0xe] sm:$0x1] %vm1639, %v1756
    %v1761 = vrot.slane %v1609, 1
    %v1762 = vrot.slane %v1609, 2
    %v1763 = vrot.slane %v1609, 3
    %v1764 = vsel %vm1618, %v1609, %v1761
    %v1765 = vsel %vm1620, %v1762, %v1763
    %v1766 = vsel %vm1622, %v1764, %v1765
    %v1767 = vsel %vm1624, %v1609, %v1761
    %v1768 = vsel %vm1626, %v1762, %v1763
    %v1769 = vsel %vm1628, %v1767, %v1768
    %v1770 = vrot.slane %v1769, 1
    %v1771 = vperm.slane %v1766, 0
    %v1772 = vperm.slane %v1770, 0
    %1773 = vrot.lane.b32.xlu0 %v1771, 96
    %v1774 = vpop.permute.xlu0 %1773
    %1775 = vrot.lane.b32.xlu0 %v1772, 96
    %v1776 = vpop.permute.xlu0 %1775
    %1779 = vst.msk [vmem:[#allocation6 + $0x7] sm:$0x1] %vm1639, %v1774
    %1780 = vst.msk [vmem:[#allocation6 + $0xf] sm:$0x1] %vm1639, %v1776
    %v1781 = vld [vmem:[%s3] sm:$0x3f]
    %v1782 = vlaneseq
    %v1783 = vshrl.u32 %v1782, 7
    %v1784 = vld [vmem:[%s17] sm:$0x1]
    %v1786 = vperm.slane %v1784, 0
    %v1788 = vperm.slane %v1781, 0
    %vm1789 = vcmp.eq.s32.totalorder %v1783, %v1788
    %v1790 = vsel %vm1789, 1, 0
    %v1791 = vcvt.s32.f32 %v1790
    %v1792 = vperm.slane %v1791, 0
    %v1793 = vlaneseq
    %v1794 = vshrl.u32 %v1793, 7
    %1796 = vset.pattern.permute.xlu0 %v1794
    %1797 = vperm.xlu0 %1796, %v1792
    %v1798 = vpop.permute.xlu0 %1797
    %v1799 = vperm.slane %v1791, 1
    %v1800 = vlaneseq
    %v1801 = vshrl.u32 %v1800, 7
    %1803 = vset.pattern.permute.xlu0 %v1801
    %1804 = vperm.xlu0 %1803, %v1799
    %v1805 = vpop.permute.xlu0 %1804
    %v1806 = vperm.slane %v1791, 2
    %v1807 = vlaneseq
    %v1808 = vshrl.u32 %v1807, 7
    %1810 = vset.pattern.permute.xlu0 %v1808
    %1811 = vperm.xlu0 %1810, %v1806
    %v1812 = vpop.permute.xlu0 %1811
    %v1813 = vperm.slane %v1791, 3
    %v1814 = vlaneseq
    %v1815 = vshrl.u32 %v1814, 7
    %1817 = vset.pattern.permute.xlu0 %v1815
    %1818 = vperm.xlu0 %1817, %v1813
    %v1819 = vpop.permute.xlu0 %1818
    %v1820 = vperm.slane %v1791, 4
    %v1821 = vlaneseq
    %v1822 = vshrl.u32 %v1821, 7
    %1824 = vset.pattern.permute.xlu0 %v1822
    %1825 = vperm.xlu0 %1824, %v1820
    %v1826 = vpop.permute.xlu0 %1825
    %v1827 = vperm.slane %v1791, 5
    %v1828 = vlaneseq
    %v1829 = vshrl.u32 %v1828, 7
    %1831 = vset.pattern.permute.xlu0 %v1829
    %1832 = vperm.xlu0 %1831, %v1827
    %v1833 = vpop.permute.xlu0 %1832
    %v1834 = vperm.slane %v1791, 6
    %v1835 = vlaneseq
    %v1836 = vshrl.u32 %v1835, 7
    %1838 = vset.pattern.permute.xlu0 %v1836
    %1839 = vperm.xlu0 %1838, %v1834
    %v1840 = vpop.permute.xlu0 %1839
    %v1841 = vperm.slane %v1791, 7
    %v1842 = vlaneseq
    %v1843 = vshrl.u32 %v1842, 7
    %1845 = vset.pattern.permute.xlu0 %v1843
    %1846 = vperm.xlu0 %1845, %v1841
    %v1847 = vpop.permute.xlu0 %1846
    %v1848 = vmul.f32 %v1798, %v1600
    %v1849 = vmul.f32 %v1805, %v1604
    %v1850 = vmul.f32 %v1812, %v1605
    %v1851 = vmul.f32 %v1819, %v1606
    %v1852 = vmul.f32 %v1826, %v1601
    %v1853 = vmul.f32 %v1833, %v1607
    %v1854 = vmul.f32 %v1840, %v1608
    %v1855 = vmul.f32 %v1847, %v1609
    %v1856 = vsel %vm460, %v1848, 0.0
    %v1857 = vsel %vm460, %v1849, 0.0
    %v1858 = vadd.f32 %v1856, %v1857
    %v1859 = vsel %vm460, %v1850, 0.0
    %v1860 = vadd.f32 %v1858, %v1859
    %v1861 = vsel %vm460, %v1851, 0.0
    %v1862 = vadd.f32 %v1860, %v1861
    %v1863 = vsel %vm460, %v1852, 0.0
    %v1864 = vadd.f32 %v1862, %v1863
    %v1865 = vsel %vm460, %v1853, 0.0
    %v1866 = vadd.f32 %v1864, %v1865
    %v1867 = vsel %vm460, %v1854, 0.0
    %v1868 = vadd.f32 %v1866, %v1867
    %v1869 = vsel %vm460, %v1855, 0.0
    %v1870 = vadd.f32 %v1868, %v1869
    %v1871 = vperm.slane %v1781, 1
    %vm1872 = vcmp.eq.s32.totalorder %v1783, %v1871
    %v1873 = vsel %vm1872, 1, 0
    %v1874 = vcvt.s32.f32 %v1873
    %v1875 = vperm.slane %v1874, 0
    %v1876 = vlaneseq
    %v1877 = vshrl.u32 %v1876, 7
    %1879 = vset.pattern.permute.xlu0 %v1877
    %1880 = vperm.xlu0 %1879, %v1875
    %v1881 = vpop.permute.xlu0 %1880
    %v1882 = vperm.slane %v1874, 1
    %v1883 = vlaneseq
    %v1884 = vshrl.u32 %v1883, 7
    %1886 = vset.pattern.permute.xlu0 %v1884
    %1887 = vperm.xlu0 %1886, %v1882
    %v1888 = vpop.permute.xlu0 %1887
    %v1889 = vperm.slane %v1874, 2
    %v1890 = vlaneseq
    %v1891 = vshrl.u32 %v1890, 7
    %1893 = vset.pattern.permute.xlu0 %v1891
    %1894 = vperm.xlu0 %1893, %v1889
    %v1895 = vpop.permute.xlu0 %1894
    %v1896 = vperm.slane %v1874, 3
    %v1897 = vlaneseq
    %v1898 = vshrl.u32 %v1897, 7
    %1900 = vset.pattern.permute.xlu0 %v1898
    %1901 = vperm.xlu0 %1900, %v1896
    %v1902 = vpop.permute.xlu0 %1901
    %v1903 = vperm.slane %v1874, 4
    %v1904 = vlaneseq
    %v1905 = vshrl.u32 %v1904, 7
    %1907 = vset.pattern.permute.xlu0 %v1905
    %1908 = vperm.xlu0 %1907, %v1903
    %v1909 = vpop.permute.xlu0 %1908
    %v1910 = vperm.slane %v1874, 5
    %v1911 = vlaneseq
    %v1912 = vshrl.u32 %v1911, 7
    %1914 = vset.pattern.permute.xlu0 %v1912
    %1915 = vperm.xlu0 %1914, %v1910
    %v1916 = vpop.permute.xlu0 %1915
    %v1917 = vperm.slane %v1874, 6
    %v1918 = vlaneseq
    %v1919 = vshrl.u32 %v1918, 7
    %1921 = vset.pattern.permute.xlu0 %v1919
    %1922 = vperm.xlu0 %1921, %v1917
    %v1923 = vpop.permute.xlu0 %1922
    %v1924 = vperm.slane %v1874, 7
    %v1925 = vlaneseq
    %v1926 = vshrl.u32 %v1925, 7
    %1928 = vset.pattern.permute.xlu0 %v1926
    %1929 = vperm.xlu0 %1928, %v1924
    %v1930 = vpop.permute.xlu0 %1929
    %v1931 = vmul.f32 %v1881, %v1600
    %v1932 = vmul.f32 %v1888, %v1604
    %v1933 = vmul.f32 %v1895, %v1605
    %v1934 = vmul.f32 %v1902, %v1606
    %v1935 = vmul.f32 %v1909, %v1601
    %v1936 = vmul.f32 %v1916, %v1607
    %v1937 = vmul.f32 %v1923, %v1608
    %v1938 = vmul.f32 %v1930, %v1609
    %v1939 = vsel %vm460, %v1931, 0.0
    %v1940 = vsel %vm460, %v1932, 0.0
    %v1941 = vadd.f32 %v1939, %v1940
    %v1942 = vsel %vm460, %v1933, 0.0
    %v1943 = vadd.f32 %v1941, %v1942
    %v1944 = vsel %vm460, %v1934, 0.0
    %v1945 = vadd.f32 %v1943, %v1944
    %v1946 = vsel %vm460, %v1935, 0.0
    %v1947 = vadd.f32 %v1945, %v1946
    %v1948 = vsel %vm460, %v1936, 0.0
    %v1949 = vadd.f32 %v1947, %v1948
    %v1950 = vsel %vm460, %v1937, 0.0
    %v1951 = vadd.f32 %v1949, %v1950
    %v1952 = vsel %vm460, %v1938, 0.0
    %v1953 = vadd.f32 %v1951, %v1952
    %v1954 = vperm.slane %v1781, 2
    %vm1955 = vcmp.eq.s32.totalorder %v1783, %v1954
    %v1956 = vsel %vm1955, 1, 0
    %v1957 = vcvt.s32.f32 %v1956
    %v1958 = vperm.slane %v1957, 0
    %v1959 = vlaneseq
    %v1960 = vshrl.u32 %v1959, 7
    %1962 = vset.pattern.permute.xlu0 %v1960
    %1963 = vperm.xlu0 %1962, %v1958
    %v1964 = vpop.permute.xlu0 %1963
    %v1965 = vperm.slane %v1957, 1
    %v1966 = vlaneseq
    %v1967 = vshrl.u32 %v1966, 7
    %1969 = vset.pattern.permute.xlu0 %v1967
    %1970 = vperm.xlu0 %1969, %v1965
    %v1971 = vpop.permute.xlu0 %1970
    %v1972 = vperm.slane %v1957, 2
    %v1973 = vlaneseq
    %v1974 = vshrl.u32 %v1973, 7
    %1976 = vset.pattern.permute.xlu0 %v1974
    %1977 = vperm.xlu0 %1976, %v1972
    %v1978 = vpop.permute.xlu0 %1977
    %v1979 = vperm.slane %v1957, 3
    %v1980 = vlaneseq
    %v1981 = vshrl.u32 %v1980, 7
    %1983 = vset.pattern.permute.xlu0 %v1981
    %1984 = vperm.xlu0 %1983, %v1979
    %v1985 = vpop.permute.xlu0 %1984
    %v1986 = vperm.slane %v1957, 4
    %v1987 = vlaneseq
    %v1988 = vshrl.u32 %v1987, 7
    %1990 = vset.pattern.permute.xlu0 %v1988
    %1991 = vperm.xlu0 %1990, %v1986
    %v1992 = vpop.permute.xlu0 %1991
    %v1993 = vperm.slane %v1957, 5
    %v1994 = vlaneseq
    %v1995 = vshrl.u32 %v1994, 7
    %1997 = vset.pattern.permute.xlu0 %v1995
    %1998 = vperm.xlu0 %1997, %v1993
    %v1999 = vpop.permute.xlu0 %1998
    %v2000 = vperm.slane %v1957, 6
    %v2001 = vlaneseq
    %v2002 = vshrl.u32 %v2001, 7
    %2004 = vset.pattern.permute.xlu0 %v2002
    %2005 = vperm.xlu0 %2004, %v2000
    %v2006 = vpop.permute.xlu0 %2005
    %v2007 = vperm.slane %v1957, 7
    %v2008 = vlaneseq
    %v2009 = vshrl.u32 %v2008, 7
    %2011 = vset.pattern.permute.xlu0 %v2009
    %2012 = vperm.xlu0 %2011, %v2007
    %v2013 = vpop.permute.xlu0 %2012
    %v2014 = vmul.f32 %v1964, %v1600
    %v2015 = vmul.f32 %v1971, %v1604
    %v2016 = vmul.f32 %v1978, %v1605
    %v2017 = vmul.f32 %v1985, %v1606
    %v2018 = vmul.f32 %v1992, %v1601
    %v2019 = vmul.f32 %v1999, %v1607
    %v2020 = vmul.f32 %v2006, %v1608
    %v2021 = vmul.f32 %v2013, %v1609
    %v2022 = vsel %vm460, %v2014, 0.0
    %v2023 = vsel %vm460, %v2015, 0.0
    %v2024 = vadd.f32 %v2022, %v2023
    %v2025 = vsel %vm460, %v2016, 0.0
    %v2026 = vadd.f32 %v2024, %v2025
    %v2027 = vsel %vm460, %v2017, 0.0
    %v2028 = vadd.f32 %v2026, %v2027
    %v2029 = vsel %vm460, %v2018, 0.0
    %v2030 = vadd.f32 %v2028, %v2029
    %v2031 = vsel %vm460, %v2019, 0.0
    %v2032 = vadd.f32 %v2030, %v2031
    %v2033 = vsel %vm460, %v2020, 0.0
    %v2034 = vadd.f32 %v2032, %v2033
    %v2035 = vsel %vm460, %v2021, 0.0
    %v2036 = vadd.f32 %v2034, %v2035
    %v2037 = vperm.slane %v1781, 3
    %vm2038 = vcmp.eq.s32.totalorder %v1783, %v2037
    %v2039 = vsel %vm2038, 1, 0
    %v2040 = vcvt.s32.f32 %v2039
    %v2041 = vperm.slane %v2040, 0
    %v2042 = vlaneseq
    %v2043 = vshrl.u32 %v2042, 7
    %2045 = vset.pattern.permute.xlu0 %v2043
    %2046 = vperm.xlu0 %2045, %v2041
    %v2047 = vpop.permute.xlu0 %2046
    %v2048 = vperm.slane %v2040, 1
    %v2049 = vlaneseq
    %v2050 = vshrl.u32 %v2049, 7
    %2052 = vset.pattern.permute.xlu0 %v2050
    %2053 = vperm.xlu0 %2052, %v2048
    %v2054 = vpop.permute.xlu0 %2053
    %v2055 = vperm.slane %v2040, 2
    %v2056 = vlaneseq
    %v2057 = vshrl.u32 %v2056, 7
    %2059 = vset.pattern.permute.xlu0 %v2057
    %2060 = vperm.xlu0 %2059, %v2055
    %v2061 = vpop.permute.xlu0 %2060
    %v2062 = vperm.slane %v2040, 3
    %v2063 = vlaneseq
    %v2064 = vshrl.u32 %v2063, 7
    %2066 = vset.pattern.permute.xlu0 %v2064
    %2067 = vperm.xlu0 %2066, %v2062
    %v2068 = vpop.permute.xlu0 %2067
    %v2069 = vperm.slane %v2040, 4
    %v2070 = vlaneseq
    %v2071 = vshrl.u32 %v2070, 7
    %2073 = vset.pattern.permute.xlu0 %v2071
    %2074 = vperm.xlu0 %2073, %v2069
    %v2075 = vpop.permute.xlu0 %2074
    %v2076 = vperm.slane %v2040, 5
    %v2077 = vlaneseq
    %v2078 = vshrl.u32 %v2077, 7
    %2080 = vset.pattern.permute.xlu0 %v2078
    %2081 = vperm.xlu0 %2080, %v2076
    %v2082 = vpop.permute.xlu0 %2081
    %v2083 = vperm.slane %v2040, 6
    %v2084 = vlaneseq
    %v2085 = vshrl.u32 %v2084, 7
    %2087 = vset.pattern.permute.xlu0 %v2085
    %2088 = vperm.xlu0 %2087, %v2083
    %v2089 = vpop.permute.xlu0 %2088
    %v2090 = vperm.slane %v2040, 7
    %v2091 = vlaneseq
    %v2092 = vshrl.u32 %v2091, 7
    %2094 = vset.pattern.permute.xlu0 %v2092
    %2095 = vperm.xlu0 %2094, %v2090
    %v2096 = vpop.permute.xlu0 %2095
    %v2097 = vmul.f32 %v2047, %v1600
    %v2098 = vmul.f32 %v2054, %v1604
    %v2099 = vmul.f32 %v2061, %v1605
    %v2100 = vmul.f32 %v2068, %v1606
    %v2101 = vmul.f32 %v2075, %v1601
    %v2102 = vmul.f32 %v2082, %v1607
    %v2103 = vmul.f32 %v2089, %v1608
    %v2104 = vmul.f32 %v2096, %v1609
    %v2105 = vsel %vm460, %v2097, 0.0
    %v2106 = vsel %vm460, %v2098, 0.0
    %v2107 = vadd.f32 %v2105, %v2106
    %v2108 = vsel %vm460, %v2099, 0.0
    %v2109 = vadd.f32 %v2107, %v2108
    %v2110 = vsel %vm460, %v2100, 0.0
    %v2111 = vadd.f32 %v2109, %v2110
    %v2112 = vsel %vm460, %v2101, 0.0
    %v2113 = vadd.f32 %v2111, %v2112
    %v2114 = vsel %vm460, %v2102, 0.0
    %v2115 = vadd.f32 %v2113, %v2114
    %v2116 = vsel %vm460, %v2103, 0.0
    %v2117 = vadd.f32 %v2115, %v2116
    %v2118 = vsel %vm460, %v2104, 0.0
    %v2119 = vadd.f32 %v2117, %v2118
    %v2120 = vperm.slane %v1781, 4
    %vm2121 = vcmp.eq.s32.totalorder %v1783, %v2120
    %v2122 = vsel %vm2121, 1, 0
    %v2123 = vcvt.s32.f32 %v2122
    %v2124 = vperm.slane %v2123, 0
    %v2125 = vlaneseq
    %v2126 = vshrl.u32 %v2125, 7
    %2128 = vset.pattern.permute.xlu0 %v2126
    %2129 = vperm.xlu0 %2128, %v2124
    %v2130 = vpop.permute.xlu0 %2129
    %v2131 = vperm.slane %v2123, 1
    %v2132 = vlaneseq
    %v2133 = vshrl.u32 %v2132, 7
    %2135 = vset.pattern.permute.xlu0 %v2133
    %2136 = vperm.xlu0 %2135, %v2131
    %v2137 = vpop.permute.xlu0 %2136
    %v2138 = vperm.slane %v2123, 2
    %v2139 = vlaneseq
    %v2140 = vshrl.u32 %v2139, 7
    %2142 = vset.pattern.permute.xlu0 %v2140
    %2143 = vperm.xlu0 %2142, %v2138
    %v2144 = vpop.permute.xlu0 %2143
    %v2145 = vperm.slane %v2123, 3
    %v2146 = vlaneseq
    %v2147 = vshrl.u32 %v2146, 7
    %2149 = vset.pattern.permute.xlu0 %v2147
    %2150 = vperm.xlu0 %2149, %v2145
    %v2151 = vpop.permute.xlu0 %2150
    %v2152 = vperm.slane %v2123, 4
    %v2153 = vlaneseq
    %v2154 = vshrl.u32 %v2153, 7
    %2156 = vset.pattern.permute.xlu0 %v2154
    %2157 = vperm.xlu0 %2156, %v2152
    %v2158 = vpop.permute.xlu0 %2157
    %v2159 = vperm.slane %v2123, 5
    %v2160 = vlaneseq
    %v2161 = vshrl.u32 %v2160, 7
    %2163 = vset.pattern.permute.xlu0 %v2161
    %2164 = vperm.xlu0 %2163, %v2159
    %v2165 = vpop.permute.xlu0 %2164
    %v2166 = vperm.slane %v2123, 6
    %v2167 = vlaneseq
    %v2168 = vshrl.u32 %v2167, 7
    %2170 = vset.pattern.permute.xlu0 %v2168
    %2171 = vperm.xlu0 %2170, %v2166
    %v2172 = vpop.permute.xlu0 %2171
    %v2173 = vperm.slane %v2123, 7
    %v2174 = vlaneseq
    %v2175 = vshrl.u32 %v2174, 7
    %2177 = vset.pattern.permute.xlu0 %v2175
    %2178 = vperm.xlu0 %2177, %v2173
    %v2179 = vpop.permute.xlu0 %2178
    %v2180 = vmul.f32 %v2130, %v1600
    %v2181 = vmul.f32 %v2137, %v1604
    %v2182 = vmul.f32 %v2144, %v1605
    %v2183 = vmul.f32 %v2151, %v1606
    %v2184 = vmul.f32 %v2158, %v1601
    %v2185 = vmul.f32 %v2165, %v1607
    %v2186 = vmul.f32 %v2172, %v1608
    %v2187 = vmul.f32 %v2179, %v1609
    %v2188 = vsel %vm460, %v2180, 0.0
    %v2189 = vsel %vm460, %v2181, 0.0
    %v2190 = vadd.f32 %v2188, %v2189
    %v2191 = vsel %vm460, %v2182, 0.0
    %v2192 = vadd.f32 %v2190, %v2191
    %v2193 = vsel %vm460, %v2183, 0.0
    %v2194 = vadd.f32 %v2192, %v2193
    %v2195 = vsel %vm460, %v2184, 0.0
    %v2196 = vadd.f32 %v2194, %v2195
    %v2197 = vsel %vm460, %v2185, 0.0
    %v2198 = vadd.f32 %v2196, %v2197
    %v2199 = vsel %vm460, %v2186, 0.0
    %v2200 = vadd.f32 %v2198, %v2199
    %v2201 = vsel %vm460, %v2187, 0.0
    %v2202 = vadd.f32 %v2200, %v2201
    %v2204 = vrot.slane %v1870, 6
    %v2207 = vrot.slane %v1953, 4
    %v2210 = vrot.slane %v2036, 2
    %v2213 = vrot.slane %v2202, 6
    %v2215 = vsel %vm1622, %v1786, %v2204
    %vm2216 = vcmask 1043456
    %v2217 = vsel %vm2216, %v2215, %v2207
    %vm2218 = vcmask 1045504
    %v2219 = vsel %vm2218, %v2217, %v2210
    %v2220 = vsel %vm1622, %v2119, %v2213
    %v2221 = vpack.c.bf16 %v2220, %v2219
    %v2222 = vld [vmem:[#allocation16] sm:$0xf]
    %v2223 = vld [vmem:[#allocation16 + $0x4] sm:$0xf]
    %v2224 = vld [vmem:[#allocation16 + $0x8] sm:$0xf]
    %v2225 = vld [vmem:[#allocation16 + $0xc] sm:$0xf]
    %v2226 = vld [vmem:[%s16] sm:$0x1]
    %v2228 = vperm.slane %v2226, 0
    %v2234 = vunpack.c.l.b16 %v2222
    %v2235 = vunpack.c.l.b16 %v2223
    %v2236 = vunpack.c.l.b16 %v2224
    %v2237 = vunpack.c.l.b16 %v2225
    %v2238 = vpack.c.b16 %v2235, %v2234
    %v2239 = vpack.c.b16 %v2237, %v2236
    %v2243 = vsel %vm324, %v2221, 0
    %2245 = vmatpush.bf16.msra.mxu0 0
    %2246 = vmatpush.bf16.msra.mxu0 0
    %2247 = vmatpush.bf16.msra.mxu0 0
    %2248 = vmatpush.bf16.msra.mxu0 0
    %2249 = vmatpush.bf16.msra.mxu0 0
    %2250 = vmatpush.bf16.msra.mxu0 0
    %2251 = vmatpush.bf16.msra.mxu0 %v2239
    %2252 = vmatpush.bf16.msra.mxu0 %v2238
    %2253 = vmatmul.bf16.gmra.mxu0 %v2243
    %v2254 = vpop.f32.mrf.mxu0
    %v2255 = vadd.f32 %v2228, %v2254
    %v2256 = vpop.f32.mrf.mxu0
    %v2257 = vadd.f32 %v2228, %v2256
    %2258 = vdwg.mxu0
    %v2261 = vrot.slane %v2255, 2
    %v2262 = vrot.slane %v2255, 4
    %v2263 = vrot.slane %v2255, 6
    %v2264 = vrot.slane %v2257, 2
    %2269 = vst [vmem:[#allocation7] sm:$0x3] %v2255
    %2270 = vst [vmem:[#allocation7 + $0x2] sm:$0x3] %v2261
    %2271 = vst [vmem:[#allocation7 + $0x4] sm:$0x3] %v2262
    %2272 = vst [vmem:[#allocation7 + $0x6] sm:$0x3] %v2263
    %2273 = vst [vmem:[#allocation7 + $0x8] sm:$0x3] %v2257
    %2274 = vst [vmem:[#allocation7 + $0xa] sm:$0x3] %v2264
    %v2275 = vld [vmem:[%s1] sm:$0x3]
    %vm2276 = vcmp.gt.f32.partialorder %v2275, 0.5
    %v2277 = vsel %vm2276, 0.0, -inf
    %v2278 = vld [vmem:[%s19] sm:$0x1]
    %v2279 = vld [vmem:[#allocation7] sm:$0x3]
    %v2280 = vadd.f32 %v2279, 0.0
    %v2281 = vmul.f32 %v2280, 0.5
    %v2282 = vtanh.pop %v2281
    %v2283 = vadd.f32 %v2282, 1.0
    %v2284 = vmul.f32 %v2283, 0.5
    %v2285 = vtanh.pop %v2280
    %v2286 = vmul.f32 %v2284, 0.0
    %2288 = vrot.lane.b32.xlu0 %v2285, 32
    %v2289 = vpop.permute.xlu0 %2288
    %v2291 = vmul.f32 %v2284, %v2289
    %2293 = vrot.lane.b32.xlu0 %v2291, 32
    %v2294 = vpop.permute.xlu0 %2293
    %v2296 = vadd.f32 %v2286, %v2294
    %v2297 = vtanh.pop %v2296
    %2299 = vrot.lane.b32.xlu0 %v2297, 32
    %v2300 = vpop.permute.xlu0 %2299
    %v2302 = vmul.f32 %v2284, %v2300
    %v2303 = vpack.c.bf16 %v2302, %v2302
    %v2304 = vld [vmem:[#allocation17] sm:$0xff]
    %v2305 = vld [vmem:[#allocation17 + $0x8] sm:$0xff]
    %v2306 = vld [vmem:[#allocation17 + $0x10] sm:$0xff]
    %v2307 = vld [vmem:[#allocation17 + $0x18] sm:$0xff]
    %2309 = vrot.lane.b32.xlu0 %v2303, 64
    %v2310 = vpop.permute.xlu0 %2309
    %v2315 = vunpack.c.l.b16 %v2304
    %v2316 = vunpack.c.h.b16 %v2304
    %v2317 = vunpack.c.l.b16 %v2305
    %v2318 = vunpack.c.h.b16 %v2305
    %v2319 = vunpack.c.l.b16 %v2306
    %v2320 = vunpack.c.h.b16 %v2306
    %v2321 = vunpack.c.l.b16 %v2307
    %v2322 = vunpack.c.h.b16 %v2307
    %v2323 = vpack.c.b16 %v2317, %v2315
    %v2324 = vpack.c.b16 %v2318, %v2316
    %v2325 = vpack.c.b16 %v2321, %v2319
    %v2326 = vpack.c.b16 %v2322, %v2320
    %v2332 = vsel %vm324, %v2310, 0
    %2334 = vmatpush.bf16.msra.mxu0 0
    %2335 = vmatpush.bf16.msra.mxu0 0
    %2336 = vmatpush.bf16.msra.mxu0 0
    %2337 = vmatpush.bf16.msra.mxu0 0
    %2338 = vmatpush.bf16.msra.mxu0 0
    %2339 = vmatpush.bf16.msra.mxu0 0
    %2340 = vmatpush.bf16.msra.mxu0 %v2325
    %2341 = vmatpush.bf16.msra.mxu0 %v2323
    %2342 = vmatmul.bf16.gmra.mxu0 %v2332
    %v2343 = vpop.f32.mrf.mxu0
    %v2344 = vadd.f32 0.0, %v2343
    %v2345 = vpop.f32.mrf.mxu0
    %2346 = vdwg.mxu0
    %2347 = vmatpush.bf16.msra.mxu0 0
    %2348 = vmatpush.bf16.msra.mxu0 0
    %2349 = vmatpush.bf16.msra.mxu0 0
    %2350 = vmatpush.bf16.msra.mxu0 0
    %2351 = vmatpush.bf16.msra.mxu0 0
    %2352 = vmatpush.bf16.msra.mxu0 0
    %2353 = vmatpush.bf16.msra.mxu0 %v2326
    %2354 = vmatpush.bf16.msra.mxu0 %v2324
    %2355 = vmatmul.bf16.gmra.mxu0 %v2332
    %v2356 = vpop.f32.mrf.mxu0
    %v2357 = vadd.f32 0.0, %v2356
    %v2358 = vpop.f32.mrf.mxu0
    %2359 = vdwg.mxu0
    %v2360 = vld [vmem:[#allocation6] sm:$0xff]
    %v2361 = vld [vmem:[#allocation6 + $0x8] sm:$0xff]
    %v2363 = vrot.slane %v2357, 1
    %v2364 = vperm.slane %v2357, 0
    %v2365 = vperm.slane %v2363, 0
    %v2368 = vadd.f32 %v2360, %v2364
    %v2369 = vadd.f32 %v2361, %v2365
    %v2370 = vtanh.pop %v2368
    %v2371 = vtanh.pop %v2369
    %v2373 = vperm.slane %v2278, 0
    %v2375 = vmul.f32 %v2370, %v2373
    %v2376 = vmul.f32 %v2371, %v2373
    %v2377 = vsel %vm324, %v2375, 0.0
    %2378 = vadd.xlane.f32.xlu0 %v2377
    %v2379 = vpop.xlane.xlu0 %2378
    %v2380 = vsel %vm324, %v2376, 0.0
    %2381 = vadd.xlane.f32.xlu0 %v2380
    %v2382 = vpop.xlane.xlu0 %2381
    %v2384 = vperm.slane %v2277, 0
    %v2385 = vlaneseq
    %v2386 = vshrl.u32 %v2385, 7
    %2388 = vset.pattern.permute.xlu0 %v2386
    %2389 = vperm.xlu0 %2388, %v2384
    %v2390 = vpop.permute.xlu0 %2389
    %v2391 = vperm.slane %v2277, 1
    %v2392 = vlaneseq
    %v2393 = vshrl.u32 %v2392, 7
    %2395 = vset.pattern.permute.xlu0 %v2393
    %2396 = vperm.xlu0 %2395, %v2391
    %v2397 = vpop.permute.xlu0 %2396
    %v2400 = vadd.f32 %v2379, %v2390
    %v2401 = vadd.f32 %v2382, %v2397
    %2404 = vset.pattern.permute.xlu0 0
    %2405 = vperm.xlu0 %2404, %v2400
    %v2406 = vpop.permute.xlu0 %2405
    %2407 = vset.pattern.permute.xlu0 0
    %2408 = vperm.xlu0 %2407, %v2401
    %v2409 = vpop.permute.xlu0 %2408
    %v2410 = vlaneseq
    %v2411 = vand.u32 %v2410, 127
    %v2412 = vperm.slane %v2406, %v2411
    %v2413 = vperm.slane %v2409, %v2411
    %v2414 = vsel %vm1624, %v2413, %v2412
    %vm2416 = vcmask 58368
    %v2417 = vsel %vm2416, %v2414, -inf
    %2418 = vmax.xlane.f32.xlu0 %v2417
    %v2419 = vpop.xlane.xlu0 %2418
    %v2420 = vmax.f32 %v2419, 0.0
    %v2422 = vperm.slane %v2420, 0
    %v2423 = vperm.slane %v2420, 1
    %v2426 = vsub.f32 %v2400, %v2422
    %v2427 = vsub.f32 %v2401, %v2423
    %v2428 = vmul.f32 %v2426, 1.442695
    %v2429 = vpow.pop %v2428
    %v2430 = vmul.f32 %v2427, 1.442695
    %v2431 = vpow.pop %v2430
    %2434 = vset.pattern.permute.xlu0 0
    %2435 = vperm.xlu0 %2434, %v2429
    %v2436 = vpop.permute.xlu0 %2435
    %2437 = vset.pattern.permute.xlu0 0
    %2438 = vperm.xlu0 %2437, %v2431
    %v2439 = vpop.permute.xlu0 %2438
    %v2440 = vperm.slane %v2436, %v2411
    %v2441 = vperm.slane %v2439, %v2411
    %v2442 = vsel %vm1624, %v2441, %v2440
    %v2444 = vsel %vm2416, %v2442, 0.0
    %2445 = vadd.xlane.f32.xlu0 %v2444
    %v2446 = vpop.xlane.xlu0 %2445
    %v2447 = vsub.f32 0.0, %v2420
    %v2448 = vmul.f32 %v2447, 1.442695
    %v2449 = vpow.pop %v2448
    %v2450 = vadd.f32 %v2446, %v2449
    %v2451 = vlog2.pop %v2450
    %v2452 = vmul.f32 %v2451, 0.6931472
    %v2453 = vadd.f32 %v2452, %v2420
    %v2455 = vperm.slane %v2453, 0
    %v2456 = vperm.slane %v2453, 1
    %v2459 = vsub.f32 %v2400, %v2455
    %v2460 = vsub.f32 %v2401, %v2456
    %v2461 = vsub.f32 0.0, %v2453
    %2464 = vset.pattern.permute.xlu0 0
    %2465 = vperm.xlu0 %2464, %v2459
    %v2466 = vpop.permute.xlu0 %2465
    %2467 = vset.pattern.permute.xlu0 0
    %2468 = vperm.xlu0 %2467, %v2460
    %v2469 = vpop.permute.xlu0 %2468
    %v2470 = vperm.slane %v2466, %v2411
    %v2471 = vperm.slane %v2469, %v2411
    %v2472 = vsel %vm1624, %v2471, %v2470
    %vm2474 = vcmask 64512
    %v2475 = vsel %vm2474, %v2472, %v2461
    %vm2476 = vcmask 66560
    %2477 = vst.msk [vmem:[#allocation19] sm:$0x3] %vm2476, %v2475
    %s2478 = scalar_lea.vmem [#allocation7], 2
    %v2479 = vld [vmem:[%s2478] sm:$0x3]
    %v2480 = vadd.f32 %v2479, %v2344
    %v2481 = vmul.f32 %v2480, 0.5
    %v2482 = vtanh.pop %v2481
    %v2483 = vadd.f32 %v2482, 1.0
    %v2484 = vmul.f32 %v2483, 0.5
    %v2485 = vtanh.pop %v2480
    %v2486 = vmul.f32 %v2484, %v2296
    %2488 = vrot.lane.b32.xlu0 %v2485, 32
    %v2489 = vpop.permute.xlu0 %2488
    %v2491 = vmul.f32 %v2484, %v2489
    %2493 = vrot.lane.b32.xlu0 %v2491, 32
    %v2494 = vpop.permute.xlu0 %2493
    %v2496 = vadd.f32 %v2486, %v2494
    %v2497 = vtanh.pop %v2496
    %2499 = vrot.lane.b32.xlu0 %v2497, 32
    %v2500 = vpop.permute.xlu0 %2499
    %v2502 = vmul.f32 %v2484, %v2500
    %v2503 = vpack.c.bf16 %v2502, %v2502
    %v2504 = vld [vmem:[#allocation17] sm:$0xff]
    %v2505 = vld [vmem:[#allocation17 + $0x8] sm:$0xff]
    %v2506 = vld [vmem:[#allocation17 + $0x10] sm:$0xff]
    %v2507 = vld [vmem:[#allocation17 + $0x18] sm:$0xff]
    %2509 = vrot.lane.b32.xlu0 %v2503, 64
    %v2510 = vpop.permute.xlu0 %2509
    %v2515 = vunpack.c.l.b16 %v2504
    %v2516 = vunpack.c.h.b16 %v2504
    %v2517 = vunpack.c.l.b16 %v2505
    %v2518 = vunpack.c.h.b16 %v2505
    %v2519 = vunpack.c.l.b16 %v2506
    %v2520 = vunpack.c.h.b16 %v2506
    %v2521 = vunpack.c.l.b16 %v2507
    %v2522 = vunpack.c.h.b16 %v2507
    %v2523 = vpack.c.b16 %v2517, %v2515
    %v2524 = vpack.c.b16 %v2518, %v2516
    %v2525 = vpack.c.b16 %v2521, %v2519
    %v2526 = vpack.c.b16 %v2522, %v2520
    %v2532 = vsel %vm324, %v2510, 0
    %2534 = vmatpush.bf16.msra.mxu0 0
    %2535 = vmatpush.bf16.msra.mxu0 0
    %2536 = vmatpush.bf16.msra.mxu0 0
    %2537 = vmatpush.bf16.msra.mxu0 0
    %2538 = vmatpush.bf16.msra.mxu0 0
    %2539 = vmatpush.bf16.msra.mxu0 0
    %2540 = vmatpush.bf16.msra.mxu0 %v2525
    %2541 = vmatpush.bf16.msra.mxu0 %v2523
    %2542 = vmatmul.bf16.gmra.mxu0 %v2532
    %v2543 = vpop.f32.mrf.mxu0
    %v2544 = vadd.f32 0.0, %v2543
    %v2545 = vpop.f32.mrf.mxu0
    %2546 = vdwg.mxu0
    %2547 = vmatpush.bf16.msra.mxu0 0
    %2548 = vmatpush.bf16.msra.mxu0 0
    %2549 = vmatpush.bf16.msra.mxu0 0
    %2550 = vmatpush.bf16.msra.mxu0 0
    %2551 = vmatpush.bf16.msra.mxu0 0
    %2552 = vmatpush.bf16.msra.mxu0 0
    %2553 = vmatpush.bf16.msra.mxu0 %v2526
    %2554 = vmatpush.bf16.msra.mxu0 %v2524
    %2555 = vmatmul.bf16.gmra.mxu0 %v2532
    %v2556 = vpop.f32.mrf.mxu0
    %v2557 = vadd.f32 0.0, %v2556
    %v2558 = vpop.f32.mrf.mxu0
    %2559 = vdwg.mxu0
    %v2560 = vld [vmem:[#allocation6] sm:$0xff]
    %v2561 = vld [vmem:[#allocation6 + $0x8] sm:$0xff]
    %v2563 = vrot.slane %v2557, 1
    %v2564 = vperm.slane %v2557, 0
    %v2565 = vperm.slane %v2563, 0
    %v2568 = vadd.f32 %v2560, %v2564
    %v2569 = vadd.f32 %v2561, %v2565
    %v2570 = vtanh.pop %v2568
    %v2571 = vtanh.pop %v2569
    %v2572 = vmul.f32 %v2570, %v2373
    %v2573 = vmul.f32 %v2571, %v2373
    %v2574 = vsel %vm324, %v2572, 0.0
    %2575 = vadd.xlane.f32.xlu0 %v2574
    %v2576 = vpop.xlane.xlu0 %2575
    %v2577 = vsel %vm324, %v2573, 0.0
    %2578 = vadd.xlane.f32.xlu0 %v2577
    %v2579 = vpop.xlane.xlu0 %2578
    %v2580 = vadd.f32 %v2576, %v2390
    %v2581 = vadd.f32 %v2579, %v2397
    %2584 = vset.pattern.permute.xlu0 0
    %2585 = vperm.xlu0 %2584, %v2580
    %v2586 = vpop.permute.xlu0 %2585
    %2587 = vset.pattern.permute.xlu0 0
    %2588 = vperm.xlu0 %2587, %v2581
    %v2589 = vpop.permute.xlu0 %2588
    %v2590 = vperm.slane %v2586, %v2411
    %v2591 = vperm.slane %v2589, %v2411
    %v2592 = vsel %vm1624, %v2591, %v2590
    %v2594 = vsel %vm2416, %v2592, -inf
    %2595 = vmax.xlane.f32.xlu0 %v2594
    %v2596 = vpop.xlane.xlu0 %2595
    %v2597 = vmax.f32 %v2596, 0.0
    %v2599 = vperm.slane %v2597, 0
    %v2600 = vperm.slane %v2597, 1
    %v2603 = vsub.f32 %v2580, %v2599
    %v2604 = vsub.f32 %v2581, %v2600
    %v2605 = vmul.f32 %v2603, 1.442695
    %v2606 = vpow.pop %v2605
    %v2607 = vmul.f32 %v2604, 1.442695
    %v2608 = vpow.pop %v2607
    %2611 = vset.pattern.permute.xlu0 0
    %2612 = vperm.xlu0 %2611, %v2606
    %v2613 = vpop.permute.xlu0 %2612
    %2614 = vset.pattern.permute.xlu0 0
    %2615 = vperm.xlu0 %2614, %v2608
    %v2616 = vpop.permute.xlu0 %2615
    %v2617 = vperm.slane %v2613, %v2411
    %v2618 = vperm.slane %v2616, %v2411
    %v2619 = vsel %vm1624, %v2618, %v2617
    %v2621 = vsel %vm2416, %v2619, 0.0
    %2622 = vadd.xlane.f32.xlu0 %v2621
    %v2623 = vpop.xlane.xlu0 %2622
    %v2624 = vsub.f32 0.0, %v2597
    %v2625 = vmul.f32 %v2624, 1.442695
    %v2626 = vpow.pop %v2625
    %v2627 = vadd.f32 %v2623, %v2626
    %v2628 = vlog2.pop %v2627
    %v2629 = vmul.f32 %v2628, 0.6931472
    %v2630 = vadd.f32 %v2629, %v2597
    %v2632 = vperm.slane %v2630, 0
    %v2633 = vperm.slane %v2630, 1
    %v2636 = vsub.f32 %v2580, %v2632
    %v2637 = vsub.f32 %v2581, %v2633
    %v2638 = vsub.f32 0.0, %v2630
    %2641 = vset.pattern.permute.xlu0 0
    %2642 = vperm.xlu0 %2641, %v2636
    %v2643 = vpop.permute.xlu0 %2642
    %2644 = vset.pattern.permute.xlu0 0
    %2645 = vperm.xlu0 %2644, %v2637
    %v2646 = vpop.permute.xlu0 %2645
    %v2647 = vperm.slane %v2643, %v2411
    %v2648 = vperm.slane %v2646, %v2411
    %v2649 = vsel %vm1624, %v2648, %v2647
    %v2651 = vsel %vm2474, %v2649, %v2638
    %s2652 = scalar_lea.vmem [#allocation19], 2
    %2653 = vst.msk [vmem:[%s2652] sm:$0x3] %vm2476, %v2651
    %s2654 = scalar_lea.vmem [#allocation7], 4
    %v2655 = vld [vmem:[%s2654] sm:$0x3]
    %v2656 = vadd.f32 %v2655, %v2544
    %v2657 = vmul.f32 %v2656, 0.5
    %v2658 = vtanh.pop %v2657
    %v2659 = vadd.f32 %v2658, 1.0
    %v2660 = vmul.f32 %v2659, 0.5
    %v2661 = vtanh.pop %v2656
    %v2662 = vmul.f32 %v2660, %v2496
    %2664 = vrot.lane.b32.xlu0 %v2661, 32
    %v2665 = vpop.permute.xlu0 %2664
    %v2667 = vmul.f32 %v2660, %v2665
    %2669 = vrot.lane.b32.xlu0 %v2667, 32
    %v2670 = vpop.permute.xlu0 %2669
    %v2672 = vadd.f32 %v2662, %v2670
    %v2673 = vtanh.pop %v2672
    %2675 = vrot.lane.b32.xlu0 %v2673, 32
    %v2676 = vpop.permute.xlu0 %2675
    %v2678 = vmul.f32 %v2660, %v2676
    %v2679 = vpack.c.bf16 %v2678, %v2678
    %v2680 = vld [vmem:[#allocation17] sm:$0xff]
    %v2681 = vld [vmem:[#allocation17 + $0x8] sm:$0xff]
    %v2682 = vld [vmem:[#allocation17 + $0x10] sm:$0xff]
    %v2683 = vld [vmem:[#allocation17 + $0x18] sm:$0xff]
    %2685 = vrot.lane.b32.xlu0 %v2679, 64
    %v2686 = vpop.permute.xlu0 %2685
    %v2691 = vunpack.c.l.b16 %v2680
    %v2692 = vunpack.c.h.b16 %v2680
    %v2693 = vunpack.c.l.b16 %v2681
    %v2694 = vunpack.c.h.b16 %v2681
    %v2695 = vunpack.c.l.b16 %v2682
    %v2696 = vunpack.c.h.b16 %v2682
    %v2697 = vunpack.c.l.b16 %v2683
    %v2698 = vunpack.c.h.b16 %v2683
    %v2699 = vpack.c.b16 %v2693, %v2691
    %v2700 = vpack.c.b16 %v2694, %v2692
    %v2701 = vpack.c.b16 %v2697, %v2695
    %v2702 = vpack.c.b16 %v2698, %v2696
    %v2708 = vsel %vm324, %v2686, 0
    %2710 = vmatpush.bf16.msra.mxu0 0
    %2711 = vmatpush.bf16.msra.mxu0 0
    %2712 = vmatpush.bf16.msra.mxu0 0
    %2713 = vmatpush.bf16.msra.mxu0 0
    %2714 = vmatpush.bf16.msra.mxu0 0
    %2715 = vmatpush.bf16.msra.mxu0 0
    %2716 = vmatpush.bf16.msra.mxu0 %v2701
    %2717 = vmatpush.bf16.msra.mxu0 %v2699
    %2718 = vmatmul.bf16.gmra.mxu0 %v2708
    %v2719 = vpop.f32.mrf.mxu0
    %v2720 = vadd.f32 0.0, %v2719
    %v2721 = vpop.f32.mrf.mxu0
    %2722 = vdwg.mxu0
    %2723 = vmatpush.bf16.msra.mxu0 0
    %2724 = vmatpush.bf16.msra.mxu0 0
    %2725 = vmatpush.bf16.msra.mxu0 0
    %2726 = vmatpush.bf16.msra.mxu0 0
    %2727 = vmatpush.bf16.msra.mxu0 0
    %2728 = vmatpush.bf16.msra.mxu0 0
    %2729 = vmatpush.bf16.msra.mxu0 %v2702
    %2730 = vmatpush.bf16.msra.mxu0 %v2700
    %2731 = vmatmul.bf16.gmra.mxu0 %v2708
    %v2732 = vpop.f32.mrf.mxu0
    %v2733 = vadd.f32 0.0, %v2732
    %v2734 = vpop.f32.mrf.mxu0
    %2735 = vdwg.mxu0
    %v2736 = vld [vmem:[#allocation6] sm:$0xff]
    %v2737 = vld [vmem:[#allocation6 + $0x8] sm:$0xff]
    %v2739 = vrot.slane %v2733, 1
    %v2740 = vperm.slane %v2733, 0
    %v2741 = vperm.slane %v2739, 0
    %v2744 = vadd.f32 %v2736, %v2740
    %v2745 = vadd.f32 %v2737, %v2741
    %v2746 = vtanh.pop %v2744
    %v2747 = vtanh.pop %v2745
    %v2748 = vmul.f32 %v2746, %v2373
    %v2749 = vmul.f32 %v2747, %v2373
    %v2750 = vsel %vm324, %v2748, 0.0
    %2751 = vadd.xlane.f32.xlu0 %v2750
    %v2752 = vpop.xlane.xlu0 %2751
    %v2753 = vsel %vm324, %v2749, 0.0
    %2754 = vadd.xlane.f32.xlu0 %v2753
    %v2755 = vpop.xlane.xlu0 %2754
    %v2756 = vadd.f32 %v2752, %v2390
    %v2757 = vadd.f32 %v2755, %v2397
    %2760 = vset.pattern.permute.xlu0 0
    %2761 = vperm.xlu0 %2760, %v2756
    %v2762 = vpop.permute.xlu0 %2761
    %2763 = vset.pattern.permute.xlu0 0
    %2764 = vperm.xlu0 %2763, %v2757
    %v2765 = vpop.permute.xlu0 %2764
    %v2766 = vperm.slane %v2762, %v2411
    %v2767 = vperm.slane %v2765, %v2411
    %v2768 = vsel %vm1624, %v2767, %v2766
    %v2770 = vsel %vm2416, %v2768, -inf
    %2771 = vmax.xlane.f32.xlu0 %v2770
    %v2772 = vpop.xlane.xlu0 %2771
    %v2773 = vmax.f32 %v2772, 0.0
    %v2775 = vperm.slane %v2773, 0
    %v2776 = vperm.slane %v2773, 1
    %v2779 = vsub.f32 %v2756, %v2775
    %v2780 = vsub.f32 %v2757, %v2776
    %v2781 = vmul.f32 %v2779, 1.442695
    %v2782 = vpow.pop %v2781
    %v2783 = vmul.f32 %v2780, 1.442695
    %v2784 = vpow.pop %v2783
    %2787 = vset.pattern.permute.xlu0 0
    %2788 = vperm.xlu0 %2787, %v2782
    %v2789 = vpop.permute.xlu0 %2788
    %2790 = vset.pattern.permute.xlu0 0
    %2791 = vperm.xlu0 %2790, %v2784
    %v2792 = vpop.permute.xlu0 %2791
    %v2793 = vperm.slane %v2789, %v2411
    %v2794 = vperm.slane %v2792, %v2411
    %v2795 = vsel %vm1624, %v2794, %v2793
    %v2797 = vsel %vm2416, %v2795, 0.0
    %2798 = vadd.xlane.f32.xlu0 %v2797
    %v2799 = vpop.xlane.xlu0 %2798
    %v2800 = vsub.f32 0.0, %v2773
    %v2801 = vmul.f32 %v2800, 1.442695
    %v2802 = vpow.pop %v2801
    %v2803 = vadd.f32 %v2799, %v2802
    %v2804 = vlog2.pop %v2803
    %v2805 = vmul.f32 %v2804, 0.6931472
    %v2806 = vadd.f32 %v2805, %v2773
    %v2808 = vperm.slane %v2806, 0
    %v2809 = vperm.slane %v2806, 1
    %v2812 = vsub.f32 %v2756, %v2808
    %v2813 = vsub.f32 %v2757, %v2809
    %v2814 = vsub.f32 0.0, %v2806
    %2817 = vset.pattern.permute.xlu0 0
    %2818 = vperm.xlu0 %2817, %v2812
    %v2819 = vpop.permute.xlu0 %2818
    %2820 = vset.pattern.permute.xlu0 0
    %2821 = vperm.xlu0 %2820, %v2813
    %v2822 = vpop.permute.xlu0 %2821
    %v2823 = vperm.slane %v2819, %v2411
    %v2824 = vperm.slane %v2822, %v2411
    %v2825 = vsel %vm1624, %v2824, %v2823
    %v2827 = vsel %vm2474, %v2825, %v2814
    %s2828 = scalar_lea.vmem [#allocation19], 4
    %2829 = vst.msk [vmem:[%s2828] sm:$0x3] %vm2476, %v2827
    %s2830 = scalar_lea.vmem [#allocation7], 6
    %v2831 = vld [vmem:[%s2830] sm:$0x3]
    %v2832 = vadd.f32 %v2831, %v2720
    %v2833 = vmul.f32 %v2832, 0.5
    %v2834 = vtanh.pop %v2833
    %v2835 = vadd.f32 %v2834, 1.0
    %v2836 = vmul.f32 %v2835, 0.5
    %v2837 = vtanh.pop %v2832
    %v2838 = vmul.f32 %v2836, %v2672
    %2840 = vrot.lane.b32.xlu0 %v2837, 32
    %v2841 = vpop.permute.xlu0 %2840
    %v2843 = vmul.f32 %v2836, %v2841
    %2845 = vrot.lane.b32.xlu0 %v2843, 32
    %v2846 = vpop.permute.xlu0 %2845
    %v2848 = vadd.f32 %v2838, %v2846
    %v2849 = vtanh.pop %v2848
    %2851 = vrot.lane.b32.xlu0 %v2849, 32
    %v2852 = vpop.permute.xlu0 %2851
    %v2854 = vmul.f32 %v2836, %v2852
    %v2855 = vpack.c.bf16 %v2854, %v2854
    %v2856 = vld [vmem:[#allocation17] sm:$0xff]
    %v2857 = vld [vmem:[#allocation17 + $0x8] sm:$0xff]
    %v2858 = vld [vmem:[#allocation17 + $0x10] sm:$0xff]
    %v2859 = vld [vmem:[#allocation17 + $0x18] sm:$0xff]
    %2861 = vrot.lane.b32.xlu0 %v2855, 64
    %v2862 = vpop.permute.xlu0 %2861
    %v2867 = vunpack.c.l.b16 %v2856
    %v2868 = vunpack.c.h.b16 %v2856
    %v2869 = vunpack.c.l.b16 %v2857
    %v2870 = vunpack.c.h.b16 %v2857
    %v2871 = vunpack.c.l.b16 %v2858
    %v2872 = vunpack.c.h.b16 %v2858
    %v2873 = vunpack.c.l.b16 %v2859
    %v2874 = vunpack.c.h.b16 %v2859
    %v2875 = vpack.c.b16 %v2869, %v2867
    %v2876 = vpack.c.b16 %v2870, %v2868
    %v2877 = vpack.c.b16 %v2873, %v2871
    %v2878 = vpack.c.b16 %v2874, %v2872
    %v2884 = vsel %vm324, %v2862, 0
    %2886 = vmatpush.bf16.msra.mxu0 0
    %2887 = vmatpush.bf16.msra.mxu0 0
    %2888 = vmatpush.bf16.msra.mxu0 0
    %2889 = vmatpush.bf16.msra.mxu0 0
    %2890 = vmatpush.bf16.msra.mxu0 0
    %2891 = vmatpush.bf16.msra.mxu0 0
    %2892 = vmatpush.bf16.msra.mxu0 %v2877
    %2893 = vmatpush.bf16.msra.mxu0 %v2875
    %2894 = vmatmul.bf16.gmra.mxu0 %v2884
    %v2895 = vpop.f32.mrf.mxu0
    %v2896 = vadd.f32 0.0, %v2895
    %v2897 = vpop.f32.mrf.mxu0
    %2898 = vdwg.mxu0
    %2899 = vmatpush.bf16.msra.mxu0 0
    %2900 = vmatpush.bf16.msra.mxu0 0
    %2901 = vmatpush.bf16.msra.mxu0 0
    %2902 = vmatpush.bf16.msra.mxu0 0
    %2903 = vmatpush.bf16.msra.mxu0 0
    %2904 = vmatpush.bf16.msra.mxu0 0
    %2905 = vmatpush.bf16.msra.mxu0 %v2878
    %2906 = vmatpush.bf16.msra.mxu0 %v2876
    %2907 = vmatmul.bf16.gmra.mxu0 %v2884
    %v2908 = vpop.f32.mrf.mxu0
    %v2909 = vadd.f32 0.0, %v2908
    %v2910 = vpop.f32.mrf.mxu0
    %2911 = vdwg.mxu0
    %v2912 = vld [vmem:[#allocation6] sm:$0xff]
    %v2913 = vld [vmem:[#allocation6 + $0x8] sm:$0xff]
    %v2915 = vrot.slane %v2909, 1
    %v2916 = vperm.slane %v2909, 0
    %v2917 = vperm.slane %v2915, 0
    %v2920 = vadd.f32 %v2912, %v2916
    %v2921 = vadd.f32 %v2913, %v2917
    %v2922 = vtanh.pop %v2920
    %v2923 = vtanh.pop %v2921
    %v2924 = vmul.f32 %v2922, %v2373
    %v2925 = vmul.f32 %v2923, %v2373
    %v2926 = vsel %vm324, %v2924, 0.0
    %2927 = vadd.xlane.f32.xlu0 %v2926
    %v2928 = vpop.xlane.xlu0 %2927
    %v2929 = vsel %vm324, %v2925, 0.0
    %2930 = vadd.xlane.f32.xlu0 %v2929
    %v2931 = vpop.xlane.xlu0 %2930
    %v2932 = vadd.f32 %v2928, %v2390
    %v2933 = vadd.f32 %v2931, %v2397
    %2936 = vset.pattern.permute.xlu0 0
    %2937 = vperm.xlu0 %2936, %v2932
    %v2938 = vpop.permute.xlu0 %2937
    %2939 = vset.pattern.permute.xlu0 0
    %2940 = vperm.xlu0 %2939, %v2933
    %v2941 = vpop.permute.xlu0 %2940
    %v2942 = vperm.slane %v2938, %v2411
    %v2943 = vperm.slane %v2941, %v2411
    %v2944 = vsel %vm1624, %v2943, %v2942
    %v2946 = vsel %vm2416, %v2944, -inf
    %2947 = vmax.xlane.f32.xlu0 %v2946
    %v2948 = vpop.xlane.xlu0 %2947
    %v2949 = vmax.f32 %v2948, 0.0
    %v2951 = vperm.slane %v2949, 0
    %v2952 = vperm.slane %v2949, 1
    %v2955 = vsub.f32 %v2932, %v2951
    %v2956 = vsub.f32 %v2933, %v2952
    %v2957 = vmul.f32 %v2955, 1.442695
    %v2958 = vpow.pop %v2957
    %v2959 = vmul.f32 %v2956, 1.442695
    %v2960 = vpow.pop %v2959
    %2963 = vset.pattern.permute.xlu0 0
    %2964 = vperm.xlu0 %2963, %v2958
    %v2965 = vpop.permute.xlu0 %2964
    %2966 = vset.pattern.permute.xlu0 0
    %2967 = vperm.xlu0 %2966, %v2960
    %v2968 = vpop.permute.xlu0 %2967
    %v2969 = vperm.slane %v2965, %v2411
    %v2970 = vperm.slane %v2968, %v2411
    %v2971 = vsel %vm1624, %v2970, %v2969
    %v2973 = vsel %vm2416, %v2971, 0.0
    %2974 = vadd.xlane.f32.xlu0 %v2973
    %v2975 = vpop.xlane.xlu0 %2974
    %v2976 = vsub.f32 0.0, %v2949
    %v2977 = vmul.f32 %v2976, 1.442695
    %v2978 = vpow.pop %v2977
    %v2979 = vadd.f32 %v2975, %v2978
    %v2980 = vlog2.pop %v2979
    %v2981 = vmul.f32 %v2980, 0.6931472
    %v2982 = vadd.f32 %v2981, %v2949
    %v2984 = vperm.slane %v2982, 0
    %v2985 = vperm.slane %v2982, 1
    %v2988 = vsub.f32 %v2932, %v2984
    %v2989 = vsub.f32 %v2933, %v2985
    %v2990 = vsub.f32 0.0, %v2982
    %2993 = vset.pattern.permute.xlu0 0
    %2994 = vperm.xlu0 %2993, %v2988
    %v2995 = vpop.permute.xlu0 %2994
    %2996 = vset.pattern.permute.xlu0 0
    %2997 = vperm.xlu0 %2996, %v2989
    %v2998 = vpop.permute.xlu0 %2997
    %v2999 = vperm.slane %v2995, %v2411
    %v3000 = vperm.slane %v2998, %v2411
    %v3001 = vsel %vm1624, %v3000, %v2999
    %v3003 = vsel %vm2474, %v3001, %v2990
    %s3004 = scalar_lea.vmem [#allocation19], 6
    %3005 = vst.msk [vmem:[%s3004] sm:$0x3] %vm2476, %v3003
    %s3006 = scalar_lea.vmem [#allocation7], 8
    %v3007 = vld [vmem:[%s3006] sm:$0x3]
    %v3008 = vadd.f32 %v3007, %v2896
    %v3009 = vmul.f32 %v3008, 0.5
    %v3010 = vtanh.pop %v3009
    %v3011 = vadd.f32 %v3010, 1.0
    %v3012 = vmul.f32 %v3011, 0.5
    %v3013 = vtanh.pop %v3008
    %v3014 = vmul.f32 %v3012, %v2848
    %3016 = vrot.lane.b32.xlu0 %v3013, 32
    %v3017 = vpop.permute.xlu0 %3016
    %v3019 = vmul.f32 %v3012, %v3017
    %3021 = vrot.lane.b32.xlu0 %v3019, 32
    %v3022 = vpop.permute.xlu0 %3021
    %v3024 = vadd.f32 %v3014, %v3022
    %v3025 = vtanh.pop %v3024
    %3027 = vrot.lane.b32.xlu0 %v3025, 32
    %v3028 = vpop.permute.xlu0 %3027
    %v3030 = vmul.f32 %v3012, %v3028
    %v3031 = vpack.c.bf16 %v3030, %v3030
    %v3032 = vld [vmem:[#allocation17] sm:$0xff]
    %v3033 = vld [vmem:[#allocation17 + $0x8] sm:$0xff]
    %v3034 = vld [vmem:[#allocation17 + $0x10] sm:$0xff]
    %v3035 = vld [vmem:[#allocation17 + $0x18] sm:$0xff]
    %3037 = vrot.lane.b32.xlu0 %v3031, 64
    %v3038 = vpop.permute.xlu0 %3037
    %v3043 = vunpack.c.l.b16 %v3032
    %v3044 = vunpack.c.h.b16 %v3032
    %v3045 = vunpack.c.l.b16 %v3033
    %v3046 = vunpack.c.h.b16 %v3033
    %v3047 = vunpack.c.l.b16 %v3034
    %v3048 = vunpack.c.h.b16 %v3034
    %v3049 = vunpack.c.l.b16 %v3035
    %v3050 = vunpack.c.h.b16 %v3035
    %v3051 = vpack.c.b16 %v3045, %v3043
    %v3052 = vpack.c.b16 %v3046, %v3044
    %v3053 = vpack.c.b16 %v3049, %v3047
    %v3054 = vpack.c.b16 %v3050, %v3048
    %v3060 = vsel %vm324, %v3038, 0
    %3062 = vmatpush.bf16.msra.mxu0 0
    %3063 = vmatpush.bf16.msra.mxu0 0
    %3064 = vmatpush.bf16.msra.mxu0 0
    %3065 = vmatpush.bf16.msra.mxu0 0
    %3066 = vmatpush.bf16.msra.mxu0 0
    %3067 = vmatpush.bf16.msra.mxu0 0
    %3068 = vmatpush.bf16.msra.mxu0 %v3053
    %3069 = vmatpush.bf16.msra.mxu0 %v3051
    %3070 = vmatmul.bf16.gmra.mxu0 %v3060
    %v3071 = vpop.f32.mrf.mxu0
    %v3072 = vadd.f32 0.0, %v3071
    %v3073 = vpop.f32.mrf.mxu0
    %3074 = vdwg.mxu0
    %3075 = vmatpush.bf16.msra.mxu0 0
    %3076 = vmatpush.bf16.msra.mxu0 0
    %3077 = vmatpush.bf16.msra.mxu0 0
    %3078 = vmatpush.bf16.msra.mxu0 0
    %3079 = vmatpush.bf16.msra.mxu0 0
    %3080 = vmatpush.bf16.msra.mxu0 0
    %3081 = vmatpush.bf16.msra.mxu0 %v3054
    %3082 = vmatpush.bf16.msra.mxu0 %v3052
    %3083 = vmatmul.bf16.gmra.mxu0 %v3060
    %v3084 = vpop.f32.mrf.mxu0
    %v3085 = vadd.f32 0.0, %v3084
    %v3086 = vpop.f32.mrf.mxu0
    %3087 = vdwg.mxu0
    %v3088 = vld [vmem:[#allocation6] sm:$0xff]
    %v3089 = vld [vmem:[#allocation6 + $0x8] sm:$0xff]
    %v3091 = vrot.slane %v3085, 1
    %v3092 = vperm.slane %v3085, 0
    %v3093 = vperm.slane %v3091, 0
    %v3096 = vadd.f32 %v3088, %v3092
    %v3097 = vadd.f32 %v3089, %v3093
    %v3098 = vtanh.pop %v3096
    %v3099 = vtanh.pop %v3097
    %v3100 = vmul.f32 %v3098, %v2373
    %v3101 = vmul.f32 %v3099, %v2373
    %v3102 = vsel %vm324, %v3100, 0.0
    %3103 = vadd.xlane.f32.xlu0 %v3102
    %v3104 = vpop.xlane.xlu0 %3103
    %v3105 = vsel %vm324, %v3101, 0.0
    %3106 = vadd.xlane.f32.xlu0 %v3105
    %v3107 = vpop.xlane.xlu0 %3106
    %v3108 = vadd.f32 %v3104, %v2390
    %v3109 = vadd.f32 %v3107, %v2397
    %3112 = vset.pattern.permute.xlu0 0
    %3113 = vperm.xlu0 %3112, %v3108
    %v3114 = vpop.permute.xlu0 %3113
    %3115 = vset.pattern.permute.xlu0 0
    %3116 = vperm.xlu0 %3115, %v3109
    %v3117 = vpop.permute.xlu0 %3116
    %v3118 = vperm.slane %v3114, %v2411
    %v3119 = vperm.slane %v3117, %v2411
    %v3120 = vsel %vm1624, %v3119, %v3118
    %v3122 = vsel %vm2416, %v3120, -inf
    %3123 = vmax.xlane.f32.xlu0 %v3122
    %v3124 = vpop.xlane.xlu0 %3123
    %v3125 = vmax.f32 %v3124, 0.0
    %v3127 = vperm.slane %v3125, 0
    %v3128 = vperm.slane %v3125, 1
    %v3131 = vsub.f32 %v3108, %v3127
    %v3132 = vsub.f32 %v3109, %v3128
    %v3133 = vmul.f32 %v3131, 1.442695
    %v3134 = vpow.pop %v3133
    %v3135 = vmul.f32 %v3132, 1.442695
    %v3136 = vpow.pop %v3135
    %3139 = vset.pattern.permute.xlu0 0
    %3140 = vperm.xlu0 %3139, %v3134
    %v3141 = vpop.permute.xlu0 %3140
    %3142 = vset.pattern.permute.xlu0 0
    %3143 = vperm.xlu0 %3142, %v3136
    %v3144 = vpop.permute.xlu0 %3143
    %v3145 = vperm.slane %v3141, %v2411
    %v3146 = vperm.slane %v3144, %v2411
    %v3147 = vsel %vm1624, %v3146, %v3145
    %v3149 = vsel %vm2416, %v3147, 0.0
    %3150 = vadd.xlane.f32.xlu0 %v3149
    %v3151 = vpop.xlane.xlu0 %3150
    %v3152 = vsub.f32 0.0, %v3125
    %v3153 = vmul.f32 %v3152, 1.442695
    %v3154 = vpow.pop %v3153
    %v3155 = vadd.f32 %v3151, %v3154
    %v3156 = vlog2.pop %v3155
    %v3157 = vmul.f32 %v3156, 0.6931472
    %v3158 = vadd.f32 %v3157, %v3125
    %v3160 = vperm.slane %v3158, 0
    %v3161 = vperm.slane %v3158, 1
    %v3164 = vsub.f32 %v3108, %v3160
    %v3165 = vsub.f32 %v3109, %v3161
    %v3166 = vsub.f32 0.0, %v3158
    %3169 = vset.pattern.permute.xlu0 0
    %3170 = vperm.xlu0 %3169, %v3164
    %v3171 = vpop.permute.xlu0 %3170
    %3172 = vset.pattern.permute.xlu0 0
    %3173 = vperm.xlu0 %3172, %v3165
    %v3174 = vpop.permute.xlu0 %3173
    %v3175 = vperm.slane %v3171, %v2411
    %v3176 = vperm.slane %v3174, %v2411
    %v3177 = vsel %vm1624, %v3176, %v3175
    %v3179 = vsel %vm2474, %v3177, %v3166
    %s3180 = scalar_lea.vmem [#allocation19], 8
    %3181 = vst.msk [vmem:[%s3180] sm:$0x3] %vm2476, %v3179
    %s3182 = scalar_lea.vmem [#allocation7], 10
    %v3183 = vld [vmem:[%s3182] sm:$0x3]
    %v3184 = vadd.f32 %v3183, %v3072
    %v3185 = vmul.f32 %v3184, 0.5
    %v3186 = vtanh.pop %v3185
    %v3187 = vadd.f32 %v3186, 1.0
    %v3188 = vmul.f32 %v3187, 0.5
    %v3189 = vtanh.pop %v3184
    %v3190 = vmul.f32 %v3188, %v3024
    %3192 = vrot.lane.b32.xlu0 %v3189, 32
    %v3193 = vpop.permute.xlu0 %3192
    %v3195 = vmul.f32 %v3188, %v3193
    %3197 = vrot.lane.b32.xlu0 %v3195, 32
    %v3198 = vpop.permute.xlu0 %3197
    %v3200 = vadd.f32 %v3190, %v3198
    %v3201 = vtanh.pop %v3200
    %3203 = vrot.lane.b32.xlu0 %v3201, 32
    %v3204 = vpop.permute.xlu0 %3203
    %v3206 = vmul.f32 %v3188, %v3204
    %v3207 = vpack.c.bf16 %v3206, %v3206
    %v3208 = vld [vmem:[#allocation17] sm:$0xff]
    %v3209 = vld [vmem:[#allocation17 + $0x8] sm:$0xff]
    %v3210 = vld [vmem:[#allocation17 + $0x10] sm:$0xff]
    %v3211 = vld [vmem:[#allocation17 + $0x18] sm:$0xff]
    %3213 = vrot.lane.b32.xlu0 %v3207, 64
    %v3214 = vpop.permute.xlu0 %3213
    %v3219 = vunpack.c.h.b16 %v3208
    %v3220 = vunpack.c.h.b16 %v3209
    %v3221 = vunpack.c.h.b16 %v3210
    %v3222 = vunpack.c.h.b16 %v3211
    %v3223 = vpack.c.b16 %v3220, %v3219
    %v3224 = vpack.c.b16 %v3222, %v3221
    %v3228 = vsel %vm324, %v3214, 0
    %3230 = vmatpush.bf16.msra.mxu0 0
    %3231 = vmatpush.bf16.msra.mxu0 0
    %3232 = vmatpush.bf16.msra.mxu0 0
    %3233 = vmatpush.bf16.msra.mxu0 0
    %3234 = vmatpush.bf16.msra.mxu0 0
    %3235 = vmatpush.bf16.msra.mxu0 0
    %3236 = vmatpush.bf16.msra.mxu0 %v3224
    %3237 = vmatpush.bf16.msra.mxu0 %v3223
    %3238 = vmatmul.bf16.gmra.mxu0 %v3228
    %v3239 = vpop.f32.mrf.mxu0
    %v3240 = vadd.f32 0.0, %v3239
    %v3241 = vpop.f32.mrf.mxu0
    %3242 = vdwg.mxu0
    %v3243 = vld [vmem:[#allocation6] sm:$0xff]
    %v3244 = vld [vmem:[#allocation6 + $0x8] sm:$0xff]
    %v3246 = vrot.slane %v3240, 1
    %v3247 = vperm.slane %v3240, 0
    %v3248 = vperm.slane %v3246, 0
    %v3251 = vadd.f32 %v3243, %v3247
    %v3252 = vadd.f32 %v3244, %v3248
    %v3253 = vtanh.pop %v3251
    %v3254 = vtanh.pop %v3252
    %v3255 = vmul.f32 %v3253, %v2373
    %v3256 = vmul.f32 %v3254, %v2373
    %v3257 = vsel %vm324, %v3255, 0.0
    %3258 = vadd.xlane.f32.xlu0 %v3257
    %v3259 = vpop.xlane.xlu0 %3258
    %v3260 = vsel %vm324, %v3256, 0.0
    %3261 = vadd.xlane.f32.xlu0 %v3260
    %v3262 = vpop.xlane.xlu0 %3261
    %v3263 = vadd.f32 %v3259, %v2390
    %v3264 = vadd.f32 %v3262, %v2397
    %3267 = vset.pattern.permute.xlu0 0
    %3268 = vperm.xlu0 %3267, %v3263
    %v3269 = vpop.permute.xlu0 %3268
    %3270 = vset.pattern.permute.xlu0 0
    %3271 = vperm.xlu0 %3270, %v3264
    %v3272 = vpop.permute.xlu0 %3271
    %v3273 = vperm.slane %v3269, %v2411
    %v3274 = vperm.slane %v3272, %v2411
    %v3275 = vsel %vm1624, %v3274, %v3273
    %v3277 = vsel %vm2416, %v3275, -inf
    %3278 = vmax.xlane.f32.xlu0 %v3277
    %v3279 = vpop.xlane.xlu0 %3278
    %v3280 = vmax.f32 %v3279, 0.0
    %v3282 = vperm.slane %v3280, 0
    %v3283 = vperm.slane %v3280, 1
    %v3286 = vsub.f32 %v3263, %v3282
    %v3287 = vsub.f32 %v3264, %v3283
    %v3288 = vmul.f32 %v3286, 1.442695
    %v3289 = vpow.pop %v3288
    %v3290 = vmul.f32 %v3287, 1.442695
    %v3291 = vpow.pop %v3290
    %3294 = vset.pattern.permute.xlu0 0
    %3295 = vperm.xlu0 %3294, %v3289
    %v3296 = vpop.permute.xlu0 %3295
    %3297 = vset.pattern.permute.xlu0 0
    %3298 = vperm.xlu0 %3297, %v3291
    %v3299 = vpop.permute.xlu0 %3298
    %v3300 = vperm.slane %v3296, %v2411
    %v3301 = vperm.slane %v3299, %v2411
    %v3302 = vsel %vm1624, %v3301, %v3300
    %v3304 = vsel %vm2416, %v3302, 0.0
    %3305 = vadd.xlane.f32.xlu0 %v3304
    %v3306 = vpop.xlane.xlu0 %3305
    %v3307 = vsub.f32 0.0, %v3280
    %v3308 = vmul.f32 %v3307, 1.442695
    %v3309 = vpow.pop %v3308
    %v3310 = vadd.f32 %v3306, %v3309
    %v3311 = vlog2.pop %v3310
    %v3312 = vmul.f32 %v3311, 0.6931472
    %v3313 = vadd.f32 %v3312, %v3280
    %v3315 = vperm.slane %v3313, 0
    %v3316 = vperm.slane %v3313, 1
    %v3319 = vsub.f32 %v3263, %v3315
    %v3320 = vsub.f32 %v3264, %v3316
    %v3321 = vsub.f32 0.0, %v3313
    %3324 = vset.pattern.permute.xlu0 0
    %3325 = vperm.xlu0 %3324, %v3319
    %v3326 = vpop.permute.xlu0 %3325
    %3327 = vset.pattern.permute.xlu0 0
    %3328 = vperm.xlu0 %3327, %v3320
    %v3329 = vpop.permute.xlu0 %3328
    %v3330 = vperm.slane %v3326, %v2411
    %v3331 = vperm.slane %v3329, %v2411
    %v3332 = vsel %vm1624, %v3331, %v3330
    %v3334 = vsel %vm2474, %v3332, %v3321
    %s3335 = scalar_lea.vmem [#allocation19], 10
    %3336 = vst.msk [vmem:[%s3335] sm:$0x3] %vm2476, %v3334
    // Predicated region
    $region106: #{tpu_custom_call.1} parent=1 // pred_check
      _
    $region107: #{tpu_custom_call.1} parent=1 // pred_check_branch
      %3338 = sbr.rel (0) target = $region109
    $region108: #{tpu_custom_call.1} parent=1 // pred_region
      %3340 = vsyncadd [#allocation10], 0
      %s3341 = sshll.u32 [#allocation19], 4
      %s3342 = int_to_ptr.vmem [resolvable:$true] %s3341
      %s3343 = sshll.u32 %s20, 4
      %s3344 = int_to_ptr.hbm [resolvable:$true] %s3343
      %3349 = dma.vmem_to_hbm [thread:$0]  %s3342, 192, %s3344, [#allocation10], 32, 32, 2
    $region109: #{tpu_custom_call.1} parent=1 // pred_fallthru
      _
    // Predicated region
    $region110: #{tpu_custom_call.1} parent=1 // pred_check
      _
    $region111: #{tpu_custom_call.1} parent=1 // pred_check_branch
      %3351 = sbr.rel (0) target = $region113
    $region112: #{tpu_custom_call.1} parent=1 // pred_region
      %3353 = dma.done [#allocation10], 192
    $region113: #{tpu_custom_call.1} parent=1 // pred_fallthru
      _
    %3354 = vsyncpa [#allocation9], 1
    %3355 = vsyncpa [#allocation12], 1
    %3356 = vsyncpa [#allocation15], 1
    %3357 = vsyncpa [#allocation18], 1
    %3358 = vsyncpa [#allocation10], 1

</llo_original>
